<compile_context>
chip_gen: v5e
topology: v5e:2x2
jax: 0.10.0
libtpu: 0.0.40
codegen_flags: <defaults>
</compile_context>

<pallas_src>
import functools

import numpy as np
import jax
import jax.numpy as jnp
from jax.experimental import pallas as pl
from jax.experimental.pallas import tpu as pltpu


def _sohlstm_kernel(num_layers, hidden_dim, t_chunk, *refs):
    # refs = [x_proj, h0, c0,
    #         whh0_t, (wih_t_l, whh_t_l, b_l) for l in 1..L-1,
    #         hseq, hn, cn]
    n_w = 1 + 3 * (num_layers - 1)
    xproj_ref, h0_ref, c0_ref = refs[0:3]
    w_refs = refs[3:3 + n_w]
    hseq_ref, hn_ref, cn_ref = refs[3 + n_w:6 + n_w]

    H = hidden_dim
    G = 4 * H

    # Recurrent state persists across the sequential time grid in the hn/cn
    # output blocks (constant index maps -> VMEM-resident).
    @pl.when(pl.program_id(0) == 0)
    def _():
        hn_ref[...] = h0_ref[...]
        cn_ref[...] = c0_ref[...]

    # Per-lane gate-activation constants, hoisted out of the timestep loop.
    # i/f/o lanes: sigmoid(x); g lanes: tanh(x) = 2*sigmoid(2x) - 1.
    lane = jax.lax.broadcasted_iota(jnp.int32, (1, G), 1)
    is_g = jnp.logical_and(lane >= 2 * H, lane < 3 * H)
    pre_scale = jnp.where(is_g, 2.0, 1.0)     # (1, 4H): x -> 2x on g lanes
    post_scale = jnp.where(is_g, 2.0, 1.0)    # (1, 4H): s -> 2s on g lanes
    post_shift = jnp.where(is_g, -1.0, 0.0)   # (1, 4H): -1 on g lanes

    def cell(gates, c_prev):
        # Single EUP pass over all 4H gate lanes + VPU fixups.
        s = jax.nn.sigmoid(gates * pre_scale)
        a = s * post_scale + post_shift
        i_g = a[:, 0 * H:1 * H]
        f_g = a[:, 1 * H:2 * H]
        g_g = a[:, 2 * H:3 * H]
        o_g = a[:, 3 * H:4 * H]
        c_new = f_g * c_prev + i_g * g_g
        h_new = o_g * jnp.tanh(c_new)
        return h_new, c_new

    # Read state ONCE per chunk into vreg-carried locals.
    h_loc = [hn_ref[l] for l in range(num_layers)]
    c_loc = [cn_ref[l] for l in range(num_layers)]

    for s in range(t_chunk):                       # fully unrolled, static indices
        # Layer 0: hoisted input projection (incl. both biases) + recurrent dot.
        gates = xproj_ref[s] + jnp.dot(
            h_loc[0], w_refs[0][...], preferred_element_type=jnp.float32)
        h_loc[0], c_loc[0] = cell(gates, c_loc[0])
        inp = h_loc[0]
        # Layers >= 1: two small dots (no lane concat on the critical path).
        for l in range(1, num_layers):
            wih_t = w_refs[1 + 3 * (l - 1)]
            whh_t = w_refs[2 + 3 * (l - 1)]
            bias = w_refs[3 + 3 * (l - 1)]
            gates = (jnp.dot(inp, wih_t[...], preferred_element_type=jnp.float32)
                     + jnp.dot(h_loc[l], whh_t[...], preferred_element_type=jnp.float32)
                     + bias[...])
            h_loc[l], c_loc[l] = cell(gates, c_loc[l])
            inp = h_loc[l]
        # Off-critical-path store of the last-layer output for this step.
        hseq_ref[s] = inp

    # Write state back ONCE per chunk.
    for l in range(num_layers):
        hn_ref[l] = h_loc[l]
        cn_ref[l] = c_loc[l]


def sohlstm_tbptt_forward(x, params, hidden=None, *, t_chunk=16):
    """Pallas equivalent of SOHLSTM_TBPTT.forward (eval mode)."""
    B, T, D = x.shape
    num_layers = len(params["lstm"])
    H = params["lstm"][0]["whh"].shape[1]

    t_chunk = min(t_chunk, T)
    assert T % t_chunk == 0, "sequence length must be divisible by t_chunk"
    n_chunks = T // t_chunk

    if hidden is None:
        h0 = jnp.zeros((num_layers, B, H), jnp.float32)
        c0 = jnp.zeros((num_layers, B, H), jnp.float32)
    else:
        h0, c0 = hidden

    x = x.astype(jnp.float32)

    # Hoisted, TIME-MAJOR layer-0 input projection (time-independent): one big
    # XLA matmul with both layer-0 biases folded in -> per-step operand in the
    # kernel is a contiguous (B, 4H) tile.
    l0 = params["lstm"][0]
    b0 = (l0["bih"] + l0["bhh"]).reshape(1, 1, 4 * H)
    x_tm = jnp.swapaxes(x, 0, 1)                                      # (T, B, D)
    x_proj = jnp.einsum("tbd,dg->tbg", x_tm, l0["wih"].T) + b0        # (T, B, 4H)

    # Pre-transposed weights / pre-summed biases for the recurrence.
    flat_w = [l0["whh"].T]                                            # (H, 4H)
    for l in range(1, num_layers):
        lp = params["lstm"][l]
        flat_w.append(lp["wih"].T)                                    # (H, 4H)
        flat_w.append(lp["whh"].T)                                    # (H, 4H)
        flat_w.append((lp["bih"] + lp["bhh"]).reshape(1, -1))         # (1, 4H)

    in_specs = [
        pl.BlockSpec((t_chunk, B, 4 * H), lambda c: (c, 0, 0)),       # x_proj chunk
        pl.BlockSpec((num_layers, B, H), lambda c: (0, 0, 0)),        # h0 (resident)
        pl.BlockSpec((num_layers, B, H), lambda c: (0, 0, 0)),        # c0 (resident)
    ]
    for w in flat_w:                                                  # weights (resident)
        in_specs.append(pl.BlockSpec(w.shape, lambda c, n=w.ndim: (0,) * n))

    out_shape = (
        jax.ShapeDtypeStruct((T, B, H), jnp.float32),                 # last-layer h, all steps
        jax.ShapeDtypeStruct((num_layers, B, H), jnp.float32),        # hn
        jax.ShapeDtypeStruct((num_layers, B, H), jnp.float32),        # cn
    )
    out_specs = [
        pl.BlockSpec((t_chunk, B, H), lambda c: (c, 0, 0)),
        pl.BlockSpec((num_layers, B, H), lambda c: (0, 0, 0)),        # state, resident
        pl.BlockSpec((num_layers, B, H), lambda c: (0, 0, 0)),        # state, resident
    ]

    kernel = functools.partial(_sohlstm_kernel, num_layers, H, t_chunk)
    hseq, hn, cn = pl.pallas_call(
        kernel,
        out_shape=out_shape,
        grid_spec=pltpu.PrefetchScalarGridSpec(
            num_scalar_prefetch=0,
            grid=(n_chunks,),
            in_specs=in_specs,
            out_specs=out_specs,
        ),
        compiler_params=pltpu.CompilerParams(
            dimension_semantics=("arbitrary",),      # time recurrence is serial
            vmem_limit_bytes=32 * 1024 * 1024,       # explicit (v5e default is 16 MiB)
        ),
    )(x_proj, h0, c0, *flat_w)

    # FC head hoisted off the recurrence: Linear(H, H//2) -> LeakyReLU(0.01)
    # -> Linear(H//2, 1), run as dense XLA matmuls over all B*T rows at once.
    hf = hseq.reshape(T * B, H)                                       # rows ordered (t, b)
    z = jnp.dot(hf, params["fc1_w"].T) + params["fc1_b"]
    z = jnp.where(z >= 0.0, z, 0.01 * z)
    y = jnp.dot(z, params["fc2_w"].T) + params["fc2_b"]               # (T*B, 1)
    preds = jnp.transpose(y.reshape(T, B), (1, 0))                    # (B, T)
    return preds, (hn, cn)


def init_params(key, input_dim, hidden_dim, num_layers):
    """Deterministic synthetic parameters with PyTorch nn.LSTM/Linear shapes."""
    k = 1.0 / float(np.sqrt(hidden_dim))
    lstm = []
    for l in range(num_layers):
        in_dim = input_dim if l == 0 else hidden_dim
        key, k0, k1, k2, k3 = jax.random.split(key, 5)
        lstm.append({
            "wih": jax.random.uniform(k0, (4 * hidden_dim, in_dim), jnp.float32, -k, k),
            "whh": jax.random.uniform(k1, (4 * hidden_dim, hidden_dim), jnp.float32, -k, k),
            "bih": jax.random.uniform(k2, (4 * hidden_dim,), jnp.float32, -k, k),
            "bhh": jax.random.uniform(k3, (4 * hidden_dim,), jnp.float32, -k, k),
        })
    key, k1, k2, k3, k4 = jax.random.split(key, 5)
    half = hidden_dim // 2
    return {
        "lstm": lstm,
        "fc1_w": jax.random.uniform(k1, (half, hidden_dim), jnp.float32, -k, k),
        "fc1_b": jax.random.uniform(k2, (half,), jnp.float32, -k, k),
        "fc2_w": jax.random.uniform(k3, (1, half), jnp.float32, -k, k),
        "fc2_b": jax.random.uniform(k4, (1,), jnp.float32, -k, k),
    }


def reference_forward(x, params, hidden=None):
    """Pure-JAX reference mirroring the PyTorch forward (eval mode)."""
    B, T, D = x.shape
    L = len(params["lstm"])
    H = params["lstm"][0]["whh"].shape[1]
    if hidden is None:
        h0 = jnp.zeros((L, B, H), jnp.float32)
        c0 = jnp.zeros((L, B, H), jnp.float32)
    else:
        h0, c0 = hidden

    seq = x.astype(jnp.float32)
    hn, cn = [], []
    for l in range(L):
        wih, whh = params["lstm"][l]["wih"], params["lstm"][l]["whh"]
        bih, bhh = params["lstm"][l]["bih"], params["lstm"][l]["bhh"]

        def step(carry, xt, wih=wih, whh=whh, bih=bih, bhh=bhh):
            h_prev, c_prev = carry
            gates = jnp.dot(xt, wih.T) + jnp.dot(h_prev, whh.T) + bih + bhh
            i_g = jax.nn.sigmoid(gates[:, 0 * H:1 * H])
            f_g = jax.nn.sigmoid(gates[:, 1 * H:2 * H])
            g_g = jnp.tanh(gates[:, 2 * H:3 * H])
            o_g = jax.nn.sigmoid(gates[:, 3 * H:4 * H])
            c_new = f_g * c_prev + i_g * g_g
            h_new = o_g * jnp.tanh(c_new)
            return (h_new, c_new), h_new

        (hf, cf), outs = jax.lax.scan(step, (h0[l], c0[l]), jnp.swapaxes(seq, 0, 1))
        seq = jnp.swapaxes(outs, 0, 1)
        hn.append(hf)
        cn.append(cf)

    out = seq.reshape(-1, H)
    z = jnp.dot(out, params["fc1_w"].T) + params["fc1_b"]
    z = jnp.where(z >= 0, z, 0.01 * z)
    y = jnp.dot(z, params["fc2_w"].T) + params["fc2_b"]
    preds = y.reshape(B, T)
    return preds, (jnp.stack(hn), jnp.stack(cn))


if __name__ == "__main__":
    B, T, D, H, L = 2, 32, 4, 32, 2

    key = jax.random.PRNGKey(0)
    key, xkey, pkey = jax.random.split(key, 3)
    x = jax.random.normal(xkey, (B, T, D), jnp.float32)
    params = init_params(pkey, input_dim=D, hidden_dim=H, num_layers=L)

    preds, (hn, cn) = sohlstm_tbptt_forward(x, params, hidden=None, t_chunk=16)
    jax.block_until_ready((preds, hn, cn))

    preds_r, (hn_r, cn_r) = reference_forward(x, params, hidden=None)
    jax.block_until_ready((preds_r, hn_r, cn_r))

    # Default (bf16-pass) MXU precision is used in both paths, but the kernel
    # fuses / hoists the matmuls differently and uses tanh(x)=2*sigmoid(2x)-1
    # for the g gate -> allow small numerical drift.
    np.testing.assert_allclose(np.asarray(preds), np.asarray(preds_r),
                               rtol=1e-2, atol=1e-2)
    np.testing.assert_allclose(np.asarray(hn), np.asarray(hn_r),
                               rtol=1e-2, atol=1e-2)
    np.testing.assert_allclose(np.asarray(cn), np.asarray(cn_r),
                               rtol=1e-2, atol=1e-2)

    assert preds.shape == (B, T)
    assert hn.shape == (L, B, H) and cn.shape == (L, B, H)
    print("KERNEL_OK")
</pallas_src>

<mosaic_0001>
module attributes {stable_mosaic.version = 11 : i64} {
  func.func @_sohlstm_kernel(%arg0: i32, %arg1: memref<16x2x128xf32, #tpu.memory_space<vmem>>, %arg2: memref<2x2x32xf32, #tpu.memory_space<vmem>>, %arg3: memref<2x2x32xf32, #tpu.memory_space<vmem>>, %arg4: memref<32x128xf32, #tpu.memory_space<vmem>>, %arg5: memref<32x128xf32, #tpu.memory_space<vmem>>, %arg6: memref<32x128xf32, #tpu.memory_space<vmem>>, %arg7: memref<1x128xf32, #tpu.memory_space<vmem>>, %arg8: memref<16x2x32xf32, #tpu.memory_space<vmem>>, %arg9: memref<2x2x32xf32, #tpu.memory_space<vmem>>, %arg10: memref<2x2x32xf32, #tpu.memory_space<vmem>>) attributes {dimension_semantics = [#tpu.dimension_semantics<arbitrary>], iteration_bounds = array<i64: 2>, scalar_prefetch = 0 : i64, scratch_operands = 0 : i64, tpu.core_type = #tpu.core_type<tc>, window_params = [{transform_indices = @transform_0, window_bounds = array<i64: 16, 2, 128>}, {pipeline_mode = #tpu.pipeline_mode<synchronous>, transform_indices = @transform_1, window_bounds = array<i64: 2, 2, 32>}, {pipeline_mode = #tpu.pipeline_mode<synchronous>, transform_indices = @transform_2, window_bounds = array<i64: 2, 2, 32>}, {pipeline_mode = #tpu.pipeline_mode<synchronous>, transform_indices = @transform_3, window_bounds = array<i64: 32, 128>}, {pipeline_mode = #tpu.pipeline_mode<synchronous>, transform_indices = @transform_4, window_bounds = array<i64: 32, 128>}, {pipeline_mode = #tpu.pipeline_mode<synchronous>, transform_indices = @transform_5, window_bounds = array<i64: 32, 128>}, {pipeline_mode = #tpu.pipeline_mode<synchronous>, transform_indices = @transform_6, window_bounds = array<i64: 1, 128>}, {transform_indices = @transform_7, window_bounds = array<i64: 16, 2, 32>}, {pipeline_mode = #tpu.pipeline_mode<synchronous>, transform_indices = @transform_8, window_bounds = array<i64: 2, 2, 32>}, {pipeline_mode = #tpu.pipeline_mode<synchronous>, transform_indices = @transform_9, window_bounds = array<i64: 2, 2, 32>}]} {
    %c0_i32 = arith.constant 0 : i32
    %0 = arith.cmpi eq, %arg0, %c0_i32 : i32
    %1 = arith.extui %0 : i1 to i32
    %c0_i32_0 = arith.constant 0 : i32
    %2 = arith.cmpi ne, %1, %c0_i32_0 : i32
    scf.if %2 {
      %c0_318 = arith.constant 0 : index
      %c0_319 = arith.constant 0 : index
      %c0_320 = arith.constant 0 : index
      %934 = vector.load %arg2[%c0_318, %c0_319, %c0_320] : memref<2x2x32xf32, #tpu.memory_space<vmem>>, vector<2x2x32xf32>
      %c0_321 = arith.constant 0 : index
      %c0_322 = arith.constant 0 : index
      %c0_323 = arith.constant 0 : index
      %935 = vector.load %arg9[%c0_321, %c0_322, %c0_323] : memref<2x2x32xf32, #tpu.memory_space<vmem>>, vector<2x2x32xf32>
      tpu.vector_store %arg9[%c0_321, %c0_322, %c0_323], %934 {strides = array<i32>} : memref<2x2x32xf32, #tpu.memory_space<vmem>>, vector<2x2x32xf32>,
      %c0_324 = arith.constant 0 : index
      %c0_325 = arith.constant 0 : index
      %c0_326 = arith.constant 0 : index
      %936 = vector.load %arg3[%c0_324, %c0_325, %c0_326] : memref<2x2x32xf32, #tpu.memory_space<vmem>>, vector<2x2x32xf32>
      %c0_327 = arith.constant 0 : index
      %c0_328 = arith.constant 0 : index
      %c0_329 = arith.constant 0 : index
      %937 = vector.load %arg10[%c0_327, %c0_328, %c0_329] : memref<2x2x32xf32, #tpu.memory_space<vmem>>, vector<2x2x32xf32>
      tpu.vector_store %arg10[%c0_327, %c0_328, %c0_329], %936 {strides = array<i32>} : memref<2x2x32xf32, #tpu.memory_space<vmem>>, vector<2x2x32xf32>,
    } else {
    }
    %3 = tpu.iota {dimensions = array<i32: 1>} : vector<1x128xi32>
    %c64_i32 = arith.constant 64 : i32
    %4 = vector.broadcast %c64_i32 : i32 to vector<1x128xi32>
    %5 = arith.cmpi sge, %3, %4 : vector<1x128xi32>
    %c96_i32 = arith.constant 96 : i32
    %6 = vector.broadcast %c96_i32 : i32 to vector<1x128xi32>
    %7 = arith.cmpi slt, %3, %6 : vector<1x128xi32>
    %8 = arith.andi %5, %7 : vector<1x128xi1>
    %cst = arith.constant 2.000000e+00 : f32
    %cst_1 = arith.constant 1.000000e+00 : f32
    %9 = vector.broadcast %cst : f32 to vector<1x128xf32>
    %10 = vector.broadcast %cst_1 : f32 to vector<1x128xf32>
    %11 = arith.select %8, %9, %10 : vector<1x128xi1>, vector<1x128xf32>
    %cst_2 = arith.constant 2.000000e+00 : f32
    %cst_3 = arith.constant 1.000000e+00 : f32
    %12 = vector.broadcast %cst_2 : f32 to vector<1x128xf32>
    %13 = vector.broadcast %cst_3 : f32 to vector<1x128xf32>
    %14 = arith.select %8, %12, %13 : vector<1x128xi1>, vector<1x128xf32>
    %cst_4 = arith.constant -1.000000e+00 : f32
    %cst_5 = arith.constant 0.000000e+00 : f32
    %15 = vector.broadcast %cst_4 : f32 to vector<1x128xf32>
    %16 = vector.broadcast %cst_5 : f32 to vector<1x128xf32>
    %17 = arith.select %8, %15, %16 : vector<1x128xi1>, vector<1x128xf32>
    %c0 = arith.constant 0 : index
    %c0_6 = arith.constant 0 : index
    %c0_7 = arith.constant 0 : index
    %18 = vector.load %arg9[%c0, %c0_6, %c0_7] : memref<2x2x32xf32, #tpu.memory_space<vmem>>, vector<1x2x32xf32>
    %19 = vector.shape_cast %18 : vector<1x2x32xf32> to vector<2x32xf32>
    %c1 = arith.constant 1 : index
    %c0_8 = arith.constant 0 : index
    %c0_9 = arith.constant 0 : index
    %20 = vector.load %arg9[%c1, %c0_8, %c0_9] : memref<2x2x32xf32, #tpu.memory_space<vmem>>, vector<1x2x32xf32>
    %21 = vector.shape_cast %20 : vector<1x2x32xf32> to vector<2x32xf32>
    %c0_10 = arith.constant 0 : index
    %c0_11 = arith.constant 0 : index
    %c0_12 = arith.constant 0 : index
    %22 = vector.load %arg10[%c0_10, %c0_11, %c0_12] : memref<2x2x32xf32, #tpu.memory_space<vmem>>, vector<1x2x32xf32>
    %23 = vector.shape_cast %22 : vector<1x2x32xf32> to vector<2x32xf32>
    %c1_13 = arith.constant 1 : index
    %c0_14 = arith.constant 0 : index
    %c0_15 = arith.constant 0 : index
    %24 = vector.load %arg10[%c1_13, %c0_14, %c0_15] : memref<2x2x32xf32, #tpu.memory_space<vmem>>, vector<1x2x32xf32>
    %25 = vector.shape_cast %24 : vector<1x2x32xf32> to vector<2x32xf32>
    %c0_16 = arith.constant 0 : index
    %c0_17 = arith.constant 0 : index
    %c0_18 = arith.constant 0 : index
    %26 = vector.load %arg1[%c0_16, %c0_17, %c0_18] : memref<16x2x128xf32, #tpu.memory_space<vmem>>, vector<1x2x128xf32>
    %27 = vector.shape_cast %26 : vector<1x2x128xf32> to vector<2x128xf32>
    %c0_19 = arith.constant 0 : index
    %c0_20 = arith.constant 0 : index
    %28 = vector.load %arg4[%c0_19, %c0_20] : memref<32x128xf32, #tpu.memory_space<vmem>>, vector<32x128xf32>
    %cst_21 = arith.constant dense<0.000000e+00> : vector<2x128xf32>
    %29 = tpu.matmul %19, %28, %cst_21 {dimension_numbers = #tpu.dot_dimension_numbers<[1], [0], [0], [1], [0, 0, 1, 1], [], []>} : vector<2x32xf32>, vector<32x128xf32>, vector<2x128xf32> -> vector<2x128xf32>
    %30 = arith.addf %27, %29 : vector<2x128xf32>
    %31 = vector.broadcast %11 : vector<1x128xf32> to vector<2x128xf32>
    %32 = arith.mulf %30, %31 : vector<2x128xf32>
    %33 = arith.negf %32 : vector<2x128xf32>
    %34 = math.exp %33 : vector<2x128xf32>
    %cst_22 = arith.constant 1.000000e+00 : f32
    %35 = vector.broadcast %cst_22 : f32 to vector<2x128xf32>
    %36 = arith.addf %35, %34 : vector<2x128xf32>
    %37 = arith.divf %35, %36 : vector<2x128xf32>
    %38 = vector.broadcast %14 : vector<1x128xf32> to vector<2x128xf32>
    %39 = arith.mulf %37, %38 : vector<2x128xf32>
    %40 = vector.broadcast %17 : vector<1x128xf32> to vector<2x128xf32>
    %41 = arith.addf %39, %40 : vector<2x128xf32>
    %42 = vector.extract_strided_slice %41 {offsets = [0, 0], sizes = [2, 32], strides = [1, 1]} : vector<2x128xf32> to vector<2x32xf32>
    %43 = vector.extract_strided_slice %41 {offsets = [0, 32], sizes = [2, 32], strides = [1, 1]} : vector<2x128xf32> to vector<2x32xf32>
    %44 = vector.extract_strided_slice %41 {offsets = [0, 64], sizes = [2, 32], strides = [1, 1]} : vector<2x128xf32> to vector<2x32xf32>
    %45 = vector.extract_strided_slice %41 {offsets = [0, 96], sizes = [2, 32], strides = [1, 1]} : vector<2x128xf32> to vector<2x32xf32>
    %46 = arith.mulf %43, %23 : vector<2x32xf32>
    %47 = arith.mulf %42, %44 : vector<2x32xf32>
    %48 = arith.addf %46, %47 : vector<2x32xf32>
    %49 = math.tanh %48 : vector<2x32xf32>
    %50 = arith.mulf %45, %49 : vector<2x32xf32>
    %c0_23 = arith.constant 0 : index
    %c0_24 = arith.constant 0 : index
    %51 = vector.load %arg5[%c0_23, %c0_24] : memref<32x128xf32, #tpu.memory_space<vmem>>, vector<32x128xf32>
    %cst_25 = arith.constant dense<0.000000e+00> : vector<2x128xf32>
    %52 = tpu.matmul %50, %51, %cst_25 {dimension_numbers = #tpu.dot_dimension_numbers<[1], [0], [0], [1], [0, 0, 1, 1], [], []>} : vector<2x32xf32>, vector<32x128xf32>, vector<2x128xf32> -> vector<2x128xf32>
    %c0_26 = arith.constant 0 : index
    %c0_27 = arith.constant 0 : index
    %53 = vector.load %arg6[%c0_26, %c0_27] : memref<32x128xf32, #tpu.memory_space<vmem>>, vector<32x128xf32>
    %cst_28 = arith.constant dense<0.000000e+00> : vector<2x128xf32>
    %54 = tpu.matmul %21, %53, %cst_28 {dimension_numbers = #tpu.dot_dimension_numbers<[1], [0], [0], [1], [0, 0, 1, 1], [], []>} : vector<2x32xf32>, vector<32x128xf32>, vector<2x128xf32> -> vector<2x128xf32>
    %55 = arith.addf %52, %54 : vector<2x128xf32>
    %c0_29 = arith.constant 0 : index
    %c0_30 = arith.constant 0 : index
    %56 = vector.load %arg7[%c0_29, %c0_30] : memref<1x128xf32, #tpu.memory_space<vmem>>, vector<1x128xf32>
    %57 = vector.broadcast %56 : vector<1x128xf32> to vector<2x128xf32>
    %58 = arith.addf %55, %57 : vector<2x128xf32>
    %59 = vector.broadcast %11 : vector<1x128xf32> to vector<2x128xf32>
    %60 = arith.mulf %58, %59 : vector<2x128xf32>
    %61 = arith.negf %60 : vector<2x128xf32>
    %62 = math.exp %61 : vector<2x128xf32>
    %cst_31 = arith.constant 1.000000e+00 : f32
    %63 = vector.broadcast %cst_31 : f32 to vector<2x128xf32>
    %64 = arith.addf %63, %62 : vector<2x128xf32>
    %65 = arith.divf %63, %64 : vector<2x128xf32>
    %66 = vector.broadcast %14 : vector<1x128xf32> to vector<2x128xf32>
    %67 = arith.mulf %65, %66 : vector<2x128xf32>
    %68 = vector.broadcast %17 : vector<1x128xf32> to vector<2x128xf32>
    %69 = arith.addf %67, %68 : vector<2x128xf32>
    %70 = vector.extract_strided_slice %69 {offsets = [0, 0], sizes = [2, 32], strides = [1, 1]} : vector<2x128xf32> to vector<2x32xf32>
    %71 = vector.extract_strided_slice %69 {offsets = [0, 32], sizes = [2, 32], strides = [1, 1]} : vector<2x128xf32> to vector<2x32xf32>
    %72 = vector.extract_strided_slice %69 {offsets = [0, 64], sizes = [2, 32], strides = [1, 1]} : vector<2x128xf32> to vector<2x32xf32>
    %73 = vector.extract_strided_slice %69 {offsets = [0, 96], sizes = [2, 32], strides = [1, 1]} : vector<2x128xf32> to vector<2x32xf32>
    %74 = arith.mulf %71, %25 : vector<2x32xf32>
    %75 = arith.mulf %70, %72 : vector<2x32xf32>
    %76 = arith.addf %74, %75 : vector<2x32xf32>
    %77 = math.tanh %76 : vector<2x32xf32>
    %78 = arith.mulf %73, %77 : vector<2x32xf32>
    %c0_32 = arith.constant 0 : index
    %c0_33 = arith.constant 0 : index
    %c0_34 = arith.constant 0 : index
    %79 = vector.load %arg8[%c0_32, %c0_33, %c0_34] : memref<16x2x32xf32, #tpu.memory_space<vmem>>, vector<1x2x32xf32>
    %80 = vector.shape_cast %79 : vector<1x2x32xf32> to vector<2x32xf32>
    %81 = vector.shape_cast %78 : vector<2x32xf32> to vector<1x2x32xf32>
    tpu.vector_store %arg8[%c0_32, %c0_33, %c0_34], %81 {strides = array<i32>} : memref<16x2x32xf32, #tpu.memory_space<vmem>>, vector<1x2x32xf32>,
    %c1_35 = arith.constant 1 : index
    %c0_36 = arith.constant 0 : index
    %c0_37 = arith.constant 0 : index
    %82 = vector.load %arg1[%c1_35, %c0_36, %c0_37] : memref<16x2x128xf32, #tpu.memory_space<vmem>>, vector<1x2x128xf32>
    %83 = vector.shape_cast %82 : vector<1x2x128xf32> to vector<2x128xf32>
    %c0_38 = arith.constant 0 : index
    %c0_39 = arith.constant 0 : index
    %84 = vector.load %arg4[%c0_38, %c0_39] : memref<32x128xf32, #tpu.memory_space<vmem>>, vector<32x128xf32>
    %cst_40 = arith.constant dense<0.000000e+00> : vector<2x128xf32>
    %85 = tpu.matmul %50, %84, %cst_40 {dimension_numbers = #tpu.dot_dimension_numbers<[1], [0], [0], [1], [0, 0, 1, 1], [], []>} : vector<2x32xf32>, vector<32x128xf32>, vector<2x128xf32> -> vector<2x128xf32>
    %86 = arith.addf %83, %85 : vector<2x128xf32>
    %87 = vector.broadcast %11 : vector<1x128xf32> to vector<2x128xf32>
    %88 = arith.mulf %86, %87 : vector<2x128xf32>
    %89 = arith.negf %88 : vector<2x128xf32>
    %90 = math.exp %89 : vector<2x128xf32>
    %cst_41 = arith.constant 1.000000e+00 : f32
    %91 = vector.broadcast %cst_41 : f32 to vector<2x128xf32>
    %92 = arith.addf %91, %90 : vector<2x128xf32>
    %93 = arith.divf %91, %92 : vector<2x128xf32>
    %94 = vector.broadcast %14 : vector<1x128xf32> to vector<2x128xf32>
    %95 = arith.mulf %93, %94 : vector<2x128xf32>
    %96 = vector.broadcast %17 : vector<1x128xf32> to vector<2x128xf32>
    %97 = arith.addf %95, %96 : vector<2x128xf32>
    %98 = vector.extract_strided_slice %97 {offsets = [0, 0], sizes = [2, 32], strides = [1, 1]} : vector<2x128xf32> to vector<2x32xf32>
    %99 = vector.extract_strided_slice %97 {offsets = [0, 32], sizes = [2, 32], strides = [1, 1]} : vector<2x128xf32> to vector<2x32xf32>
    %100 = vector.extract_strided_slice %97 {offsets = [0, 64], sizes = [2, 32], strides = [1, 1]} : vector<2x128xf32> to vector<2x32xf32>
    %101 = vector.extract_strided_slice %97 {offsets = [0, 96], sizes = [2, 32], strides = [1, 1]} : vector<2x128xf32> to vector<2x32xf32>
    %102 = arith.mulf %99, %48 : vector<2x32xf32>
    %103 = arith.mulf %98, %100 : vector<2x32xf32>
    %104 = arith.addf %102, %103 : vector<2x32xf32>
    %105 = math.tanh %104 : vector<2x32xf32>
    %106 = arith.mulf %101, %105 : vector<2x32xf32>
    %c0_42 = arith.constant 0 : index
    %c0_43 = arith.constant 0 : index
    %107 = vector.load %arg5[%c0_42, %c0_43] : memref<32x128xf32, #tpu.memory_space<vmem>>, vector<32x128xf32>
    %cst_44 = arith.constant dense<0.000000e+00> : vector<2x128xf32>
    %108 = tpu.matmul %106, %107, %cst_44 {dimension_numbers = #tpu.dot_dimension_numbers<[1], [0], [0], [1], [0, 0, 1, 1], [], []>} : vector<2x32xf32>, vector<32x128xf32>, vector<2x128xf32> -> vector<2x128xf32>
    %c0_45 = arith.constant 0 : index
    %c0_46 = arith.constant 0 : index
    %109 = vector.load %arg6[%c0_45, %c0_46] : memref<32x128xf32, #tpu.memory_space<vmem>>, vector<32x128xf32>
    %cst_47 = arith.constant dense<0.000000e+00> : vector<2x128xf32>
    %110 = tpu.matmul %78, %109, %cst_47 {dimension_numbers = #tpu.dot_dimension_numbers<[1], [0], [0], [1], [0, 0, 1, 1], [], []>} : vector<2x32xf32>, vector<32x128xf32>, vector<2x128xf32> -> vector<2x128xf32>
    %111 = arith.addf %108, %110 : vector<2x128xf32>
    %c0_48 = arith.constant 0 : index
    %c0_49 = arith.constant 0 : index
    %112 = vector.load %arg7[%c0_48, %c0_49] : memref<1x128xf32, #tpu.memory_space<vmem>>, vector<1x128xf32>
    %113 = vector.broadcast %112 : vector<1x128xf32> to vector<2x128xf32>
    %114 = arith.addf %111, %113 : vector<2x128xf32>
    %115 = vector.broadcast %11 : vector<1x128xf32> to vector<2x128xf32>
    %116 = arith.mulf %114, %115 : vector<2x128xf32>
    %117 = arith.negf %116 : vector<2x128xf32>
    %118 = math.exp %117 : vector<2x128xf32>
    %cst_50 = arith.constant 1.000000e+00 : f32
    %119 = vector.broadcast %cst_50 : f32 to vector<2x128xf32>
    %120 = arith.addf %119, %118 : vector<2x128xf32>
    %121 = arith.divf %119, %120 : vector<2x128xf32>
    %122 = vector.broadcast %14 : vector<1x128xf32> to vector<2x128xf32>
    %123 = arith.mulf %121, %122 : vector<2x128xf32>
    %124 = vector.broadcast %17 : vector<1x128xf32> to vector<2x128xf32>
    %125 = arith.addf %123, %124 : vector<2x128xf32>
    %126 = vector.extract_strided_slice %125 {offsets = [0, 0], sizes = [2, 32], strides = [1, 1]} : vector<2x128xf32> to vector<2x32xf32>
    %127 = vector.extract_strided_slice %125 {offsets = [0, 32], sizes = [2, 32], strides = [1, 1]} : vector<2x128xf32> to vector<2x32xf32>
    %128 = vector.extract_strided_slice %125 {offsets = [0, 64], sizes = [2, 32], strides = [1, 1]} : vector<2x128xf32> to vector<2x32xf32>
    %129 = vector.extract_strided_slice %125 {offsets = [0, 96], sizes = [2, 32], strides = [1, 1]} : vector<2x128xf32> to vector<2x32xf32>
    %130 = arith.mulf %127, %76 : vector<2x32xf32>
    %131 = arith.mulf %126, %128 : vector<2x32xf32>
    %132 = arith.addf %130, %131 : vector<2x32xf32>
    %133 = math.tanh %132 : vector<2x32xf32>
    %134 = arith.mulf %129, %133 : vector<2x32xf32>
    %c1_51 = arith.constant 1 : index
    %c0_52 = arith.constant 0 : index
    %c0_53 = arith.constant 0 : index
    %135 = vector.load %arg8[%c1_51, %c0_52, %c0_53] : memref<16x2x32xf32, #tpu.memory_space<vmem>>, vector<1x2x32xf32>
    %136 = vector.shape_cast %135 : vector<1x2x32xf32> to vector<2x32xf32>
    %137 = vector.shape_cast %134 : vector<2x32xf32> to vector<1x2x32xf32>
    tpu.vector_store %arg8[%c1_51, %c0_52, %c0_53], %137 {strides = array<i32>} : memref<16x2x32xf32, #tpu.memory_space<vmem>>, vector<1x2x32xf32>,
    %c2 = arith.constant 2 : index
    %c0_54 = arith.constant 0 : index
    %c0_55 = arith.constant 0 : index
    %138 = vector.load %arg1[%c2, %c0_54, %c0_55] : memref<16x2x128xf32, #tpu.memory_space<vmem>>, vector<1x2x128xf32>
    %139 = vector.shape_cast %138 : vector<1x2x128xf32> to vector<2x128xf32>
    %c0_56 = arith.constant 0 : index
    %c0_57 = arith.constant 0 : index
    %140 = vector.load %arg4[%c0_56, %c0_57] : memref<32x128xf32, #tpu.memory_space<vmem>>, vector<32x128xf32>
    %cst_58 = arith.constant dense<0.000000e+00> : vector<2x128xf32>
    %141 = tpu.matmul %106, %140, %cst_58 {dimension_numbers = #tpu.dot_dimension_numbers<[1], [0], [0], [1], [0, 0, 1, 1], [], []>} : vector<2x32xf32>, vector<32x128xf32>, vector<2x128xf32> -> vector<2x128xf32>
    %142 = arith.addf %139, %141 : vector<2x128xf32>
    %143 = vector.broadcast %11 : vector<1x128xf32> to vector<2x128xf32>
    %144 = arith.mulf %142, %143 : vector<2x128xf32>
    %145 = arith.negf %144 : vector<2x128xf32>
    %146 = math.exp %145 : vector<2x128xf32>
    %cst_59 = arith.constant 1.000000e+00 : f32
    %147 = vector.broadcast %cst_59 : f32 to vector<2x128xf32>
    %148 = arith.addf %147, %146 : vector<2x128xf32>
    %149 = arith.divf %147, %148 : vector<2x128xf32>
    %150 = vector.broadcast %14 : vector<1x128xf32> to vector<2x128xf32>
    %151 = arith.mulf %149, %150 : vector<2x128xf32>
    %152 = vector.broadcast %17 : vector<1x128xf32> to vector<2x128xf32>
    %153 = arith.addf %151, %152 : vector<2x128xf32>
    %154 = vector.extract_strided_slice %153 {offsets = [0, 0], sizes = [2, 32], strides = [1, 1]} : vector<2x128xf32> to vector<2x32xf32>
    %155 = vector.extract_strided_slice %153 {offsets = [0, 32], sizes = [2, 32], strides = [1, 1]} : vector<2x128xf32> to vector<2x32xf32>
    %156 = vector.extract_strided_slice %153 {offsets = [0, 64], sizes = [2, 32], strides = [1, 1]} : vector<2x128xf32> to vector<2x32xf32>
    %157 = vector.extract_strided_slice %153 {offsets = [0, 96], sizes = [2, 32], strides = [1, 1]} : vector<2x128xf32> to vector<2x32xf32>
    %158 = arith.mulf %155, %104 : vector<2x32xf32>
    %159 = arith.mulf %154, %156 : vector<2x32xf32>
    %160 = arith.addf %158, %159 : vector<2x32xf32>
    %161 = math.tanh %160 : vector<2x32xf32>
    %162 = arith.mulf %157, %161 : vector<2x32xf32>
    %c0_60 = arith.constant 0 : index
    %c0_61 = arith.constant 0 : index
    %163 = vector.load %arg5[%c0_60, %c0_61] : memref<32x128xf32, #tpu.memory_space<vmem>>, vector<32x128xf32>
    %cst_62 = arith.constant dense<0.000000e+00> : vector<2x128xf32>
    %164 = tpu.matmul %162, %163, %cst_62 {dimension_numbers = #tpu.dot_dimension_numbers<[1], [0], [0], [1], [0, 0, 1, 1], [], []>} : vector<2x32xf32>, vector<32x128xf32>, vector<2x128xf32> -> vector<2x128xf32>
    %c0_63 = arith.constant 0 : index
    %c0_64 = arith.constant 0 : index
    %165 = vector.load %arg6[%c0_63, %c0_64] : memref<32x128xf32, #tpu.memory_space<vmem>>, vector<32x128xf32>
    %cst_65 = arith.constant dense<0.000000e+00> : vector<2x128xf32>
    %166 = tpu.matmul %134, %165, %cst_65 {dimension_numbers = #tpu.dot_dimension_numbers<[1], [0], [0], [1], [0, 0, 1, 1], [], []>} : vector<2x32xf32>, vector<32x128xf32>, vector<2x128xf32> -> vector<2x128xf32>
    %167 = arith.addf %164, %166 : vector<2x128xf32>
    %c0_66 = arith.constant 0 : index
    %c0_67 = arith.constant 0 : index
    %168 = vector.load %arg7[%c0_66, %c0_67] : memref<1x128xf32, #tpu.memory_space<vmem>>, vector<1x128xf32>
    %169 = vector.broadcast %168 : vector<1x128xf32> to vector<2x128xf32>
    %170 = arith.addf %167, %169 : vector<2x128xf32>
    %171 = vector.broadcast %11 : vector<1x128xf32> to vector<2x128xf32>
    %172 = arith.mulf %170, %171 : vector<2x128xf32>
    %173 = arith.negf %172 : vector<2x128xf32>
    %174 = math.exp %173 : vector<2x128xf32>
    %cst_68 = arith.constant 1.000000e+00 : f32
    %175 = vector.broadcast %cst_68 : f32 to vector<2x128xf32>
    %176 = arith.addf %175, %174 : vector<2x128xf32>
    %177 = arith.divf %175, %176 : vector<2x128xf32>
    %178 = vector.broadcast %14 : vector<1x128xf32> to vector<2x128xf32>
    %179 = arith.mulf %177, %178 : vector<2x128xf32>
    %180 = vector.broadcast %17 : vector<1x128xf32> to vector<2x128xf32>
    %181 = arith.addf %179, %180 : vector<2x128xf32>
    %182 = vector.extract_strided_slice %181 {offsets = [0, 0], sizes = [2, 32], strides = [1, 1]} : vector<2x128xf32> to vector<2x32xf32>
    %183 = vector.extract_strided_slice %181 {offsets = [0, 32], sizes = [2, 32], strides = [1, 1]} : vector<2x128xf32> to vector<2x32xf32>
    %184 = vector.extract_strided_slice %181 {offsets = [0, 64], sizes = [2, 32], strides = [1, 1]} : vector<2x128xf32> to vector<2x32xf32>
    %185 = vector.extract_strided_slice %181 {offsets = [0, 96], sizes = [2, 32], strides = [1, 1]} : vector<2x128xf32> to vector<2x32xf32>
    %186 = arith.mulf %183, %132 : vector<2x32xf32>
    %187 = arith.mulf %182, %184 : vector<2x32xf32>
    %188 = arith.addf %186, %187 : vector<2x32xf32>
    %189 = math.tanh %188 : vector<2x32xf32>
    %190 = arith.mulf %185, %189 : vector<2x32xf32>
    %c2_69 = arith.constant 2 : index
    %c0_70 = arith.constant 0 : index
    %c0_71 = arith.constant 0 : index
    %191 = vector.load %arg8[%c2_69, %c0_70, %c0_71] : memref<16x2x32xf32, #tpu.memory_space<vmem>>, vector<1x2x32xf32>
    %192 = vector.shape_cast %191 : vector<1x2x32xf32> to vector<2x32xf32>
    %193 = vector.shape_cast %190 : vector<2x32xf32> to vector<1x2x32xf32>
    tpu.vector_store %arg8[%c2_69, %c0_70, %c0_71], %193 {strides = array<i32>} : memref<16x2x32xf32, #tpu.memory_space<vmem>>, vector<1x2x32xf32>,
    %c3 = arith.constant 3 : index
    %c0_72 = arith.constant 0 : index
    %c0_73 = arith.constant 0 : index
    %194 = vector.load %arg1[%c3, %c0_72, %c0_73] : memref<16x2x128xf32, #tpu.memory_space<vmem>>, vector<1x2x128xf32>
    %195 = vector.shape_cast %194 : vector<1x2x128xf32> to vector<2x128xf32>
    %c0_74 = arith.constant 0 : index
    %c0_75 = arith.constant 0 : index
    %196 = vector.load %arg4[%c0_74, %c0_75] : memref<32x128xf32, #tpu.memory_space<vmem>>, vector<32x128xf32>
    %cst_76 = arith.constant dense<0.000000e+00> : vector<2x128xf32>
    %197 = tpu.matmul %162, %196, %cst_76 {dimension_numbers = #tpu.dot_dimension_numbers<[1], [0], [0], [1], [0, 0, 1, 1], [], []>} : vector<2x32xf32>, vector<32x128xf32>, vector<2x128xf32> -> vector<2x128xf32>
    %198 = arith.addf %195, %197 : vector<2x128xf32>
    %199 = vector.broadcast %11 : vector<1x128xf32> to vector<2x128xf32>
    %200 = arith.mulf %198, %199 : vector<2x128xf32>
    %201 = arith.negf %200 : vector<2x128xf32>
    %202 = math.exp %201 : vector<2x128xf32>
    %cst_77 = arith.constant 1.000000e+00 : f32
    %203 = vector.broadcast %cst_77 : f32 to vector<2x128xf32>
    %204 = arith.addf %203, %202 : vector<2x128xf32>
    %205 = arith.divf %203, %204 : vector<2x128xf32>
    %206 = vector.broadcast %14 : vector<1x128xf32> to vector<2x128xf32>
    %207 = arith.mulf %205, %206 : vector<2x128xf32>
    %208 = vector.broadcast %17 : vector<1x128xf32> to vector<2x128xf32>
    %209 = arith.addf %207, %208 : vector<2x128xf32>
    %210 = vector.extract_strided_slice %209 {offsets = [0, 0], sizes = [2, 32], strides = [1, 1]} : vector<2x128xf32> to vector<2x32xf32>
    %211 = vector.extract_strided_slice %209 {offsets = [0, 32], sizes = [2, 32], strides = [1, 1]} : vector<2x128xf32> to vector<2x32xf32>
    %212 = vector.extract_strided_slice %209 {offsets = [0, 64], sizes = [2, 32], strides = [1, 1]} : vector<2x128xf32> to vector<2x32xf32>
    %213 = vector.extract_strided_slice %209 {offsets = [0, 96], sizes = [2, 32], strides = [1, 1]} : vector<2x128xf32> to vector<2x32xf32>
    %214 = arith.mulf %211, %160 : vector<2x32xf32>
    %215 = arith.mulf %210, %212 : vector<2x32xf32>
    %216 = arith.addf %214, %215 : vector<2x32xf32>
    %217 = math.tanh %216 : vector<2x32xf32>
    %218 = arith.mulf %213, %217 : vector<2x32xf32>
    %c0_78 = arith.constant 0 : index
    %c0_79 = arith.constant 0 : index
    %219 = vector.load %arg5[%c0_78, %c0_79] : memref<32x128xf32, #tpu.memory_space<vmem>>, vector<32x128xf32>
    %cst_80 = arith.constant dense<0.000000e+00> : vector<2x128xf32>
    %220 = tpu.matmul %218, %219, %cst_80 {dimension_numbers = #tpu.dot_dimension_numbers<[1], [0], [0], [1], [0, 0, 1, 1], [], []>} : vector<2x32xf32>, vector<32x128xf32>, vector<2x128xf32> -> vector<2x128xf32>
    %c0_81 = arith.constant 0 : index
    %c0_82 = arith.constant 0 : index
    %221 = vector.load %arg6[%c0_81, %c0_82] : memref<32x128xf32, #tpu.memory_space<vmem>>, vector<32x128xf32>
    %cst_83 = arith.constant dense<0.000000e+00> : vector<2x128xf32>
    %222 = tpu.matmul %190, %221, %cst_83 {dimension_numbers = #tpu.dot_dimension_numbers<[1], [0], [0], [1], [0, 0, 1, 1], [], []>} : vector<2x32xf32>, vector<32x128xf32>, vector<2x128xf32> -> vector<2x128xf32>
    %223 = arith.addf %220, %222 : vector<2x128xf32>
    %c0_84 = arith.constant 0 : index
    %c0_85 = arith.constant 0 : index
    %224 = vector.load %arg7[%c0_84, %c0_85] : memref<1x128xf32, #tpu.memory_space<vmem>>, vector<1x128xf32>
    %225 = vector.broadcast %224 : vector<1x128xf32> to vector<2x128xf32>
    %226 = arith.addf %223, %225 : vector<2x128xf32>
    %227 = vector.broadcast %11 : vector<1x128xf32> to vector<2x128xf32>
    %228 = arith.mulf %226, %227 : vector<2x128xf32>
    %229 = arith.negf %228 : vector<2x128xf32>
    %230 = math.exp %229 : vector<2x128xf32>
    %cst_86 = arith.constant 1.000000e+00 : f32
    %231 = vector.broadcast %cst_86 : f32 to vector<2x128xf32>
    %232 = arith.addf %231, %230 : vector<2x128xf32>
    %233 = arith.divf %231, %232 : vector<2x128xf32>
    %234 = vector.broadcast %14 : vector<1x128xf32> to vector<2x128xf32>
    %235 = arith.mulf %233, %234 : vector<2x128xf32>
    %236 = vector.broadcast %17 : vector<1x128xf32> to vector<2x128xf32>
    %237 = arith.addf %235, %236 : vector<2x128xf32>
    %238 = vector.extract_strided_slice %237 {offsets = [0, 0], sizes = [2, 32], strides = [1, 1]} : vector<2x128xf32> to vector<2x32xf32>
    %239 = vector.extract_strided_slice %237 {offsets = [0, 32], sizes = [2, 32], strides = [1, 1]} : vector<2x128xf32> to vector<2x32xf32>
    %240 = vector.extract_strided_slice %237 {offsets = [0, 64], sizes = [2, 32], strides = [1, 1]} : vector<2x128xf32> to vector<2x32xf32>
    %241 = vector.extract_strided_slice %237 {offsets = [0, 96], sizes = [2, 32], strides = [1, 1]} : vector<2x128xf32> to vector<2x32xf32>
    %242 = arith.mulf %239, %188 : vector<2x32xf32>
    %243 = arith.mulf %238, %240 : vector<2x32xf32>
    %244 = arith.addf %242, %243 : vector<2x32xf32>
    %245 = math.tanh %244 : vector<2x32xf32>
    %246 = arith.mulf %241, %245 : vector<2x32xf32>
    %c3_87 = arith.constant 3 : index
    %c0_88 = arith.constant 0 : index
    %c0_89 = arith.constant 0 : index
    %247 = vector.load %arg8[%c3_87, %c0_88, %c0_89] : memref<16x2x32xf32, #tpu.memory_space<vmem>>, vector<1x2x32xf32>
    %248 = vector.shape_cast %247 : vector<1x2x32xf32> to vector<2x32xf32>
    %249 = vector.shape_cast %246 : vector<2x32xf32> to vector<1x2x32xf32>
    tpu.vector_store %arg8[%c3_87, %c0_88, %c0_89], %249 {strides = array<i32>} : memref<16x2x32xf32, #tpu.memory_space<vmem>>, vector<1x2x32xf32>,
    %c4 = arith.constant 4 : index
    %c0_90 = arith.constant 0 : index
    %c0_91 = arith.constant 0 : index
    %250 = vector.load %arg1[%c4, %c0_90, %c0_91] : memref<16x2x128xf32, #tpu.memory_space<vmem>>, vector<1x2x128xf32>
    %251 = vector.shape_cast %250 : vector<1x2x128xf32> to vector<2x128xf32>
    %c0_92 = arith.constant 0 : index
    %c0_93 = arith.constant 0 : index
    %252 = vector.load %arg4[%c0_92, %c0_93] : memref<32x128xf32, #tpu.memory_space<vmem>>, vector<32x128xf32>
    %cst_94 = arith.constant dense<0.000000e+00> : vector<2x128xf32>
    %253 = tpu.matmul %218, %252, %cst_94 {dimension_numbers = #tpu.dot_dimension_numbers<[1], [0], [0], [1], [0, 0, 1, 1], [], []>} : vector<2x32xf32>, vector<32x128xf32>, vector<2x128xf32> -> vector<2x128xf32>
    %254 = arith.addf %251, %253 : vector<2x128xf32>
    %255 = vector.broadcast %11 : vector<1x128xf32> to vector<2x128xf32>
    %256 = arith.mulf %254, %255 : vector<2x128xf32>
    %257 = arith.negf %256 : vector<2x128xf32>
    %258 = math.exp %257 : vector<2x128xf32>
    %cst_95 = arith.constant 1.000000e+00 : f32
    %259 = vector.broadcast %cst_95 : f32 to vector<2x128xf32>
    %260 = arith.addf %259, %258 : vector<2x128xf32>
    %261 = arith.divf %259, %260 : vector<2x128xf32>
    %262 = vector.broadcast %14 : vector<1x128xf32> to vector<2x128xf32>
    %263 = arith.mulf %261, %262 : vector<2x128xf32>
    %264 = vector.broadcast %17 : vector<1x128xf32> to vector<2x128xf32>
    %265 = arith.addf %263, %264 : vector<2x128xf32>
    %266 = vector.extract_strided_slice %265 {offsets = [0, 0], sizes = [2, 32], strides = [1, 1]} : vector<2x128xf32> to vector<2x32xf32>
    %267 = vector.extract_strided_slice %265 {offsets = [0, 32], sizes = [2, 32], strides = [1, 1]} : vector<2x128xf32> to vector<2x32xf32>
    %268 = vector.extract_strided_slice %265 {offsets = [0, 64], sizes = [2, 32], strides = [1, 1]} : vector<2x128xf32> to vector<2x32xf32>
    %269 = vector.extract_strided_slice %265 {offsets = [0, 96], sizes = [2, 32], strides = [1, 1]} : vector<2x128xf32> to vector<2x32xf32>
    %270 = arith.mulf %267, %216 : vector<2x32xf32>
    %271 = arith.mulf %266, %268 : vector<2x32xf32>
    %272 = arith.addf %270, %271 : vector<2x32xf32>
    %273 = math.tanh %272 : vector<2x32xf32>
    %274 = arith.mulf %269, %273 : vector<2x32xf32>
    %c0_96 = arith.constant 0 : index
    %c0_97 = arith.constant 0 : index
    %275 = vector.load %arg5[%c0_96, %c0_97] : memref<32x128xf32, #tpu.memory_space<vmem>>, vector<32x128xf32>
    %cst_98 = arith.constant dense<0.000000e+00> : vector<2x128xf32>
    %276 = tpu.matmul %274, %275, %cst_98 {dimension_numbers = #tpu.dot_dimension_numbers<[1], [0], [0], [1], [0, 0, 1, 1], [], []>} : vector<2x32xf32>, vector<32x128xf32>, vector<2x128xf32> -> vector<2x128xf32>
    %c0_99 = arith.constant 0 : index
    %c0_100 = arith.constant 0 : index
    %277 = vector.load %arg6[%c0_99, %c0_100] : memref<32x128xf32, #tpu.memory_space<vmem>>, vector<32x128xf32>
    %cst_101 = arith.constant dense<0.000000e+00> : vector<2x128xf32>
    %278 = tpu.matmul %246, %277, %cst_101 {dimension_numbers = #tpu.dot_dimension_numbers<[1], [0], [0], [1], [0, 0, 1, 1], [], []>} : vector<2x32xf32>, vector<32x128xf32>, vector<2x128xf32> -> vector<2x128xf32>
    %279 = arith.addf %276, %278 : vector<2x128xf32>
    %c0_102 = arith.constant 0 : index
    %c0_103 = arith.constant 0 : index
    %280 = vector.load %arg7[%c0_102, %c0_103] : memref<1x128xf32, #tpu.memory_space<vmem>>, vector<1x128xf32>
    %281 = vector.broadcast %280 : vector<1x128xf32> to vector<2x128xf32>
    %282 = arith.addf %279, %281 : vector<2x128xf32>
    %283 = vector.broadcast %11 : vector<1x128xf32> to vector<2x128xf32>
    %284 = arith.mulf %282, %283 : vector<2x128xf32>
    %285 = arith.negf %284 : vector<2x128xf32>
    %286 = math.exp %285 : vector<2x128xf32>
    %cst_104 = arith.constant 1.000000e+00 : f32
    %287 = vector.broadcast %cst_104 : f32 to vector<2x128xf32>
    %288 = arith.addf %287, %286 : vector<2x128xf32>
    %289 = arith.divf %287, %288 : vector<2x128xf32>
    %290 = vector.broadcast %14 : vector<1x128xf32> to vector<2x128xf32>
    %291 = arith.mulf %289, %290 : vector<2x128xf32>
    %292 = vector.broadcast %17 : vector<1x128xf32> to vector<2x128xf32>
    %293 = arith.addf %291, %292 : vector<2x128xf32>
    %294 = vector.extract_strided_slice %293 {offsets = [0, 0], sizes = [2, 32], strides = [1, 1]} : vector<2x128xf32> to vector<2x32xf32>
    %295 = vector.extract_strided_slice %293 {offsets = [0, 32], sizes = [2, 32], strides = [1, 1]} : vector<2x128xf32> to vector<2x32xf32>
    %296 = vector.extract_strided_slice %293 {offsets = [0, 64], sizes = [2, 32], strides = [1, 1]} : vector<2x128xf32> to vector<2x32xf32>
    %297 = vector.extract_strided_slice %293 {offsets = [0, 96], sizes = [2, 32], strides = [1, 1]} : vector<2x128xf32> to vector<2x32xf32>
    %298 = arith.mulf %295, %244 : vector<2x32xf32>
    %299 = arith.mulf %294, %296 : vector<2x32xf32>
    %300 = arith.addf %298, %299 : vector<2x32xf32>
    %301 = math.tanh %300 : vector<2x32xf32>
    %302 = arith.mulf %297, %301 : vector<2x32xf32>
    %c4_105 = arith.constant 4 : index
    %c0_106 = arith.constant 0 : index
    %c0_107 = arith.constant 0 : index
    %303 = vector.load %arg8[%c4_105, %c0_106, %c0_107] : memref<16x2x32xf32, #tpu.memory_space<vmem>>, vector<1x2x32xf32>
    %304 = vector.shape_cast %303 : vector<1x2x32xf32> to vector<2x32xf32>
    %305 = vector.shape_cast %302 : vector<2x32xf32> to vector<1x2x32xf32>
    tpu.vector_store %arg8[%c4_105, %c0_106, %c0_107], %305 {strides = array<i32>} : memref<16x2x32xf32, #tpu.memory_space<vmem>>, vector<1x2x32xf32>,
    %c5 = arith.constant 5 : index
    %c0_108 = arith.constant 0 : index
    %c0_109 = arith.constant 0 : index
    %306 = vector.load %arg1[%c5, %c0_108, %c0_109] : memref<16x2x128xf32, #tpu.memory_space<vmem>>, vector<1x2x128xf32>
    %307 = vector.shape_cast %306 : vector<1x2x128xf32> to vector<2x128xf32>
    %c0_110 = arith.constant 0 : index
    %c0_111 = arith.constant 0 : index
    %308 = vector.load %arg4[%c0_110, %c0_111] : memref<32x128xf32, #tpu.memory_space<vmem>>, vector<32x128xf32>
    %cst_112 = arith.constant dense<0.000000e+00> : vector<2x128xf32>
    %309 = tpu.matmul %274, %308, %cst_112 {dimension_numbers = #tpu.dot_dimension_numbers<[1], [0], [0], [1], [0, 0, 1, 1], [], []>} : vector<2x32xf32>, vector<32x128xf32>, vector<2x128xf32> -> vector<2x128xf32>
    %310 = arith.addf %307, %309 : vector<2x128xf32>
    %311 = vector.broadcast %11 : vector<1x128xf32> to vector<2x128xf32>
    %312 = arith.mulf %310, %311 : vector<2x128xf32>
    %313 = arith.negf %312 : vector<2x128xf32>
    %314 = math.exp %313 : vector<2x128xf32>
    %cst_113 = arith.constant 1.000000e+00 : f32
    %315 = vector.broadcast %cst_113 : f32 to vector<2x128xf32>
    %316 = arith.addf %315, %314 : vector<2x128xf32>
    %317 = arith.divf %315, %316 : vector<2x128xf32>
    %318 = vector.broadcast %14 : vector<1x128xf32> to vector<2x128xf32>
    %319 = arith.mulf %317, %318 : vector<2x128xf32>
    %320 = vector.broadcast %17 : vector<1x128xf32> to vector<2x128xf32>
    %321 = arith.addf %319, %320 : vector<2x128xf32>
    %322 = vector.extract_strided_slice %321 {offsets = [0, 0], sizes = [2, 32], strides = [1, 1]} : vector<2x128xf32> to vector<2x32xf32>
    %323 = vector.extract_strided_slice %321 {offsets = [0, 32], sizes = [2, 32], strides = [1, 1]} : vector<2x128xf32> to vector<2x32xf32>
    %324 = vector.extract_strided_slice %321 {offsets = [0, 64], sizes = [2, 32], strides = [1, 1]} : vector<2x128xf32> to vector<2x32xf32>
    %325 = vector.extract_strided_slice %321 {offsets = [0, 96], sizes = [2, 32], strides = [1, 1]} : vector<2x128xf32> to vector<2x32xf32>
    %326 = arith.mulf %323, %272 : vector<2x32xf32>
    %327 = arith.mulf %322, %324 : vector<2x32xf32>
    %328 = arith.addf %326, %327 : vector<2x32xf32>
    %329 = math.tanh %328 : vector<2x32xf32>
    %330 = arith.mulf %325, %329 : vector<2x32xf32>
    %c0_114 = arith.constant 0 : index
    %c0_115 = arith.constant 0 : index
    %331 = vector.load %arg5[%c0_114, %c0_115] : memref<32x128xf32, #tpu.memory_space<vmem>>, vector<32x128xf32>
    %cst_116 = arith.constant dense<0.000000e+00> : vector<2x128xf32>
    %332 = tpu.matmul %330, %331, %cst_116 {dimension_numbers = #tpu.dot_dimension_numbers<[1], [0], [0], [1], [0, 0, 1, 1], [], []>} : vector<2x32xf32>, vector<32x128xf32>, vector<2x128xf32> -> vector<2x128xf32>
    %c0_117 = arith.constant 0 : index
    %c0_118 = arith.constant 0 : index
    %333 = vector.load %arg6[%c0_117, %c0_118] : memref<32x128xf32, #tpu.memory_space<vmem>>, vector<32x128xf32>
    %cst_119 = arith.constant dense<0.000000e+00> : vector<2x128xf32>
    %334 = tpu.matmul %302, %333, %cst_119 {dimension_numbers = #tpu.dot_dimension_numbers<[1], [0], [0], [1], [0, 0, 1, 1], [], []>} : vector<2x32xf32>, vector<32x128xf32>, vector<2x128xf32> -> vector<2x128xf32>
    %335 = arith.addf %332, %334 : vector<2x128xf32>
    %c0_120 = arith.constant 0 : index
    %c0_121 = arith.constant 0 : index
    %336 = vector.load %arg7[%c0_120, %c0_121] : memref<1x128xf32, #tpu.memory_space<vmem>>, vector<1x128xf32>
    %337 = vector.broadcast %336 : vector<1x128xf32> to vector<2x128xf32>
    %338 = arith.addf %335, %337 : vector<2x128xf32>
    %339 = vector.broadcast %11 : vector<1x128xf32> to vector<2x128xf32>
    %340 = arith.mulf %338, %339 : vector<2x128xf32>
    %341 = arith.negf %340 : vector<2x128xf32>
    %342 = math.exp %341 : vector<2x128xf32>
    %cst_122 = arith.constant 1.000000e+00 : f32
    %343 = vector.broadcast %cst_122 : f32 to vector<2x128xf32>
    %344 = arith.addf %343, %342 : vector<2x128xf32>
    %345 = arith.divf %343, %344 : vector<2x128xf32>
    %346 = vector.broadcast %14 : vector<1x128xf32> to vector<2x128xf32>
    %347 = arith.mulf %345, %346 : vector<2x128xf32>
    %348 = vector.broadcast %17 : vector<1x128xf32> to vector<2x128xf32>
    %349 = arith.addf %347, %348 : vector<2x128xf32>
    %350 = vector.extract_strided_slice %349 {offsets = [0, 0], sizes = [2, 32], strides = [1, 1]} : vector<2x128xf32> to vector<2x32xf32>
    %351 = vector.extract_strided_slice %349 {offsets = [0, 32], sizes = [2, 32], strides = [1, 1]} : vector<2x128xf32> to vector<2x32xf32>
    %352 = vector.extract_strided_slice %349 {offsets = [0, 64], sizes = [2, 32], strides = [1, 1]} : vector<2x128xf32> to vector<2x32xf32>
    %353 = vector.extract_strided_slice %349 {offsets = [0, 96], sizes = [2, 32], strides = [1, 1]} : vector<2x128xf32> to vector<2x32xf32>
    %354 = arith.mulf %351, %300 : vector<2x32xf32>
    %355 = arith.mulf %350, %352 : vector<2x32xf32>
    %356 = arith.addf %354, %355 : vector<2x32xf32>
    %357 = math.tanh %356 : vector<2x32xf32>
    %358 = arith.mulf %353, %357 : vector<2x32xf32>
    %c5_123 = arith.constant 5 : index
    %c0_124 = arith.constant 0 : index
    %c0_125 = arith.constant 0 : index
    %359 = vector.load %arg8[%c5_123, %c0_124, %c0_125] : memref<16x2x32xf32, #tpu.memory_space<vmem>>, vector<1x2x32xf32>
    %360 = vector.shape_cast %359 : vector<1x2x32xf32> to vector<2x32xf32>
    %361 = vector.shape_cast %358 : vector<2x32xf32> to vector<1x2x32xf32>
    tpu.vector_store %arg8[%c5_123, %c0_124, %c0_125], %361 {strides = array<i32>} : memref<16x2x32xf32, #tpu.memory_space<vmem>>, vector<1x2x32xf32>,
    %c6 = arith.constant 6 : index
    %c0_126 = arith.constant 0 : index
    %c0_127 = arith.constant 0 : index
    %362 = vector.load %arg1[%c6, %c0_126, %c0_127] : memref<16x2x128xf32, #tpu.memory_space<vmem>>, vector<1x2x128xf32>
    %363 = vector.shape_cast %362 : vector<1x2x128xf32> to vector<2x128xf32>
    %c0_128 = arith.constant 0 : index
    %c0_129 = arith.constant 0 : index
    %364 = vector.load %arg4[%c0_128, %c0_129] : memref<32x128xf32, #tpu.memory_space<vmem>>, vector<32x128xf32>
    %cst_130 = arith.constant dense<0.000000e+00> : vector<2x128xf32>
    %365 = tpu.matmul %330, %364, %cst_130 {dimension_numbers = #tpu.dot_dimension_numbers<[1], [0], [0], [1], [0, 0, 1, 1], [], []>} : vector<2x32xf32>, vector<32x128xf32>, vector<2x128xf32> -> vector<2x128xf32>
    %366 = arith.addf %363, %365 : vector<2x128xf32>
    %367 = vector.broadcast %11 : vector<1x128xf32> to vector<2x128xf32>
    %368 = arith.mulf %366, %367 : vector<2x128xf32>
    %369 = arith.negf %368 : vector<2x128xf32>
    %370 = math.exp %369 : vector<2x128xf32>
    %cst_131 = arith.constant 1.000000e+00 : f32
    %371 = vector.broadcast %cst_131 : f32 to vector<2x128xf32>
    %372 = arith.addf %371, %370 : vector<2x128xf32>
    %373 = arith.divf %371, %372 : vector<2x128xf32>
    %374 = vector.broadcast %14 : vector<1x128xf32> to vector<2x128xf32>
    %375 = arith.mulf %373, %374 : vector<2x128xf32>
    %376 = vector.broadcast %17 : vector<1x128xf32> to vector<2x128xf32>
    %377 = arith.addf %375, %376 : vector<2x128xf32>
    %378 = vector.extract_strided_slice %377 {offsets = [0, 0], sizes = [2, 32], strides = [1, 1]} : vector<2x128xf32> to vector<2x32xf32>
    %379 = vector.extract_strided_slice %377 {offsets = [0, 32], sizes = [2, 32], strides = [1, 1]} : vector<2x128xf32> to vector<2x32xf32>
    %380 = vector.extract_strided_slice %377 {offsets = [0, 64], sizes = [2, 32], strides = [1, 1]} : vector<2x128xf32> to vector<2x32xf32>
    %381 = vector.extract_strided_slice %377 {offsets = [0, 96], sizes = [2, 32], strides = [1, 1]} : vector<2x128xf32> to vector<2x32xf32>
    %382 = arith.mulf %379, %328 : vector<2x32xf32>
    %383 = arith.mulf %378, %380 : vector<2x32xf32>
    %384 = arith.addf %382, %383 : vector<2x32xf32>
    %385 = math.tanh %384 : vector<2x32xf32>
    %386 = arith.mulf %381, %385 : vector<2x32xf32>
    %c0_132 = arith.constant 0 : index
    %c0_133 = arith.constant 0 : index
    %387 = vector.load %arg5[%c0_132, %c0_133] : memref<32x128xf32, #tpu.memory_space<vmem>>, vector<32x128xf32>
    %cst_134 = arith.constant dense<0.000000e+00> : vector<2x128xf32>
    %388 = tpu.matmul %386, %387, %cst_134 {dimension_numbers = #tpu.dot_dimension_numbers<[1], [0], [0], [1], [0, 0, 1, 1], [], []>} : vector<2x32xf32>, vector<32x128xf32>, vector<2x128xf32> -> vector<2x128xf32>
    %c0_135 = arith.constant 0 : index
    %c0_136 = arith.constant 0 : index
    %389 = vector.load %arg6[%c0_135, %c0_136] : memref<32x128xf32, #tpu.memory_space<vmem>>, vector<32x128xf32>
    %cst_137 = arith.constant dense<0.000000e+00> : vector<2x128xf32>
    %390 = tpu.matmul %358, %389, %cst_137 {dimension_numbers = #tpu.dot_dimension_numbers<[1], [0], [0], [1], [0, 0, 1, 1], [], []>} : vector<2x32xf32>, vector<32x128xf32>, vector<2x128xf32> -> vector<2x128xf32>
    %391 = arith.addf %388, %390 : vector<2x128xf32>
    %c0_138 = arith.constant 0 : index
    %c0_139 = arith.constant 0 : index
    %392 = vector.load %arg7[%c0_138, %c0_139] : memref<1x128xf32, #tpu.memory_space<vmem>>, vector<1x128xf32>
    %393 = vector.broadcast %392 : vector<1x128xf32> to vector<2x128xf32>
    %394 = arith.addf %391, %393 : vector<2x128xf32>
    %395 = vector.broadcast %11 : vector<1x128xf32> to vector<2x128xf32>
    %396 = arith.mulf %394, %395 : vector<2x128xf32>
    %397 = arith.negf %396 : vector<2x128xf32>
    %398 = math.exp %397 : vector<2x128xf32>
    %cst_140 = arith.constant 1.000000e+00 : f32
    %399 = vector.broadcast %cst_140 : f32 to vector<2x128xf32>
    %400 = arith.addf %399, %398 : vector<2x128xf32>
    %401 = arith.divf %399, %400 : vector<2x128xf32>
    %402 = vector.broadcast %14 : vector<1x128xf32> to vector<2x128xf32>
    %403 = arith.mulf %401, %402 : vector<2x128xf32>
    %404 = vector.broadcast %17 : vector<1x128xf32> to vector<2x128xf32>
    %405 = arith.addf %403, %404 : vector<2x128xf32>
    %406 = vector.extract_strided_slice %405 {offsets = [0, 0], sizes = [2, 32], strides = [1, 1]} : vector<2x128xf32> to vector<2x32xf32>
    %407 = vector.extract_strided_slice %405 {offsets = [0, 32], sizes = [2, 32], strides = [1, 1]} : vector<2x128xf32> to vector<2x32xf32>
    %408 = vector.extract_strided_slice %405 {offsets = [0, 64], sizes = [2, 32], strides = [1, 1]} : vector<2x128xf32> to vector<2x32xf32>
    %409 = vector.extract_strided_slice %405 {offsets = [0, 96], sizes = [2, 32], strides = [1, 1]} : vector<2x128xf32> to vector<2x32xf32>
    %410 = arith.mulf %407, %356 : vector<2x32xf32>
    %411 = arith.mulf %406, %408 : vector<2x32xf32>
    %412 = arith.addf %410, %411 : vector<2x32xf32>
    %413 = math.tanh %412 : vector<2x32xf32>
    %414 = arith.mulf %409, %413 : vector<2x32xf32>
    %c6_141 = arith.constant 6 : index
    %c0_142 = arith.constant 0 : index
    %c0_143 = arith.constant 0 : index
    %415 = vector.load %arg8[%c6_141, %c0_142, %c0_143] : memref<16x2x32xf32, #tpu.memory_space<vmem>>, vector<1x2x32xf32>
    %416 = vector.shape_cast %415 : vector<1x2x32xf32> to vector<2x32xf32>
    %417 = vector.shape_cast %414 : vector<2x32xf32> to vector<1x2x32xf32>
    tpu.vector_store %arg8[%c6_141, %c0_142, %c0_143], %417 {strides = array<i32>} : memref<16x2x32xf32, #tpu.memory_space<vmem>>, vector<1x2x32xf32>,
    %c7 = arith.constant 7 : index
    %c0_144 = arith.constant 0 : index
    %c0_145 = arith.constant 0 : index
    %418 = vector.load %arg1[%c7, %c0_144, %c0_145] : memref<16x2x128xf32, #tpu.memory_space<vmem>>, vector<1x2x128xf32>
    %419 = vector.shape_cast %418 : vector<1x2x128xf32> to vector<2x128xf32>
    %c0_146 = arith.constant 0 : index
    %c0_147 = arith.constant 0 : index
    %420 = vector.load %arg4[%c0_146, %c0_147] : memref<32x128xf32, #tpu.memory_space<vmem>>, vector<32x128xf32>
    %cst_148 = arith.constant dense<0.000000e+00> : vector<2x128xf32>
    %421 = tpu.matmul %386, %420, %cst_148 {dimension_numbers = #tpu.dot_dimension_numbers<[1], [0], [0], [1], [0, 0, 1, 1], [], []>} : vector<2x32xf32>, vector<32x128xf32>, vector<2x128xf32> -> vector<2x128xf32>
    %422 = arith.addf %419, %421 : vector<2x128xf32>
    %423 = vector.broadcast %11 : vector<1x128xf32> to vector<2x128xf32>
    %424 = arith.mulf %422, %423 : vector<2x128xf32>
    %425 = arith.negf %424 : vector<2x128xf32>
    %426 = math.exp %425 : vector<2x128xf32>
    %cst_149 = arith.constant 1.000000e+00 : f32
    %427 = vector.broadcast %cst_149 : f32 to vector<2x128xf32>
    %428 = arith.addf %427, %426 : vector<2x128xf32>
    %429 = arith.divf %427, %428 : vector<2x128xf32>
    %430 = vector.broadcast %14 : vector<1x128xf32> to vector<2x128xf32>
    %431 = arith.mulf %429, %430 : vector<2x128xf32>
    %432 = vector.broadcast %17 : vector<1x128xf32> to vector<2x128xf32>
    %433 = arith.addf %431, %432 : vector<2x128xf32>
    %434 = vector.extract_strided_slice %433 {offsets = [0, 0], sizes = [2, 32], strides = [1, 1]} : vector<2x128xf32> to vector<2x32xf32>
    %435 = vector.extract_strided_slice %433 {offsets = [0, 32], sizes = [2, 32], strides = [1, 1]} : vector<2x128xf32> to vector<2x32xf32>
    %436 = vector.extract_strided_slice %433 {offsets = [0, 64], sizes = [2, 32], strides = [1, 1]} : vector<2x128xf32> to vector<2x32xf32>
    %437 = vector.extract_strided_slice %433 {offsets = [0, 96], sizes = [2, 32], strides = [1, 1]} : vector<2x128xf32> to vector<2x32xf32>
    %438 = arith.mulf %435, %384 : vector<2x32xf32>
    %439 = arith.mulf %434, %436 : vector<2x32xf32>
    %440 = arith.addf %438, %439 : vector<2x32xf32>
    %441 = math.tanh %440 : vector<2x32xf32>
    %442 = arith.mulf %437, %441 : vector<2x32xf32>
    %c0_150 = arith.constant 0 : index
    %c0_151 = arith.constant 0 : index
    %443 = vector.load %arg5[%c0_150, %c0_151] : memref<32x128xf32, #tpu.memory_space<vmem>>, vector<32x128xf32>
    %cst_152 = arith.constant dense<0.000000e+00> : vector<2x128xf32>
    %444 = tpu.matmul %442, %443, %cst_152 {dimension_numbers = #tpu.dot_dimension_numbers<[1], [0], [0], [1], [0, 0, 1, 1], [], []>} : vector<2x32xf32>, vector<32x128xf32>, vector<2x128xf32> -> vector<2x128xf32>
    %c0_153 = arith.constant 0 : index
    %c0_154 = arith.constant 0 : index
    %445 = vector.load %arg6[%c0_153, %c0_154] : memref<32x128xf32, #tpu.memory_space<vmem>>, vector<32x128xf32>
    %cst_155 = arith.constant dense<0.000000e+00> : vector<2x128xf32>
    %446 = tpu.matmul %414, %445, %cst_155 {dimension_numbers = #tpu.dot_dimension_numbers<[1], [0], [0], [1], [0, 0, 1, 1], [], []>} : vector<2x32xf32>, vector<32x128xf32>, vector<2x128xf32> -> vector<2x128xf32>
    %447 = arith.addf %444, %446 : vector<2x128xf32>
    %c0_156 = arith.constant 0 : index
    %c0_157 = arith.constant 0 : index
    %448 = vector.load %arg7[%c0_156, %c0_157] : memref<1x128xf32, #tpu.memory_space<vmem>>, vector<1x128xf32>
    %449 = vector.broadcast %448 : vector<1x128xf32> to vector<2x128xf32>
    %450 = arith.addf %447, %449 : vector<2x128xf32>
    %451 = vector.broadcast %11 : vector<1x128xf32> to vector<2x128xf32>
    %452 = arith.mulf %450, %451 : vector<2x128xf32>
    %453 = arith.negf %452 : vector<2x128xf32>
    %454 = math.exp %453 : vector<2x128xf32>
    %cst_158 = arith.constant 1.000000e+00 : f32
    %455 = vector.broadcast %cst_158 : f32 to vector<2x128xf32>
    %456 = arith.addf %455, %454 : vector<2x128xf32>
    %457 = arith.divf %455, %456 : vector<2x128xf32>
    %458 = vector.broadcast %14 : vector<1x128xf32> to vector<2x128xf32>
    %459 = arith.mulf %457, %458 : vector<2x128xf32>
    %460 = vector.broadcast %17 : vector<1x128xf32> to vector<2x128xf32>
    %461 = arith.addf %459, %460 : vector<2x128xf32>
    %462 = vector.extract_strided_slice %461 {offsets = [0, 0], sizes = [2, 32], strides = [1, 1]} : vector<2x128xf32> to vector<2x32xf32>
    %463 = vector.extract_strided_slice %461 {offsets = [0, 32], sizes = [2, 32], strides = [1, 1]} : vector<2x128xf32> to vector<2x32xf32>
    %464 = vector.extract_strided_slice %461 {offsets = [0, 64], sizes = [2, 32], strides = [1, 1]} : vector<2x128xf32> to vector<2x32xf32>
    %465 = vector.extract_strided_slice %461 {offsets = [0, 96], sizes = [2, 32], strides = [1, 1]} : vector<2x128xf32> to vector<2x32xf32>
    %466 = arith.mulf %463, %412 : vector<2x32xf32>
    %467 = arith.mulf %462, %464 : vector<2x32xf32>
    %468 = arith.addf %466, %467 : vector<2x32xf32>
    %469 = math.tanh %468 : vector<2x32xf32>
    %470 = arith.mulf %465, %469 : vector<2x32xf32>
    %c7_159 = arith.constant 7 : index
    %c0_160 = arith.constant 0 : index
    %c0_161 = arith.constant 0 : index
    %471 = vector.load %arg8[%c7_159, %c0_160, %c0_161] : memref<16x2x32xf32, #tpu.memory_space<vmem>>, vector<1x2x32xf32>
    %472 = vector.shape_cast %471 : vector<1x2x32xf32> to vector<2x32xf32>
    %473 = vector.shape_cast %470 : vector<2x32xf32> to vector<1x2x32xf32>
    tpu.vector_store %arg8[%c7_159, %c0_160, %c0_161], %473 {strides = array<i32>} : memref<16x2x32xf32, #tpu.memory_space<vmem>>, vector<1x2x32xf32>,
    %c8 = arith.constant 8 : index
    %c0_162 = arith.constant 0 : index
    %c0_163 = arith.constant 0 : index
    %474 = vector.load %arg1[%c8, %c0_162, %c0_163] : memref<16x2x128xf32, #tpu.memory_space<vmem>>, vector<1x2x128xf32>
    %475 = vector.shape_cast %474 : vector<1x2x128xf32> to vector<2x128xf32>
    %c0_164 = arith.constant 0 : index
    %c0_165 = arith.constant 0 : index
    %476 = vector.load %arg4[%c0_164, %c0_165] : memref<32x128xf32, #tpu.memory_space<vmem>>, vector<32x128xf32>
    %cst_166 = arith.constant dense<0.000000e+00> : vector<2x128xf32>
    %477 = tpu.matmul %442, %476, %cst_166 {dimension_numbers = #tpu.dot_dimension_numbers<[1], [0], [0], [1], [0, 0, 1, 1], [], []>} : vector<2x32xf32>, vector<32x128xf32>, vector<2x128xf32> -> vector<2x128xf32>
    %478 = arith.addf %475, %477 : vector<2x128xf32>
    %479 = vector.broadcast %11 : vector<1x128xf32> to vector<2x128xf32>
    %480 = arith.mulf %478, %479 : vector<2x128xf32>
    %481 = arith.negf %480 : vector<2x128xf32>
    %482 = math.exp %481 : vector<2x128xf32>
    %cst_167 = arith.constant 1.000000e+00 : f32
    %483 = vector.broadcast %cst_167 : f32 to vector<2x128xf32>
    %484 = arith.addf %483, %482 : vector<2x128xf32>
    %485 = arith.divf %483, %484 : vector<2x128xf32>
    %486 = vector.broadcast %14 : vector<1x128xf32> to vector<2x128xf32>
    %487 = arith.mulf %485, %486 : vector<2x128xf32>
    %488 = vector.broadcast %17 : vector<1x128xf32> to vector<2x128xf32>
    %489 = arith.addf %487, %488 : vector<2x128xf32>
    %490 = vector.extract_strided_slice %489 {offsets = [0, 0], sizes = [2, 32], strides = [1, 1]} : vector<2x128xf32> to vector<2x32xf32>
    %491 = vector.extract_strided_slice %489 {offsets = [0, 32], sizes = [2, 32], strides = [1, 1]} : vector<2x128xf32> to vector<2x32xf32>
    %492 = vector.extract_strided_slice %489 {offsets = [0, 64], sizes = [2, 32], strides = [1, 1]} : vector<2x128xf32> to vector<2x32xf32>
    %493 = vector.extract_strided_slice %489 {offsets = [0, 96], sizes = [2, 32], strides = [1, 1]} : vector<2x128xf32> to vector<2x32xf32>
    %494 = arith.mulf %491, %440 : vector<2x32xf32>
    %495 = arith.mulf %490, %492 : vector<2x32xf32>
    %496 = arith.addf %494, %495 : vector<2x32xf32>
    %497 = math.tanh %496 : vector<2x32xf32>
    %498 = arith.mulf %493, %497 : vector<2x32xf32>
    %c0_168 = arith.constant 0 : index
    %c0_169 = arith.constant 0 : index
    %499 = vector.load %arg5[%c0_168, %c0_169] : memref<32x128xf32, #tpu.memory_space<vmem>>, vector<32x128xf32>
    %cst_170 = arith.constant dense<0.000000e+00> : vector<2x128xf32>
    %500 = tpu.matmul %498, %499, %cst_170 {dimension_numbers = #tpu.dot_dimension_numbers<[1], [0], [0], [1], [0, 0, 1, 1], [], []>} : vector<2x32xf32>, vector<32x128xf32>, vector<2x128xf32> -> vector<2x128xf32>
    %c0_171 = arith.constant 0 : index
    %c0_172 = arith.constant 0 : index
    %501 = vector.load %arg6[%c0_171, %c0_172] : memref<32x128xf32, #tpu.memory_space<vmem>>, vector<32x128xf32>
    %cst_173 = arith.constant dense<0.000000e+00> : vector<2x128xf32>
    %502 = tpu.matmul %470, %501, %cst_173 {dimension_numbers = #tpu.dot_dimension_numbers<[1], [0], [0], [1], [0, 0, 1, 1], [], []>} : vector<2x32xf32>, vector<32x128xf32>, vector<2x128xf32> -> vector<2x128xf32>
    %503 = arith.addf %500, %502 : vector<2x128xf32>
    %c0_174 = arith.constant 0 : index
    %c0_175 = arith.constant 0 : index
    %504 = vector.load %arg7[%c0_174, %c0_175] : memref<1x128xf32, #tpu.memory_space<vmem>>, vector<1x128xf32>
    %505 = vector.broadcast %504 : vector<1x128xf32> to vector<2x128xf32>
    %506 = arith.addf %503, %505 : vector<2x128xf32>
    %507 = vector.broadcast %11 : vector<1x128xf32> to vector<2x128xf32>
    %508 = arith.mulf %506, %507 : vector<2x128xf32>
    %509 = arith.negf %508 : vector<2x128xf32>
    %510 = math.exp %509 : vector<2x128xf32>
    %cst_176 = arith.constant 1.000000e+00 : f32
    %511 = vector.broadcast %cst_176 : f32 to vector<2x128xf32>
    %512 = arith.addf %511, %510 : vector<2x128xf32>
    %513 = arith.divf %511, %512 : vector<2x128xf32>
    %514 = vector.broadcast %14 : vector<1x128xf32> to vector<2x128xf32>
    %515 = arith.mulf %513, %514 : vector<2x128xf32>
    %516 = vector.broadcast %17 : vector<1x128xf32> to vector<2x128xf32>
    %517 = arith.addf %515, %516 : vector<2x128xf32>
    %518 = vector.extract_strided_slice %517 {offsets = [0, 0], sizes = [2, 32], strides = [1, 1]} : vector<2x128xf32> to vector<2x32xf32>
    %519 = vector.extract_strided_slice %517 {offsets = [0, 32], sizes = [2, 32], strides = [1, 1]} : vector<2x128xf32> to vector<2x32xf32>
    %520 = vector.extract_strided_slice %517 {offsets = [0, 64], sizes = [2, 32], strides = [1, 1]} : vector<2x128xf32> to vector<2x32xf32>
    %521 = vector.extract_strided_slice %517 {offsets = [0, 96], sizes = [2, 32], strides = [1, 1]} : vector<2x128xf32> to vector<2x32xf32>
    %522 = arith.mulf %519, %468 : vector<2x32xf32>
    %523 = arith.mulf %518, %520 : vector<2x32xf32>
    %524 = arith.addf %522, %523 : vector<2x32xf32>
    %525 = math.tanh %524 : vector<2x32xf32>
    %526 = arith.mulf %521, %525 : vector<2x32xf32>
    %c8_177 = arith.constant 8 : index
    %c0_178 = arith.constant 0 : index
    %c0_179 = arith.constant 0 : index
    %527 = vector.load %arg8[%c8_177, %c0_178, %c0_179] : memref<16x2x32xf32, #tpu.memory_space<vmem>>, vector<1x2x32xf32>
    %528 = vector.shape_cast %527 : vector<1x2x32xf32> to vector<2x32xf32>
    %529 = vector.shape_cast %526 : vector<2x32xf32> to vector<1x2x32xf32>
    tpu.vector_store %arg8[%c8_177, %c0_178, %c0_179], %529 {strides = array<i32>} : memref<16x2x32xf32, #tpu.memory_space<vmem>>, vector<1x2x32xf32>,
    %c9 = arith.constant 9 : index
    %c0_180 = arith.constant 0 : index
    %c0_181 = arith.constant 0 : index
    %530 = vector.load %arg1[%c9, %c0_180, %c0_181] : memref<16x2x128xf32, #tpu.memory_space<vmem>>, vector<1x2x128xf32>
    %531 = vector.shape_cast %530 : vector<1x2x128xf32> to vector<2x128xf32>
    %c0_182 = arith.constant 0 : index
    %c0_183 = arith.constant 0 : index
    %532 = vector.load %arg4[%c0_182, %c0_183] : memref<32x128xf32, #tpu.memory_space<vmem>>, vector<32x128xf32>
    %cst_184 = arith.constant dense<0.000000e+00> : vector<2x128xf32>
    %533 = tpu.matmul %498, %532, %cst_184 {dimension_numbers = #tpu.dot_dimension_numbers<[1], [0], [0], [1], [0, 0, 1, 1], [], []>} : vector<2x32xf32>, vector<32x128xf32>, vector<2x128xf32> -> vector<2x128xf32>
    %534 = arith.addf %531, %533 : vector<2x128xf32>
    %535 = vector.broadcast %11 : vector<1x128xf32> to vector<2x128xf32>
    %536 = arith.mulf %534, %535 : vector<2x128xf32>
    %537 = arith.negf %536 : vector<2x128xf32>
    %538 = math.exp %537 : vector<2x128xf32>
    %cst_185 = arith.constant 1.000000e+00 : f32
    %539 = vector.broadcast %cst_185 : f32 to vector<2x128xf32>
    %540 = arith.addf %539, %538 : vector<2x128xf32>
    %541 = arith.divf %539, %540 : vector<2x128xf32>
    %542 = vector.broadcast %14 : vector<1x128xf32> to vector<2x128xf32>
    %543 = arith.mulf %541, %542 : vector<2x128xf32>
    %544 = vector.broadcast %17 : vector<1x128xf32> to vector<2x128xf32>
    %545 = arith.addf %543, %544 : vector<2x128xf32>
    %546 = vector.extract_strided_slice %545 {offsets = [0, 0], sizes = [2, 32], strides = [1, 1]} : vector<2x128xf32> to vector<2x32xf32>
    %547 = vector.extract_strided_slice %545 {offsets = [0, 32], sizes = [2, 32], strides = [1, 1]} : vector<2x128xf32> to vector<2x32xf32>
    %548 = vector.extract_strided_slice %545 {offsets = [0, 64], sizes = [2, 32], strides = [1, 1]} : vector<2x128xf32> to vector<2x32xf32>
    %549 = vector.extract_strided_slice %545 {offsets = [0, 96], sizes = [2, 32], strides = [1, 1]} : vector<2x128xf32> to vector<2x32xf32>
    %550 = arith.mulf %547, %496 : vector<2x32xf32>
    %551 = arith.mulf %546, %548 : vector<2x32xf32>
    %552 = arith.addf %550, %551 : vector<2x32xf32>
    %553 = math.tanh %552 : vector<2x32xf32>
    %554 = arith.mulf %549, %553 : vector<2x32xf32>
    %c0_186 = arith.constant 0 : index
    %c0_187 = arith.constant 0 : index
    %555 = vector.load %arg5[%c0_186, %c0_187] : memref<32x128xf32, #tpu.memory_space<vmem>>, vector<32x128xf32>
    %cst_188 = arith.constant dense<0.000000e+00> : vector<2x128xf32>
    %556 = tpu.matmul %554, %555, %cst_188 {dimension_numbers = #tpu.dot_dimension_numbers<[1], [0], [0], [1], [0, 0, 1, 1], [], []>} : vector<2x32xf32>, vector<32x128xf32>, vector<2x128xf32> -> vector<2x128xf32>
    %c0_189 = arith.constant 0 : index
    %c0_190 = arith.constant 0 : index
    %557 = vector.load %arg6[%c0_189, %c0_190] : memref<32x128xf32, #tpu.memory_space<vmem>>, vector<32x128xf32>
    %cst_191 = arith.constant dense<0.000000e+00> : vector<2x128xf32>
    %558 = tpu.matmul %526, %557, %cst_191 {dimension_numbers = #tpu.dot_dimension_numbers<[1], [0], [0], [1], [0, 0, 1, 1], [], []>} : vector<2x32xf32>, vector<32x128xf32>, vector<2x128xf32> -> vector<2x128xf32>
    %559 = arith.addf %556, %558 : vector<2x128xf32>
    %c0_192 = arith.constant 0 : index
    %c0_193 = arith.constant 0 : index
    %560 = vector.load %arg7[%c0_192, %c0_193] : memref<1x128xf32, #tpu.memory_space<vmem>>, vector<1x128xf32>
    %561 = vector.broadcast %560 : vector<1x128xf32> to vector<2x128xf32>
    %562 = arith.addf %559, %561 : vector<2x128xf32>
    %563 = vector.broadcast %11 : vector<1x128xf32> to vector<2x128xf32>
    %564 = arith.mulf %562, %563 : vector<2x128xf32>
    %565 = arith.negf %564 : vector<2x128xf32>
    %566 = math.exp %565 : vector<2x128xf32>
    %cst_194 = arith.constant 1.000000e+00 : f32
    %567 = vector.broadcast %cst_194 : f32 to vector<2x128xf32>
    %568 = arith.addf %567, %566 : vector<2x128xf32>
    %569 = arith.divf %567, %568 : vector<2x128xf32>
    %570 = vector.broadcast %14 : vector<1x128xf32> to vector<2x128xf32>
    %571 = arith.mulf %569, %570 : vector<2x128xf32>
    %572 = vector.broadcast %17 : vector<1x128xf32> to vector<2x128xf32>
    %573 = arith.addf %571, %572 : vector<2x128xf32>
    %574 = vector.extract_strided_slice %573 {offsets = [0, 0], sizes = [2, 32], strides = [1, 1]} : vector<2x128xf32> to vector<2x32xf32>
    %575 = vector.extract_strided_slice %573 {offsets = [0, 32], sizes = [2, 32], strides = [1, 1]} : vector<2x128xf32> to vector<2x32xf32>
    %576 = vector.extract_strided_slice %573 {offsets = [0, 64], sizes = [2, 32], strides = [1, 1]} : vector<2x128xf32> to vector<2x32xf32>
    %577 = vector.extract_strided_slice %573 {offsets = [0, 96], sizes = [2, 32], strides = [1, 1]} : vector<2x128xf32> to vector<2x32xf32>
    %578 = arith.mulf %575, %524 : vector<2x32xf32>
    %579 = arith.mulf %574, %576 : vector<2x32xf32>
    %580 = arith.addf %578, %579 : vector<2x32xf32>
    %581 = math.tanh %580 : vector<2x32xf32>
    %582 = arith.mulf %577, %581 : vector<2x32xf32>
    %c9_195 = arith.constant 9 : index
    %c0_196 = arith.constant 0 : index
    %c0_197 = arith.constant 0 : index
    %583 = vector.load %arg8[%c9_195, %c0_196, %c0_197] : memref<16x2x32xf32, #tpu.memory_space<vmem>>, vector<1x2x32xf32>
    %584 = vector.shape_cast %583 : vector<1x2x32xf32> to vector<2x32xf32>
    %585 = vector.shape_cast %582 : vector<2x32xf32> to vector<1x2x32xf32>
    tpu.vector_store %arg8[%c9_195, %c0_196, %c0_197], %585 {strides = array<i32>} : memref<16x2x32xf32, #tpu.memory_space<vmem>>, vector<1x2x32xf32>,
    %c10 = arith.constant 10 : index
    %c0_198 = arith.constant 0 : index
    %c0_199 = arith.constant 0 : index
    %586 = vector.load %arg1[%c10, %c0_198, %c0_199] : memref<16x2x128xf32, #tpu.memory_space<vmem>>, vector<1x2x128xf32>
    %587 = vector.shape_cast %586 : vector<1x2x128xf32> to vector<2x128xf32>
    %c0_200 = arith.constant 0 : index
    %c0_201 = arith.constant 0 : index
    %588 = vector.load %arg4[%c0_200, %c0_201] : memref<32x128xf32, #tpu.memory_space<vmem>>, vector<32x128xf32>
    %cst_202 = arith.constant dense<0.000000e+00> : vector<2x128xf32>
    %589 = tpu.matmul %554, %588, %cst_202 {dimension_numbers = #tpu.dot_dimension_numbers<[1], [0], [0], [1], [0, 0, 1, 1], [], []>} : vector<2x32xf32>, vector<32x128xf32>, vector<2x128xf32> -> vector<2x128xf32>
    %590 = arith.addf %587, %589 : vector<2x128xf32>
    %591 = vector.broadcast %11 : vector<1x128xf32> to vector<2x128xf32>
    %592 = arith.mulf %590, %591 : vector<2x128xf32>
    %593 = arith.negf %592 : vector<2x128xf32>
    %594 = math.exp %593 : vector<2x128xf32>
    %cst_203 = arith.constant 1.000000e+00 : f32
    %595 = vector.broadcast %cst_203 : f32 to vector<2x128xf32>
    %596 = arith.addf %595, %594 : vector<2x128xf32>
    %597 = arith.divf %595, %596 : vector<2x128xf32>
    %598 = vector.broadcast %14 : vector<1x128xf32> to vector<2x128xf32>
    %599 = arith.mulf %597, %598 : vector<2x128xf32>
    %600 = vector.broadcast %17 : vector<1x128xf32> to vector<2x128xf32>
    %601 = arith.addf %599, %600 : vector<2x128xf32>
    %602 = vector.extract_strided_slice %601 {offsets = [0, 0], sizes = [2, 32], strides = [1, 1]} : vector<2x128xf32> to vector<2x32xf32>
    %603 = vector.extract_strided_slice %601 {offsets = [0, 32], sizes = [2, 32], strides = [1, 1]} : vector<2x128xf32> to vector<2x32xf32>
    %604 = vector.extract_strided_slice %601 {offsets = [0, 64], sizes = [2, 32], strides = [1, 1]} : vector<2x128xf32> to vector<2x32xf32>
    %605 = vector.extract_strided_slice %601 {offsets = [0, 96], sizes = [2, 32], strides = [1, 1]} : vector<2x128xf32> to vector<2x32xf32>
    %606 = arith.mulf %603, %552 : vector<2x32xf32>
    %607 = arith.mulf %602, %604 : vector<2x32xf32>
    %608 = arith.addf %606, %607 : vector<2x32xf32>
    %609 = math.tanh %608 : vector<2x32xf32>
    %610 = arith.mulf %605, %609 : vector<2x32xf32>
    %c0_204 = arith.constant 0 : index
    %c0_205 = arith.constant 0 : index
    %611 = vector.load %arg5[%c0_204, %c0_205] : memref<32x128xf32, #tpu.memory_space<vmem>>, vector<32x128xf32>
    %cst_206 = arith.constant dense<0.000000e+00> : vector<2x128xf32>
    %612 = tpu.matmul %610, %611, %cst_206 {dimension_numbers = #tpu.dot_dimension_numbers<[1], [0], [0], [1], [0, 0, 1, 1], [], []>} : vector<2x32xf32>, vector<32x128xf32>, vector<2x128xf32> -> vector<2x128xf32>
    %c0_207 = arith.constant 0 : index
    %c0_208 = arith.constant 0 : index
    %613 = vector.load %arg6[%c0_207, %c0_208] : memref<32x128xf32, #tpu.memory_space<vmem>>, vector<32x128xf32>
    %cst_209 = arith.constant dense<0.000000e+00> : vector<2x128xf32>
    %614 = tpu.matmul %582, %613, %cst_209 {dimension_numbers = #tpu.dot_dimension_numbers<[1], [0], [0], [1], [0, 0, 1, 1], [], []>} : vector<2x32xf32>, vector<32x128xf32>, vector<2x128xf32> -> vector<2x128xf32>
    %615 = arith.addf %612, %614 : vector<2x128xf32>
    %c0_210 = arith.constant 0 : index
    %c0_211 = arith.constant 0 : index
    %616 = vector.load %arg7[%c0_210, %c0_211] : memref<1x128xf32, #tpu.memory_space<vmem>>, vector<1x128xf32>
    %617 = vector.broadcast %616 : vector<1x128xf32> to vector<2x128xf32>
    %618 = arith.addf %615, %617 : vector<2x128xf32>
    %619 = vector.broadcast %11 : vector<1x128xf32> to vector<2x128xf32>
    %620 = arith.mulf %618, %619 : vector<2x128xf32>
    %621 = arith.negf %620 : vector<2x128xf32>
    %622 = math.exp %621 : vector<2x128xf32>
    %cst_212 = arith.constant 1.000000e+00 : f32
    %623 = vector.broadcast %cst_212 : f32 to vector<2x128xf32>
    %624 = arith.addf %623, %622 : vector<2x128xf32>
    %625 = arith.divf %623, %624 : vector<2x128xf32>
    %626 = vector.broadcast %14 : vector<1x128xf32> to vector<2x128xf32>
    %627 = arith.mulf %625, %626 : vector<2x128xf32>
    %628 = vector.broadcast %17 : vector<1x128xf32> to vector<2x128xf32>
    %629 = arith.addf %627, %628 : vector<2x128xf32>
    %630 = vector.extract_strided_slice %629 {offsets = [0, 0], sizes = [2, 32], strides = [1, 1]} : vector<2x128xf32> to vector<2x32xf32>
    %631 = vector.extract_strided_slice %629 {offsets = [0, 32], sizes = [2, 32], strides = [1, 1]} : vector<2x128xf32> to vector<2x32xf32>
    %632 = vector.extract_strided_slice %629 {offsets = [0, 64], sizes = [2, 32], strides = [1, 1]} : vector<2x128xf32> to vector<2x32xf32>
    %633 = vector.extract_strided_slice %629 {offsets = [0, 96], sizes = [2, 32], strides = [1, 1]} : vector<2x128xf32> to vector<2x32xf32>
    %634 = arith.mulf %631, %580 : vector<2x32xf32>
    %635 = arith.mulf %630, %632 : vector<2x32xf32>
    %636 = arith.addf %634, %635 : vector<2x32xf32>
    %637 = math.tanh %636 : vector<2x32xf32>
    %638 = arith.mulf %633, %637 : vector<2x32xf32>
    %c10_213 = arith.constant 10 : index
    %c0_214 = arith.constant 0 : index
    %c0_215 = arith.constant 0 : index
    %639 = vector.load %arg8[%c10_213, %c0_214, %c0_215] : memref<16x2x32xf32, #tpu.memory_space<vmem>>, vector<1x2x32xf32>
    %640 = vector.shape_cast %639 : vector<1x2x32xf32> to vector<2x32xf32>
    %641 = vector.shape_cast %638 : vector<2x32xf32> to vector<1x2x32xf32>
    tpu.vector_store %arg8[%c10_213, %c0_214, %c0_215], %641 {strides = array<i32>} : memref<16x2x32xf32, #tpu.memory_space<vmem>>, vector<1x2x32xf32>,
    %c11 = arith.constant 11 : index
    %c0_216 = arith.constant 0 : index
    %c0_217 = arith.constant 0 : index
    %642 = vector.load %arg1[%c11, %c0_216, %c0_217] : memref<16x2x128xf32, #tpu.memory_space<vmem>>, vector<1x2x128xf32>
    %643 = vector.shape_cast %642 : vector<1x2x128xf32> to vector<2x128xf32>
    %c0_218 = arith.constant 0 : index
    %c0_219 = arith.constant 0 : index
    %644 = vector.load %arg4[%c0_218, %c0_219] : memref<32x128xf32, #tpu.memory_space<vmem>>, vector<32x128xf32>
    %cst_220 = arith.constant dense<0.000000e+00> : vector<2x128xf32>
    %645 = tpu.matmul %610, %644, %cst_220 {dimension_numbers = #tpu.dot_dimension_numbers<[1], [0], [0], [1], [0, 0, 1, 1], [], []>} : vector<2x32xf32>, vector<32x128xf32>, vector<2x128xf32> -> vector<2x128xf32>
    %646 = arith.addf %643, %645 : vector<2x128xf32>
    %647 = vector.broadcast %11 : vector<1x128xf32> to vector<2x128xf32>
    %648 = arith.mulf %646, %647 : vector<2x128xf32>
    %649 = arith.negf %648 : vector<2x128xf32>
    %650 = math.exp %649 : vector<2x128xf32>
    %cst_221 = arith.constant 1.000000e+00 : f32
    %651 = vector.broadcast %cst_221 : f32 to vector<2x128xf32>
    %652 = arith.addf %651, %650 : vector<2x128xf32>
    %653 = arith.divf %651, %652 : vector<2x128xf32>
    %654 = vector.broadcast %14 : vector<1x128xf32> to vector<2x128xf32>
    %655 = arith.mulf %653, %654 : vector<2x128xf32>
    %656 = vector.broadcast %17 : vector<1x128xf32> to vector<2x128xf32>
    %657 = arith.addf %655, %656 : vector<2x128xf32>
    %658 = vector.extract_strided_slice %657 {offsets = [0, 0], sizes = [2, 32], strides = [1, 1]} : vector<2x128xf32> to vector<2x32xf32>
    %659 = vector.extract_strided_slice %657 {offsets = [0, 32], sizes = [2, 32], strides = [1, 1]} : vector<2x128xf32> to vector<2x32xf32>
    %660 = vector.extract_strided_slice %657 {offsets = [0, 64], sizes = [2, 32], strides = [1, 1]} : vector<2x128xf32> to vector<2x32xf32>
    %661 = vector.extract_strided_slice %657 {offsets = [0, 96], sizes = [2, 32], strides = [1, 1]} : vector<2x128xf32> to vector<2x32xf32>
    %662 = arith.mulf %659, %608 : vector<2x32xf32>
    %663 = arith.mulf %658, %660 : vector<2x32xf32>
    %664 = arith.addf %662, %663 : vector<2x32xf32>
    %665 = math.tanh %664 : vector<2x32xf32>
    %666 = arith.mulf %661, %665 : vector<2x32xf32>
    %c0_222 = arith.constant 0 : index
    %c0_223 = arith.constant 0 : index
    %667 = vector.load %arg5[%c0_222, %c0_223] : memref<32x128xf32, #tpu.memory_space<vmem>>, vector<32x128xf32>
    %cst_224 = arith.constant dense<0.000000e+00> : vector<2x128xf32>
    %668 = tpu.matmul %666, %667, %cst_224 {dimension_numbers = #tpu.dot_dimension_numbers<[1], [0], [0], [1], [0, 0, 1, 1], [], []>} : vector<2x32xf32>, vector<32x128xf32>, vector<2x128xf32> -> vector<2x128xf32>
    %c0_225 = arith.constant 0 : index
    %c0_226 = arith.constant 0 : index
    %669 = vector.load %arg6[%c0_225, %c0_226] : memref<32x128xf32, #tpu.memory_space<vmem>>, vector<32x128xf32>
    %cst_227 = arith.constant dense<0.000000e+00> : vector<2x128xf32>
    %670 = tpu.matmul %638, %669, %cst_227 {dimension_numbers = #tpu.dot_dimension_numbers<[1], [0], [0], [1], [0, 0, 1, 1], [], []>} : vector<2x32xf32>, vector<32x128xf32>, vector<2x128xf32> -> vector<2x128xf32>
    %671 = arith.addf %668, %670 : vector<2x128xf32>
    %c0_228 = arith.constant 0 : index
    %c0_229 = arith.constant 0 : index
    %672 = vector.load %arg7[%c0_228, %c0_229] : memref<1x128xf32, #tpu.memory_space<vmem>>, vector<1x128xf32>
    %673 = vector.broadcast %672 : vector<1x128xf32> to vector<2x128xf32>
    %674 = arith.addf %671, %673 : vector<2x128xf32>
    %675 = vector.broadcast %11 : vector<1x128xf32> to vector<2x128xf32>
    %676 = arith.mulf %674, %675 : vector<2x128xf32>
    %677 = arith.negf %676 : vector<2x128xf32>
    %678 = math.exp %677 : vector<2x128xf32>
    %cst_230 = arith.constant 1.000000e+00 : f32
    %679 = vector.broadcast %cst_230 : f32 to vector<2x128xf32>
    %680 = arith.addf %679, %678 : vector<2x128xf32>
    %681 = arith.divf %679, %680 : vector<2x128xf32>
    %682 = vector.broadcast %14 : vector<1x128xf32> to vector<2x128xf32>
    %683 = arith.mulf %681, %682 : vector<2x128xf32>
    %684 = vector.broadcast %17 : vector<1x128xf32> to vector<2x128xf32>
    %685 = arith.addf %683, %684 : vector<2x128xf32>
    %686 = vector.extract_strided_slice %685 {offsets = [0, 0], sizes = [2, 32], strides = [1, 1]} : vector<2x128xf32> to vector<2x32xf32>
    %687 = vector.extract_strided_slice %685 {offsets = [0, 32], sizes = [2, 32], strides = [1, 1]} : vector<2x128xf32> to vector<2x32xf32>
    %688 = vector.extract_strided_slice %685 {offsets = [0, 64], sizes = [2, 32], strides = [1, 1]} : vector<2x128xf32> to vector<2x32xf32>
    %689 = vector.extract_strided_slice %685 {offsets = [0, 96], sizes = [2, 32], strides = [1, 1]} : vector<2x128xf32> to vector<2x32xf32>
    %690 = arith.mulf %687, %636 : vector<2x32xf32>
    %691 = arith.mulf %686, %688 : vector<2x32xf32>
    %692 = arith.addf %690, %691 : vector<2x32xf32>
    %693 = math.tanh %692 : vector<2x32xf32>
    %694 = arith.mulf %689, %693 : vector<2x32xf32>
    %c11_231 = arith.constant 11 : index
    %c0_232 = arith.constant 0 : index
    %c0_233 = arith.constant 0 : index
    %695 = vector.load %arg8[%c11_231, %c0_232, %c0_233] : memref<16x2x32xf32, #tpu.memory_space<vmem>>, vector<1x2x32xf32>
    %696 = vector.shape_cast %695 : vector<1x2x32xf32> to vector<2x32xf32>
    %697 = vector.shape_cast %694 : vector<2x32xf32> to vector<1x2x32xf32>
    tpu.vector_store %arg8[%c11_231, %c0_232, %c0_233], %697 {strides = array<i32>} : memref<16x2x32xf32, #tpu.memory_space<vmem>>, vector<1x2x32xf32>,
    %c12 = arith.constant 12 : index
    %c0_234 = arith.constant 0 : index
    %c0_235 = arith.constant 0 : index
    %698 = vector.load %arg1[%c12, %c0_234, %c0_235] : memref<16x2x128xf32, #tpu.memory_space<vmem>>, vector<1x2x128xf32>
    %699 = vector.shape_cast %698 : vector<1x2x128xf32> to vector<2x128xf32>
    %c0_236 = arith.constant 0 : index
    %c0_237 = arith.constant 0 : index
    %700 = vector.load %arg4[%c0_236, %c0_237] : memref<32x128xf32, #tpu.memory_space<vmem>>, vector<32x128xf32>
    %cst_238 = arith.constant dense<0.000000e+00> : vector<2x128xf32>
    %701 = tpu.matmul %666, %700, %cst_238 {dimension_numbers = #tpu.dot_dimension_numbers<[1], [0], [0], [1], [0, 0, 1, 1], [], []>} : vector<2x32xf32>, vector<32x128xf32>, vector<2x128xf32> -> vector<2x128xf32>
    %702 = arith.addf %699, %701 : vector<2x128xf32>
    %703 = vector.broadcast %11 : vector<1x128xf32> to vector<2x128xf32>
    %704 = arith.mulf %702, %703 : vector<2x128xf32>
    %705 = arith.negf %704 : vector<2x128xf32>
    %706 = math.exp %705 : vector<2x128xf32>
    %cst_239 = arith.constant 1.000000e+00 : f32
    %707 = vector.broadcast %cst_239 : f32 to vector<2x128xf32>
    %708 = arith.addf %707, %706 : vector<2x128xf32>
    %709 = arith.divf %707, %708 : vector<2x128xf32>
    %710 = vector.broadcast %14 : vector<1x128xf32> to vector<2x128xf32>
    %711 = arith.mulf %709, %710 : vector<2x128xf32>
    %712 = vector.broadcast %17 : vector<1x128xf32> to vector<2x128xf32>
    %713 = arith.addf %711, %712 : vector<2x128xf32>
    %714 = vector.extract_strided_slice %713 {offsets = [0, 0], sizes = [2, 32], strides = [1, 1]} : vector<2x128xf32> to vector<2x32xf32>
    %715 = vector.extract_strided_slice %713 {offsets = [0, 32], sizes = [2, 32], strides = [1, 1]} : vector<2x128xf32> to vector<2x32xf32>
    %716 = vector.extract_strided_slice %713 {offsets = [0, 64], sizes = [2, 32], strides = [1, 1]} : vector<2x128xf32> to vector<2x32xf32>
    %717 = vector.extract_strided_slice %713 {offsets = [0, 96], sizes = [2, 32], strides = [1, 1]} : vector<2x128xf32> to vector<2x32xf32>
    %718 = arith.mulf %715, %664 : vector<2x32xf32>
    %719 = arith.mulf %714, %716 : vector<2x32xf32>
    %720 = arith.addf %718, %719 : vector<2x32xf32>
    %721 = math.tanh %720 : vector<2x32xf32>
    %722 = arith.mulf %717, %721 : vector<2x32xf32>
    %c0_240 = arith.constant 0 : index
    %c0_241 = arith.constant 0 : index
    %723 = vector.load %arg5[%c0_240, %c0_241] : memref<32x128xf32, #tpu.memory_space<vmem>>, vector<32x128xf32>
    %cst_242 = arith.constant dense<0.000000e+00> : vector<2x128xf32>
    %724 = tpu.matmul %722, %723, %cst_242 {dimension_numbers = #tpu.dot_dimension_numbers<[1], [0], [0], [1], [0, 0, 1, 1], [], []>} : vector<2x32xf32>, vector<32x128xf32>, vector<2x128xf32> -> vector<2x128xf32>
    %c0_243 = arith.constant 0 : index
    %c0_244 = arith.constant 0 : index
    %725 = vector.load %arg6[%c0_243, %c0_244] : memref<32x128xf32, #tpu.memory_space<vmem>>, vector<32x128xf32>
    %cst_245 = arith.constant dense<0.000000e+00> : vector<2x128xf32>
    %726 = tpu.matmul %694, %725, %cst_245 {dimension_numbers = #tpu.dot_dimension_numbers<[1], [0], [0], [1], [0, 0, 1, 1], [], []>} : vector<2x32xf32>, vector<32x128xf32>, vector<2x128xf32> -> vector<2x128xf32>
    %727 = arith.addf %724, %726 : vector<2x128xf32>
    %c0_246 = arith.constant 0 : index
    %c0_247 = arith.constant 0 : index
    %728 = vector.load %arg7[%c0_246, %c0_247] : memref<1x128xf32, #tpu.memory_space<vmem>>, vector<1x128xf32>
    %729 = vector.broadcast %728 : vector<1x128xf32> to vector<2x128xf32>
    %730 = arith.addf %727, %729 : vector<2x128xf32>
    %731 = vector.broadcast %11 : vector<1x128xf32> to vector<2x128xf32>
    %732 = arith.mulf %730, %731 : vector<2x128xf32>
    %733 = arith.negf %732 : vector<2x128xf32>
    %734 = math.exp %733 : vector<2x128xf32>
    %cst_248 = arith.constant 1.000000e+00 : f32
    %735 = vector.broadcast %cst_248 : f32 to vector<2x128xf32>
    %736 = arith.addf %735, %734 : vector<2x128xf32>
    %737 = arith.divf %735, %736 : vector<2x128xf32>
    %738 = vector.broadcast %14 : vector<1x128xf32> to vector<2x128xf32>
    %739 = arith.mulf %737, %738 : vector<2x128xf32>
    %740 = vector.broadcast %17 : vector<1x128xf32> to vector<2x128xf32>
    %741 = arith.addf %739, %740 : vector<2x128xf32>
    %742 = vector.extract_strided_slice %741 {offsets = [0, 0], sizes = [2, 32], strides = [1, 1]} : vector<2x128xf32> to vector<2x32xf32>
    %743 = vector.extract_strided_slice %741 {offsets = [0, 32], sizes = [2, 32], strides = [1, 1]} : vector<2x128xf32> to vector<2x32xf32>
    %744 = vector.extract_strided_slice %741 {offsets = [0, 64], sizes = [2, 32], strides = [1, 1]} : vector<2x128xf32> to vector<2x32xf32>
    %745 = vector.extract_strided_slice %741 {offsets = [0, 96], sizes = [2, 32], strides = [1, 1]} : vector<2x128xf32> to vector<2x32xf32>
    %746 = arith.mulf %743, %692 : vector<2x32xf32>
    %747 = arith.mulf %742, %744 : vector<2x32xf32>
    %748 = arith.addf %746, %747 : vector<2x32xf32>
    %749 = math.tanh %748 : vector<2x32xf32>
    %750 = arith.mulf %745, %749 : vector<2x32xf32>
    %c12_249 = arith.constant 12 : index
    %c0_250 = arith.constant 0 : index
    %c0_251 = arith.constant 0 : index
    %751 = vector.load %arg8[%c12_249, %c0_250, %c0_251] : memref<16x2x32xf32, #tpu.memory_space<vmem>>, vector<1x2x32xf32>
    %752 = vector.shape_cast %751 : vector<1x2x32xf32> to vector<2x32xf32>
    %753 = vector.shape_cast %750 : vector<2x32xf32> to vector<1x2x32xf32>
    tpu.vector_store %arg8[%c12_249, %c0_250, %c0_251], %753 {strides = array<i32>} : memref<16x2x32xf32, #tpu.memory_space<vmem>>, vector<1x2x32xf32>,
    %c13 = arith.constant 13 : index
    %c0_252 = arith.constant 0 : index
    %c0_253 = arith.constant 0 : index
    %754 = vector.load %arg1[%c13, %c0_252, %c0_253] : memref<16x2x128xf32, #tpu.memory_space<vmem>>, vector<1x2x128xf32>
    %755 = vector.shape_cast %754 : vector<1x2x128xf32> to vector<2x128xf32>
    %c0_254 = arith.constant 0 : index
    %c0_255 = arith.constant 0 : index
    %756 = vector.load %arg4[%c0_254, %c0_255] : memref<32x128xf32, #tpu.memory_space<vmem>>, vector<32x128xf32>
    %cst_256 = arith.constant dense<0.000000e+00> : vector<2x128xf32>
    %757 = tpu.matmul %722, %756, %cst_256 {dimension_numbers = #tpu.dot_dimension_numbers<[1], [0], [0], [1], [0, 0, 1, 1], [], []>} : vector<2x32xf32>, vector<32x128xf32>, vector<2x128xf32> -> vector<2x128xf32>
    %758 = arith.addf %755, %757 : vector<2x128xf32>
    %759 = vector.broadcast %11 : vector<1x128xf32> to vector<2x128xf32>
    %760 = arith.mulf %758, %759 : vector<2x128xf32>
    %761 = arith.negf %760 : vector<2x128xf32>
    %762 = math.exp %761 : vector<2x128xf32>
    %cst_257 = arith.constant 1.000000e+00 : f32
    %763 = vector.broadcast %cst_257 : f32 to vector<2x128xf32>
    %764 = arith.addf %763, %762 : vector<2x128xf32>
    %765 = arith.divf %763, %764 : vector<2x128xf32>
    %766 = vector.broadcast %14 : vector<1x128xf32> to vector<2x128xf32>
    %767 = arith.mulf %765, %766 : vector<2x128xf32>
    %768 = vector.broadcast %17 : vector<1x128xf32> to vector<2x128xf32>
    %769 = arith.addf %767, %768 : vector<2x128xf32>
    %770 = vector.extract_strided_slice %769 {offsets = [0, 0], sizes = [2, 32], strides = [1, 1]} : vector<2x128xf32> to vector<2x32xf32>
    %771 = vector.extract_strided_slice %769 {offsets = [0, 32], sizes = [2, 32], strides = [1, 1]} : vector<2x128xf32> to vector<2x32xf32>
    %772 = vector.extract_strided_slice %769 {offsets = [0, 64], sizes = [2, 32], strides = [1, 1]} : vector<2x128xf32> to vector<2x32xf32>
    %773 = vector.extract_strided_slice %769 {offsets = [0, 96], sizes = [2, 32], strides = [1, 1]} : vector<2x128xf32> to vector<2x32xf32>
    %774 = arith.mulf %771, %720 : vector<2x32xf32>
    %775 = arith.mulf %770, %772 : vector<2x32xf32>
    %776 = arith.addf %774, %775 : vector<2x32xf32>
    %777 = math.tanh %776 : vector<2x32xf32>
    %778 = arith.mulf %773, %777 : vector<2x32xf32>
    %c0_258 = arith.constant 0 : index
    %c0_259 = arith.constant 0 : index
    %779 = vector.load %arg5[%c0_258, %c0_259] : memref<32x128xf32, #tpu.memory_space<vmem>>, vector<32x128xf32>
    %cst_260 = arith.constant dense<0.000000e+00> : vector<2x128xf32>
    %780 = tpu.matmul %778, %779, %cst_260 {dimension_numbers = #tpu.dot_dimension_numbers<[1], [0], [0], [1], [0, 0, 1, 1], [], []>} : vector<2x32xf32>, vector<32x128xf32>, vector<2x128xf32> -> vector<2x128xf32>
    %c0_261 = arith.constant 0 : index
    %c0_262 = arith.constant 0 : index
    %781 = vector.load %arg6[%c0_261, %c0_262] : memref<32x128xf32, #tpu.memory_space<vmem>>, vector<32x128xf32>
    %cst_263 = arith.constant dense<0.000000e+00> : vector<2x128xf32>
    %782 = tpu.matmul %750, %781, %cst_263 {dimension_numbers = #tpu.dot_dimension_numbers<[1], [0], [0], [1], [0, 0, 1, 1], [], []>} : vector<2x32xf32>, vector<32x128xf32>, vector<2x128xf32> -> vector<2x128xf32>
    %783 = arith.addf %780, %782 : vector<2x128xf32>
    %c0_264 = arith.constant 0 : index
    %c0_265 = arith.constant 0 : index
    %784 = vector.load %arg7[%c0_264, %c0_265] : memref<1x128xf32, #tpu.memory_space<vmem>>, vector<1x128xf32>
    %785 = vector.broadcast %784 : vector<1x128xf32> to vector<2x128xf32>
    %786 = arith.addf %783, %785 : vector<2x128xf32>
    %787 = vector.broadcast %11 : vector<1x128xf32> to vector<2x128xf32>
    %788 = arith.mulf %786, %787 : vector<2x128xf32>
    %789 = arith.negf %788 : vector<2x128xf32>
    %790 = math.exp %789 : vector<2x128xf32>
    %cst_266 = arith.constant 1.000000e+00 : f32
    %791 = vector.broadcast %cst_266 : f32 to vector<2x128xf32>
    %792 = arith.addf %791, %790 : vector<2x128xf32>
    %793 = arith.divf %791, %792 : vector<2x128xf32>
    %794 = vector.broadcast %14 : vector<1x128xf32> to vector<2x128xf32>
    %795 = arith.mulf %793, %794 : vector<2x128xf32>
    %796 = vector.broadcast %17 : vector<1x128xf32> to vector<2x128xf32>
    %797 = arith.addf %795, %796 : vector<2x128xf32>
    %798 = vector.extract_strided_slice %797 {offsets = [0, 0], sizes = [2, 32], strides = [1, 1]} : vector<2x128xf32> to vector<2x32xf32>
    %799 = vector.extract_strided_slice %797 {offsets = [0, 32], sizes = [2, 32], strides = [1, 1]} : vector<2x128xf32> to vector<2x32xf32>
    %800 = vector.extract_strided_slice %797 {offsets = [0, 64], sizes = [2, 32], strides = [1, 1]} : vector<2x128xf32> to vector<2x32xf32>
    %801 = vector.extract_strided_slice %797 {offsets = [0, 96], sizes = [2, 32], strides = [1, 1]} : vector<2x128xf32> to vector<2x32xf32>
    %802 = arith.mulf %799, %748 : vector<2x32xf32>
    %803 = arith.mulf %798, %800 : vector<2x32xf32>
    %804 = arith.addf %802, %803 : vector<2x32xf32>
    %805 = math.tanh %804 : vector<2x32xf32>
    %806 = arith.mulf %801, %805 : vector<2x32xf32>
    %c13_267 = arith.constant 13 : index
    %c0_268 = arith.constant 0 : index
    %c0_269 = arith.constant 0 : index
    %807 = vector.load %arg8[%c13_267, %c0_268, %c0_269] : memref<16x2x32xf32, #tpu.memory_space<vmem>>, vector<1x2x32xf32>
    %808 = vector.shape_cast %807 : vector<1x2x32xf32> to vector<2x32xf32>
    %809 = vector.shape_cast %806 : vector<2x32xf32> to vector<1x2x32xf32>
    tpu.vector_store %arg8[%c13_267, %c0_268, %c0_269], %809 {strides = array<i32>} : memref<16x2x32xf32, #tpu.memory_space<vmem>>, vector<1x2x32xf32>,
    %c14 = arith.constant 14 : index
    %c0_270 = arith.constant 0 : index
    %c0_271 = arith.constant 0 : index
    %810 = vector.load %arg1[%c14, %c0_270, %c0_271] : memref<16x2x128xf32, #tpu.memory_space<vmem>>, vector<1x2x128xf32>
    %811 = vector.shape_cast %810 : vector<1x2x128xf32> to vector<2x128xf32>
    %c0_272 = arith.constant 0 : index
    %c0_273 = arith.constant 0 : index
    %812 = vector.load %arg4[%c0_272, %c0_273] : memref<32x128xf32, #tpu.memory_space<vmem>>, vector<32x128xf32>
    %cst_274 = arith.constant dense<0.000000e+00> : vector<2x128xf32>
    %813 = tpu.matmul %778, %812, %cst_274 {dimension_numbers = #tpu.dot_dimension_numbers<[1], [0], [0], [1], [0, 0, 1, 1], [], []>} : vector<2x32xf32>, vector<32x128xf32>, vector<2x128xf32> -> vector<2x128xf32>
    %814 = arith.addf %811, %813 : vector<2x128xf32>
    %815 = vector.broadcast %11 : vector<1x128xf32> to vector<2x128xf32>
    %816 = arith.mulf %814, %815 : vector<2x128xf32>
    %817 = arith.negf %816 : vector<2x128xf32>
    %818 = math.exp %817 : vector<2x128xf32>
    %cst_275 = arith.constant 1.000000e+00 : f32
    %819 = vector.broadcast %cst_275 : f32 to vector<2x128xf32>
    %820 = arith.addf %819, %818 : vector<2x128xf32>
    %821 = arith.divf %819, %820 : vector<2x128xf32>
    %822 = vector.broadcast %14 : vector<1x128xf32> to vector<2x128xf32>
    %823 = arith.mulf %821, %822 : vector<2x128xf32>
    %824 = vector.broadcast %17 : vector<1x128xf32> to vector<2x128xf32>
    %825 = arith.addf %823, %824 : vector<2x128xf32>
    %826 = vector.extract_strided_slice %825 {offsets = [0, 0], sizes = [2, 32], strides = [1, 1]} : vector<2x128xf32> to vector<2x32xf32>
    %827 = vector.extract_strided_slice %825 {offsets = [0, 32], sizes = [2, 32], strides = [1, 1]} : vector<2x128xf32> to vector<2x32xf32>
    %828 = vector.extract_strided_slice %825 {offsets = [0, 64], sizes = [2, 32], strides = [1, 1]} : vector<2x128xf32> to vector<2x32xf32>
    %829 = vector.extract_strided_slice %825 {offsets = [0, 96], sizes = [2, 32], strides = [1, 1]} : vector<2x128xf32> to vector<2x32xf32>
    %830 = arith.mulf %827, %776 : vector<2x32xf32>
    %831 = arith.mulf %826, %828 : vector<2x32xf32>
    %832 = arith.addf %830, %831 : vector<2x32xf32>
    %833 = math.tanh %832 : vector<2x32xf32>
    %834 = arith.mulf %829, %833 : vector<2x32xf32>
    %c0_276 = arith.constant 0 : index
    %c0_277 = arith.constant 0 : index
    %835 = vector.load %arg5[%c0_276, %c0_277] : memref<32x128xf32, #tpu.memory_space<vmem>>, vector<32x128xf32>
    %cst_278 = arith.constant dense<0.000000e+00> : vector<2x128xf32>
    %836 = tpu.matmul %834, %835, %cst_278 {dimension_numbers = #tpu.dot_dimension_numbers<[1], [0], [0], [1], [0, 0, 1, 1], [], []>} : vector<2x32xf32>, vector<32x128xf32>, vector<2x128xf32> -> vector<2x128xf32>
    %c0_279 = arith.constant 0 : index
    %c0_280 = arith.constant 0 : index
    %837 = vector.load %arg6[%c0_279, %c0_280] : memref<32x128xf32, #tpu.memory_space<vmem>>, vector<32x128xf32>
    %cst_281 = arith.constant dense<0.000000e+00> : vector<2x128xf32>
    %838 = tpu.matmul %806, %837, %cst_281 {dimension_numbers = #tpu.dot_dimension_numbers<[1], [0], [0], [1], [0, 0, 1, 1], [], []>} : vector<2x32xf32>, vector<32x128xf32>, vector<2x128xf32> -> vector<2x128xf32>
    %839 = arith.addf %836, %838 : vector<2x128xf32>
    %c0_282 = arith.constant 0 : index
    %c0_283 = arith.constant 0 : index
    %840 = vector.load %arg7[%c0_282, %c0_283] : memref<1x128xf32, #tpu.memory_space<vmem>>, vector<1x128xf32>
    %841 = vector.broadcast %840 : vector<1x128xf32> to vector<2x128xf32>
    %842 = arith.addf %839, %841 : vector<2x128xf32>
    %843 = vector.broadcast %11 : vector<1x128xf32> to vector<2x128xf32>
    %844 = arith.mulf %842, %843 : vector<2x128xf32>
    %845 = arith.negf %844 : vector<2x128xf32>
    %846 = math.exp %845 : vector<2x128xf32>
    %cst_284 = arith.constant 1.000000e+00 : f32
    %847 = vector.broadcast %cst_284 : f32 to vector<2x128xf32>
    %848 = arith.addf %847, %846 : vector<2x128xf32>
    %849 = arith.divf %847, %848 : vector<2x128xf32>
    %850 = vector.broadcast %14 : vector<1x128xf32> to vector<2x128xf32>
    %851 = arith.mulf %849, %850 : vector<2x128xf32>
    %852 = vector.broadcast %17 : vector<1x128xf32> to vector<2x128xf32>
    %853 = arith.addf %851, %852 : vector<2x128xf32>
    %854 = vector.extract_strided_slice %853 {offsets = [0, 0], sizes = [2, 32], strides = [1, 1]} : vector<2x128xf32> to vector<2x32xf32>
    %855 = vector.extract_strided_slice %853 {offsets = [0, 32], sizes = [2, 32], strides = [1, 1]} : vector<2x128xf32> to vector<2x32xf32>
    %856 = vector.extract_strided_slice %853 {offsets = [0, 64], sizes = [2, 32], strides = [1, 1]} : vector<2x128xf32> to vector<2x32xf32>
    %857 = vector.extract_strided_slice %853 {offsets = [0, 96], sizes = [2, 32], strides = [1, 1]} : vector<2x128xf32> to vector<2x32xf32>
    %858 = arith.mulf %855, %804 : vector<2x32xf32>
    %859 = arith.mulf %854, %856 : vector<2x32xf32>
    %860 = arith.addf %858, %859 : vector<2x32xf32>
    %861 = math.tanh %860 : vector<2x32xf32>
    %862 = arith.mulf %857, %861 : vector<2x32xf32>
    %c14_285 = arith.constant 14 : index
    %c0_286 = arith.constant 0 : index
    %c0_287 = arith.constant 0 : index
    %863 = vector.load %arg8[%c14_285, %c0_286, %c0_287] : memref<16x2x32xf32, #tpu.memory_space<vmem>>, vector<1x2x32xf32>
    %864 = vector.shape_cast %863 : vector<1x2x32xf32> to vector<2x32xf32>
    %865 = vector.shape_cast %862 : vector<2x32xf32> to vector<1x2x32xf32>
    tpu.vector_store %arg8[%c14_285, %c0_286, %c0_287], %865 {strides = array<i32>} : memref<16x2x32xf32, #tpu.memory_space<vmem>>, vector<1x2x32xf32>,
    %c15 = arith.constant 15 : index
    %c0_288 = arith.constant 0 : index
    %c0_289 = arith.constant 0 : index
    %866 = vector.load %arg1[%c15, %c0_288, %c0_289] : memref<16x2x128xf32, #tpu.memory_space<vmem>>, vector<1x2x128xf32>
    %867 = vector.shape_cast %866 : vector<1x2x128xf32> to vector<2x128xf32>
    %c0_290 = arith.constant 0 : index
    %c0_291 = arith.constant 0 : index
    %868 = vector.load %arg4[%c0_290, %c0_291] : memref<32x128xf32, #tpu.memory_space<vmem>>, vector<32x128xf32>
    %cst_292 = arith.constant dense<0.000000e+00> : vector<2x128xf32>
    %869 = tpu.matmul %834, %868, %cst_292 {dimension_numbers = #tpu.dot_dimension_numbers<[1], [0], [0], [1], [0, 0, 1, 1], [], []>} : vector<2x32xf32>, vector<32x128xf32>, vector<2x128xf32> -> vector<2x128xf32>
    %870 = arith.addf %867, %869 : vector<2x128xf32>
    %871 = vector.broadcast %11 : vector<1x128xf32> to vector<2x128xf32>
    %872 = arith.mulf %870, %871 : vector<2x128xf32>
    %873 = arith.negf %872 : vector<2x128xf32>
    %874 = math.exp %873 : vector<2x128xf32>
    %cst_293 = arith.constant 1.000000e+00 : f32
    %875 = vector.broadcast %cst_293 : f32 to vector<2x128xf32>
    %876 = arith.addf %875, %874 : vector<2x128xf32>
    %877 = arith.divf %875, %876 : vector<2x128xf32>
    %878 = vector.broadcast %14 : vector<1x128xf32> to vector<2x128xf32>
    %879 = arith.mulf %877, %878 : vector<2x128xf32>
    %880 = vector.broadcast %17 : vector<1x128xf32> to vector<2x128xf32>
    %881 = arith.addf %879, %880 : vector<2x128xf32>
    %882 = vector.extract_strided_slice %881 {offsets = [0, 0], sizes = [2, 32], strides = [1, 1]} : vector<2x128xf32> to vector<2x32xf32>
    %883 = vector.extract_strided_slice %881 {offsets = [0, 32], sizes = [2, 32], strides = [1, 1]} : vector<2x128xf32> to vector<2x32xf32>
    %884 = vector.extract_strided_slice %881 {offsets = [0, 64], sizes = [2, 32], strides = [1, 1]} : vector<2x128xf32> to vector<2x32xf32>
    %885 = vector.extract_strided_slice %881 {offsets = [0, 96], sizes = [2, 32], strides = [1, 1]} : vector<2x128xf32> to vector<2x32xf32>
    %886 = arith.mulf %883, %832 : vector<2x32xf32>
    %887 = arith.mulf %882, %884 : vector<2x32xf32>
    %888 = arith.addf %886, %887 : vector<2x32xf32>
    %889 = math.tanh %888 : vector<2x32xf32>
    %890 = arith.mulf %885, %889 : vector<2x32xf32>
    %c0_294 = arith.constant 0 : index
    %c0_295 = arith.constant 0 : index
    %891 = vector.load %arg5[%c0_294, %c0_295] : memref<32x128xf32, #tpu.memory_space<vmem>>, vector<32x128xf32>
    %cst_296 = arith.constant dense<0.000000e+00> : vector<2x128xf32>
    %892 = tpu.matmul %890, %891, %cst_296 {dimension_numbers = #tpu.dot_dimension_numbers<[1], [0], [0], [1], [0, 0, 1, 1], [], []>} : vector<2x32xf32>, vector<32x128xf32>, vector<2x128xf32> -> vector<2x128xf32>
    %c0_297 = arith.constant 0 : index
    %c0_298 = arith.constant 0 : index
    %893 = vector.load %arg6[%c0_297, %c0_298] : memref<32x128xf32, #tpu.memory_space<vmem>>, vector<32x128xf32>
    %cst_299 = arith.constant dense<0.000000e+00> : vector<2x128xf32>
    %894 = tpu.matmul %862, %893, %cst_299 {dimension_numbers = #tpu.dot_dimension_numbers<[1], [0], [0], [1], [0, 0, 1, 1], [], []>} : vector<2x32xf32>, vector<32x128xf32>, vector<2x128xf32> -> vector<2x128xf32>
    %895 = arith.addf %892, %894 : vector<2x128xf32>
    %c0_300 = arith.constant 0 : index
    %c0_301 = arith.constant 0 : index
    %896 = vector.load %arg7[%c0_300, %c0_301] : memref<1x128xf32, #tpu.memory_space<vmem>>, vector<1x128xf32>
    %897 = vector.broadcast %896 : vector<1x128xf32> to vector<2x128xf32>
    %898 = arith.addf %895, %897 : vector<2x128xf32>
    %899 = vector.broadcast %11 : vector<1x128xf32> to vector<2x128xf32>
    %900 = arith.mulf %898, %899 : vector<2x128xf32>
    %901 = arith.negf %900 : vector<2x128xf32>
    %902 = math.exp %901 : vector<2x128xf32>
    %cst_302 = arith.constant 1.000000e+00 : f32
    %903 = vector.broadcast %cst_302 : f32 to vector<2x128xf32>
    %904 = arith.addf %903, %902 : vector<2x128xf32>
    %905 = arith.divf %903, %904 : vector<2x128xf32>
    %906 = vector.broadcast %14 : vector<1x128xf32> to vector<2x128xf32>
    %907 = arith.mulf %905, %906 : vector<2x128xf32>
    %908 = vector.broadcast %17 : vector<1x128xf32> to vector<2x128xf32>
    %909 = arith.addf %907, %908 : vector<2x128xf32>
    %910 = vector.extract_strided_slice %909 {offsets = [0, 0], sizes = [2, 32], strides = [1, 1]} : vector<2x128xf32> to vector<2x32xf32>
    %911 = vector.extract_strided_slice %909 {offsets = [0, 32], sizes = [2, 32], strides = [1, 1]} : vector<2x128xf32> to vector<2x32xf32>
    %912 = vector.extract_strided_slice %909 {offsets = [0, 64], sizes = [2, 32], strides = [1, 1]} : vector<2x128xf32> to vector<2x32xf32>
    %913 = vector.extract_strided_slice %909 {offsets = [0, 96], sizes = [2, 32], strides = [1, 1]} : vector<2x128xf32> to vector<2x32xf32>
    %914 = arith.mulf %911, %860 : vector<2x32xf32>
    %915 = arith.mulf %910, %912 : vector<2x32xf32>
    %916 = arith.addf %914, %915 : vector<2x32xf32>
    %917 = math.tanh %916 : vector<2x32xf32>
    %918 = arith.mulf %913, %917 : vector<2x32xf32>
    %c15_303 = arith.constant 15 : index
    %c0_304 = arith.constant 0 : index
    %c0_305 = arith.constant 0 : index
    %919 = vector.load %arg8[%c15_303, %c0_304, %c0_305] : memref<16x2x32xf32, #tpu.memory_space<vmem>>, vector<1x2x32xf32>
    %920 = vector.shape_cast %919 : vector<1x2x32xf32> to vector<2x32xf32>
    %921 = vector.shape_cast %918 : vector<2x32xf32> to vector<1x2x32xf32>
    tpu.vector_store %arg8[%c15_303, %c0_304, %c0_305], %921 {strides = array<i32>} : memref<16x2x32xf32, #tpu.memory_space<vmem>>, vector<1x2x32xf32>,
    %c0_306 = arith.constant 0 : index
    %c0_307 = arith.constant 0 : index
    %c0_308 = arith.constant 0 : index
    %922 = vector.load %arg9[%c0_306, %c0_307, %c0_308] : memref<2x2x32xf32, #tpu.memory_space<vmem>>, vector<1x2x32xf32>
    %923 = vector.shape_cast %922 : vector<1x2x32xf32> to vector<2x32xf32>
    %924 = vector.shape_cast %890 : vector<2x32xf32> to vector<1x2x32xf32>
    tpu.vector_store %arg9[%c0_306, %c0_307, %c0_308], %924 {strides = array<i32>} : memref<2x2x32xf32, #tpu.memory_space<vmem>>, vector<1x2x32xf32>,
    %c0_309 = arith.constant 0 : index
    %c0_310 = arith.constant 0 : index
    %c0_311 = arith.constant 0 : index
    %925 = vector.load %arg10[%c0_309, %c0_310, %c0_311] : memref<2x2x32xf32, #tpu.memory_space<vmem>>, vector<1x2x32xf32>
    %926 = vector.shape_cast %925 : vector<1x2x32xf32> to vector<2x32xf32>
    %927 = vector.shape_cast %888 : vector<2x32xf32> to vector<1x2x32xf32>
    tpu.vector_store %arg10[%c0_309, %c0_310, %c0_311], %927 {strides = array<i32>} : memref<2x2x32xf32, #tpu.memory_space<vmem>>, vector<1x2x32xf32>,
    %c1_312 = arith.constant 1 : index
    %c0_313 = arith.constant 0 : index
    %c0_314 = arith.constant 0 : index
    %928 = vector.load %arg9[%c1_312, %c0_313, %c0_314] : memref<2x2x32xf32, #tpu.memory_space<vmem>>, vector<1x2x32xf32>
    %929 = vector.shape_cast %928 : vector<1x2x32xf32> to vector<2x32xf32>
    %930 = vector.shape_cast %918 : vector<2x32xf32> to vector<1x2x32xf32>
    tpu.vector_store %arg9[%c1_312, %c0_313, %c0_314], %930 {strides = array<i32>} : memref<2x2x32xf32, #tpu.memory_space<vmem>>, vector<1x2x32xf32>,
    %c1_315 = arith.constant 1 : index
    %c0_316 = arith.constant 0 : index
    %c0_317 = arith.constant 0 : index
    %931 = vector.load %arg10[%c1_315, %c0_316, %c0_317] : memref<2x2x32xf32, #tpu.memory_space<vmem>>, vector<1x2x32xf32>
    %932 = vector.shape_cast %931 : vector<1x2x32xf32> to vector<2x32xf32>
    %933 = vector.shape_cast %916 : vector<2x32xf32> to vector<1x2x32xf32>
    tpu.vector_store %arg10[%c1_315, %c0_316, %c0_317], %933 {strides = array<i32>} : memref<2x2x32xf32, #tpu.memory_space<vmem>>, vector<1x2x32xf32>,
    return
  }
  func.func @transform_0(%arg0: i32) -> (i32, i32, i32) {
    %c0_i32 = arith.constant 0 : i32
    %c0_i32_0 = arith.constant 0 : i32
    %c0_i32_1 = arith.constant 0 : i32
    return %arg0, %c0_i32, %c0_i32_0 : i32, i32, i32
  }
  func.func @transform_1(%arg0: i32) -> (i32, i32, i32) {
    %c0_i32 = arith.constant 0 : i32
    %c0_i32_0 = arith.constant 0 : i32
    %c0_i32_1 = arith.constant 0 : i32
    %c0_i32_2 = arith.constant 0 : i32
    return %c0_i32, %c0_i32_0, %c0_i32_1 : i32, i32, i32
  }
  func.func @transform_2(%arg0: i32) -> (i32, i32, i32) {
    %c0_i32 = arith.constant 0 : i32
    %c0_i32_0 = arith.constant 0 : i32
    %c0_i32_1 = arith.constant 0 : i32
    %c0_i32_2 = arith.constant 0 : i32
    return %c0_i32, %c0_i32_0, %c0_i32_1 : i32, i32, i32
  }
  func.func @transform_3(%arg0: i32) -> (i32, i32) {
    %c0_i32 = arith.constant 0 : i32
    %c0_i32_0 = arith.constant 0 : i32
    %c0_i32_1 = arith.constant 0 : i32
    return %c0_i32, %c0_i32_0 : i32, i32
  }
  func.func @transform_4(%arg0: i32) -> (i32, i32) {
    %c0_i32 = arith.constant 0 : i32
    %c0_i32_0 = arith.constant 0 : i32
    %c0_i32_1 = arith.constant 0 : i32
    return %c0_i32, %c0_i32_0 : i32, i32
  }
  func.func @transform_5(%arg0: i32) -> (i32, i32) {
    %c0_i32 = arith.constant 0 : i32
    %c0_i32_0 = arith.constant 0 : i32
    %c0_i32_1 = arith.constant 0 : i32
    return %c0_i32, %c0_i32_0 : i32, i32
  }
  func.func @transform_6(%arg0: i32) -> (i32, i32) {
    %c0_i32 = arith.constant 0 : i32
    %c0_i32_0 = arith.constant 0 : i32
    %c0_i32_1 = arith.constant 0 : i32
    return %c0_i32, %c0_i32_0 : i32, i32
  }
  func.func @transform_7(%arg0: i32) -> (i32, i32, i32) {
    %c0_i32 = arith.constant 0 : i32
    %c0_i32_0 = arith.constant 0 : i32
    %c0_i32_1 = arith.constant 0 : i32
    return %arg0, %c0_i32, %c0_i32_0 : i32, i32, i32
  }
  func.func @transform_8(%arg0: i32) -> (i32, i32, i32) {
    %c0_i32 = arith.constant 0 : i32
    %c0_i32_0 = arith.constant 0 : i32
    %c0_i32_1 = arith.constant 0 : i32
    %c0_i32_2 = arith.constant 0 : i32
    return %c0_i32, %c0_i32_0, %c0_i32_1 : i32, i32, i32
  }
  func.func @transform_9(%arg0: i32) -> (i32, i32, i32) {
    %c0_i32 = arith.constant 0 : i32
    %c0_i32_0 = arith.constant 0 : i32
    %c0_i32_1 = arith.constant 0 : i32
    %c0_i32_2 = arith.constant 0 : i32
    return %c0_i32, %c0_i32_0, %c0_i32_1 : i32, i32, i32
  }
}

</mosaic_0001>

<llo_original>
// kernel: tpu_custom_call.1
$region0: #{tpu_custom_call.1}
  #allocation0 [shape = 'u32[]', space=smem, size = 0x4, offset = 0x4, fixed_abs, tag = 'smem constant byte address 0x4 - core index']
  #allocation1 [shape = 'u32[72,128]{1,0:T(1,128)}', space=vmem, size = 0x9000, scoped, tag = 'internal scratch']
  %s0 = inlined_call_operand.hbm [shape: f32[32,2,128], index: 0, kind: input, shape index: {}]
  %s1 = inlined_call_operand.hbm [shape: f32[2,2,32], index: 1, kind: input, shape index: {}]
  %s2 = inlined_call_operand.hbm [shape: f32[2,2,32], index: 2, kind: input, shape index: {}]
  %s3 = inlined_call_operand.hbm [shape: f32[32,128], index: 3, kind: input, shape index: {}]
  %s4 = inlined_call_operand.hbm [shape: f32[32,128], index: 4, kind: input, shape index: {}]
  %s5 = inlined_call_operand.hbm [shape: f32[32,128], index: 5, kind: input, shape index: {}]
  %s6 = inlined_call_operand.vmem [shape: f32[1,128], index: 6, kind: input, shape index: {}]
  %s7 = inlined_call_operand.hbm [shape: f32[32,2,32], index: 7, kind: output, shape index: {0}]
  %s8 = inlined_call_operand.hbm [shape: f32[2,2,32], index: 8, kind: output, shape index: {1}]
  %s9 = inlined_call_operand.hbm [shape: f32[2,2,32], index: 9, kind: output, shape index: {2}]
  %10 = xla_tuple %s7, %s8, %s9
  %s11 = sld [smem:[#allocation0]]
  $region105: #{tpu_custom_call.1} parent=0
    _
  %s13 = ssub.s32 1, %s11
  %s14 = scalar_select 0, %s13, %s11
  $region1: #{tpu_custom_call.1} parent=0
    #allocation2 [shape = 'u8[32768]{0}', space=vmem, size = 0x8000, scoped, tag = 'input window, operand 0']
    #allocation3 [shape = 's32[2]{0}', space=sflag, size = 0x8, scoped, tag = 'scoped memory for tpu_custom_call.1']
    #allocation4 [shape = 's32[2]{0}', space=sflag, size = 0x8, scoped, tag = 'scoped memory for tpu_custom_call.1']
    #allocation5 [shape = 'u8[2048]{0}', space=vmem, size = 0x800, scoped, tag = 'input window, operand 1, single buffered']
    #allocation6 [shape = 's32[1]{0}', space=sflag, size = 0x4, scoped, tag = 'scoped memory for tpu_custom_call.1']
    #allocation7 [shape = 'u8[2048]{0}', space=vmem, size = 0x800, scoped, tag = 'input window, operand 2, single buffered']
    #allocation8 [shape = 'u8[16384]{0}', space=vmem, size = 0x4000, scoped, tag = 'input window, operand 3, single buffered']
    #allocation9 [shape = 's32[1]{0}', space=sflag, size = 0x4, scoped, tag = 'scoped memory for tpu_custom_call.1']
    #allocation10 [shape = 'u8[16384]{0}', space=vmem, size = 0x4000, scoped, tag = 'input window, operand 4, single buffered']
    #allocation11 [shape = 'u8[16384]{0}', space=vmem, size = 0x4000, scoped, tag = 'input window, operand 5, single buffered']
    #allocation12 [shape = 's32[1]{0}', space=sflag, size = 0x4, scoped, tag = 'scoped memory for tpu_custom_call.1']
    #allocation13 [shape = 'u8[32768]{0}', space=vmem, size = 0x8000, scoped, tag = 'output window, operand 0']
    #allocation14 [shape = 'u8[2048]{0}', space=vmem, size = 0x800, scoped, tag = 'output window, operand 1, single buffered']
    #allocation15 [shape = 's32[1]{0}', space=sflag, size = 0x4, scoped, tag = 'scoped memory for tpu_custom_call.1']
    #allocation16 [shape = 'u8[2048]{0}', space=vmem, size = 0x800, scoped, tag = 'output window, operand 2, single buffered']
    %15 = vsyncpa [#allocation3], 0
    %s16 = scalar_lea.sflag [#allocation3], 1
    %17 = vsyncpa %s16, 0
    %18 = vsyncpa [#allocation6], 0
    %19 = vsyncpa [#allocation9], 0
    %20 = vsyncpa [#allocation12], 0
    %21 = vsyncpa [#allocation4], 0
    %s22 = scalar_lea.sflag [#allocation4], 1
    %23 = vsyncpa %s22, 0
    %24 = vsyncpa [#allocation15], 0
    loop: start=0, step=1, limit=4
    $region2: #{tpu_custom_call.1} parent=1 // loop_pre_header
      _
    $region3: #{tpu_custom_call.1} parent=1 // loop_header
      %s26 = sphi 0, %s30
      %p27 = scmp.ge.s32.totalorder %s26, 4
      %s36 = sphi 0, %s38
      %s39 = sphi 0, %s36
      %s40 = sphi 0, %s39
      %s56 = sphi 0, %s40
      %s60 = sphi 0, %s60
      %s62 = sphi 0, %s60
      %s63 = sphi 0, %s62
      %s77 = sphi 0, %s63
      %s81 = sphi 0, %s81
      %s83 = sphi 0, %s81
      %s84 = sphi 0, %s83
      %s98 = sphi 0, %s84
      %s102 = sphi 0, %s102
      %s104 = sphi 0, %s102
      %s105 = sphi 0, %s104
      %s119 = sphi 0, %s105
      %s123 = sphi 0, %s123
      %s125 = sphi 0, %s123
      %s126 = sphi 0, %s125
      %s140 = sphi 0, %s126
      %s144 = sphi 0, %s144
      %s146 = sphi 0, %s144
      %s147 = sphi 0, %s146
      %s161 = sphi 0, %s147
      %s165 = sphi 0, %s165
      %s167 = sphi 0, %s165
      %s168 = sphi 0, %s167
      %s182 = sphi 0, %s168
      %s188 = sphi 0, %s190
      %s191 = sphi 0, %s188
      %s192 = sphi 0, %s191
      %s208 = sphi 0, %s192
      %s212 = sphi 0, %s212
      %s214 = sphi 0, %s212
      %s215 = sphi 0, %s214
      %s229 = sphi 0, %s215
      %s233 = sphi 0, %s233
      %s235 = sphi 0, %s233
      %s236 = sphi 0, %s235
      %s250 = sphi 0, %s236
    $region4: #{tpu_custom_call.1} parent=1 // loop_header_branch
      %29 = sbr.rel (%p27) target = $region8
    $region5: #{tpu_custom_call.1} parent=1 // loop_body
      %s31 = ssub.s32 %s26, 1
      %s32 = ssub.s32 %s26, 2
      %s33 = sadd.s32 %s26, 1
      %s34 = ssub.s32 %s26, %s33
      %p35 = scmp.eq.s32.totalorder %s34, 0
      %s37 = sadd.s32 %s36, 1
      %s38 = scalar_select %p35, %s36, %s37
      %p41 = pneg %p35
      %p42 = scmp.eq.s32.totalorder %s26, 1
      %p43 = por %p41, %p42
      %p44 = scmp.ne.s32.totalorder %s36, %s39
      %p45 = scmp.eq.s32.totalorder %s26, 0
      %p46 = por %p44, %p45
      %p47 = scmp.ne.s32.totalorder %s36, %s39
      %p48 = scmp.eq.s32.totalorder %s31, 1
      %p49 = por %p47, %p48
      %p50 = scmp.ne.s32.totalorder %s39, %s40
      %p51 = scmp.eq.s32.totalorder %s31, 0
      %p52 = por %p50, %p51
      %p53 = scmp.ne.s32.totalorder %s39, %s40
      %p54 = scmp.eq.s32.totalorder %s32, 1
      %p55 = por %p53, %p54
      %p57 = scmp.ne.s32.totalorder %s40, %s56
      %p58 = scmp.eq.s32.totalorder %s32, 0
      %p59 = por %p57, %p58
      %s61 = sadd.s32 %s60, 1
      %p64 = scmp.eq.s32.totalorder %s26, 1
      %p65 = scmp.ne.s32.totalorder %s60, %s62
      %p66 = scmp.eq.s32.totalorder %s26, 0
      %p67 = por %p65, %p66
      %p68 = scmp.ne.s32.totalorder %s60, %s62
      %p69 = scmp.eq.s32.totalorder %s31, 1
      %p70 = por %p68, %p69
      %p71 = scmp.ne.s32.totalorder %s62, %s63
      %p72 = scmp.eq.s32.totalorder %s31, 0
      %p73 = por %p71, %p72
      %p74 = scmp.ne.s32.totalorder %s62, %s63
      %p75 = scmp.eq.s32.totalorder %s32, 1
      %p76 = por %p74, %p75
      %p78 = scmp.ne.s32.totalorder %s63, %s77
      %p79 = scmp.eq.s32.totalorder %s32, 0
      %p80 = por %p78, %p79
      %s82 = sadd.s32 %s81, 1
      %p85 = scmp.eq.s32.totalorder %s26, 1
      %p86 = scmp.ne.s32.totalorder %s81, %s83
      %p87 = scmp.eq.s32.totalorder %s26, 0
      %p88 = por %p86, %p87
      %p89 = scmp.ne.s32.totalorder %s81, %s83
      %p90 = scmp.eq.s32.totalorder %s31, 1
      %p91 = por %p89, %p90
      %p92 = scmp.ne.s32.totalorder %s83, %s84
      %p93 = scmp.eq.s32.totalorder %s31, 0
      %p94 = por %p92, %p93
      %p95 = scmp.ne.s32.totalorder %s83, %s84
      %p96 = scmp.eq.s32.totalorder %s32, 1
      %p97 = por %p95, %p96
      %p99 = scmp.ne.s32.totalorder %s84, %s98
      %p100 = scmp.eq.s32.totalorder %s32, 0
      %p101 = por %p99, %p100
      %s103 = sadd.s32 %s102, 1
      %p106 = scmp.eq.s32.totalorder %s26, 1
      %p107 = scmp.ne.s32.totalorder %s102, %s104
      %p108 = scmp.eq.s32.totalorder %s26, 0
      %p109 = por %p107, %p108
      %p110 = scmp.ne.s32.totalorder %s102, %s104
      %p111 = scmp.eq.s32.totalorder %s31, 1
      %p112 = por %p110, %p111
      %p113 = scmp.ne.s32.totalorder %s104, %s105
      %p114 = scmp.eq.s32.totalorder %s31, 0
      %p115 = por %p113, %p114
      %p116 = scmp.ne.s32.totalorder %s104, %s105
      %p117 = scmp.eq.s32.totalorder %s32, 1
      %p118 = por %p116, %p117
      %p120 = scmp.ne.s32.totalorder %s105, %s119
      %p121 = scmp.eq.s32.totalorder %s32, 0
      %p122 = por %p120, %p121
      %s124 = sadd.s32 %s123, 1
      %p127 = scmp.eq.s32.totalorder %s26, 1
      %p128 = scmp.ne.s32.totalorder %s123, %s125
      %p129 = scmp.eq.s32.totalorder %s26, 0
      %p130 = por %p128, %p129
      %p131 = scmp.ne.s32.totalorder %s123, %s125
      %p132 = scmp.eq.s32.totalorder %s31, 1
      %p133 = por %p131, %p132
      %p134 = scmp.ne.s32.totalorder %s125, %s126
      %p135 = scmp.eq.s32.totalorder %s31, 0
      %p136 = por %p134, %p135
      %p137 = scmp.ne.s32.totalorder %s125, %s126
      %p138 = scmp.eq.s32.totalorder %s32, 1
      %p139 = por %p137, %p138
      %p141 = scmp.ne.s32.totalorder %s126, %s140
      %p142 = scmp.eq.s32.totalorder %s32, 0
      %p143 = por %p141, %p142
      %s145 = sadd.s32 %s144, 1
      %p148 = scmp.eq.s32.totalorder %s26, 1
      %p149 = scmp.ne.s32.totalorder %s144, %s146
      %p150 = scmp.eq.s32.totalorder %s26, 0
      %p151 = por %p149, %p150
      %p152 = scmp.ne.s32.totalorder %s144, %s146
      %p153 = scmp.eq.s32.totalorder %s31, 1
      %p154 = por %p152, %p153
      %p155 = scmp.ne.s32.totalorder %s146, %s147
      %p156 = scmp.eq.s32.totalorder %s31, 0
      %p157 = por %p155, %p156
      %p158 = scmp.ne.s32.totalorder %s146, %s147
      %p159 = scmp.eq.s32.totalorder %s32, 1
      %p160 = por %p158, %p159
      %p162 = scmp.ne.s32.totalorder %s147, %s161
      %p163 = scmp.eq.s32.totalorder %s32, 0
      %p164 = por %p162, %p163
      %s166 = sadd.s32 %s165, 1
      %p169 = scmp.eq.s32.totalorder %s26, 1
      %p170 = scmp.ne.s32.totalorder %s165, %s167
      %p171 = scmp.eq.s32.totalorder %s26, 0
      %p172 = por %p170, %p171
      %p173 = scmp.ne.s32.totalorder %s165, %s167
      %p174 = scmp.eq.s32.totalorder %s31, 1
      %p175 = por %p173, %p174
      %p176 = scmp.ne.s32.totalorder %s167, %s168
      %p177 = scmp.eq.s32.totalorder %s31, 0
      %p178 = por %p176, %p177
      %p179 = scmp.ne.s32.totalorder %s167, %s168
      %p180 = scmp.eq.s32.totalorder %s32, 1
      %p181 = por %p179, %p180
      %p183 = scmp.ne.s32.totalorder %s168, %s182
      %p184 = scmp.eq.s32.totalorder %s32, 0
      %p185 = por %p183, %p184
      %s186 = ssub.s32 %s26, %s33
      %p187 = scmp.eq.s32.totalorder %s186, 0
      %s189 = sadd.s32 %s188, 1
      %s190 = scalar_select %p187, %s188, %s189
      %p193 = pneg %p187
      %p194 = scmp.eq.s32.totalorder %s26, 1
      %p195 = por %p193, %p194
      %p196 = scmp.ne.s32.totalorder %s188, %s191
      %p197 = scmp.eq.s32.totalorder %s26, 0
      %p198 = por %p196, %p197
      %p199 = scmp.ne.s32.totalorder %s188, %s191
      %p200 = scmp.eq.s32.totalorder %s31, 1
      %p201 = por %p199, %p200
      %p202 = scmp.ne.s32.totalorder %s191, %s192
      %p203 = scmp.eq.s32.totalorder %s31, 0
      %p204 = por %p202, %p203
      %p205 = scmp.ne.s32.totalorder %s191, %s192
      %p206 = scmp.eq.s32.totalorder %s32, 1
      %p207 = por %p205, %p206
      %p209 = scmp.ne.s32.totalorder %s192, %s208
      %p210 = scmp.eq.s32.totalorder %s32, 0
      %p211 = por %p209, %p210
      %s213 = sadd.s32 %s212, 1
      %p216 = scmp.eq.s32.totalorder %s26, 1
      %p217 = scmp.ne.s32.totalorder %s212, %s214
      %p218 = scmp.eq.s32.totalorder %s26, 0
      %p219 = por %p217, %p218
      %p220 = scmp.ne.s32.totalorder %s212, %s214
      %p221 = scmp.eq.s32.totalorder %s31, 1
      %p222 = por %p220, %p221
      %p223 = scmp.ne.s32.totalorder %s214, %s215
      %p224 = scmp.eq.s32.totalorder %s31, 0
      %p225 = por %p223, %p224
      %p226 = scmp.ne.s32.totalorder %s214, %s215
      %p227 = scmp.eq.s32.totalorder %s32, 1
      %p228 = por %p226, %p227
      %p230 = scmp.ne.s32.totalorder %s215, %s229
      %p231 = scmp.eq.s32.totalorder %s32, 0
      %p232 = por %p230, %p231
      %s234 = sadd.s32 %s233, 1
      %p237 = scmp.eq.s32.totalorder %s26, 1
      %p238 = scmp.ne.s32.totalorder %s233, %s235
      %p239 = scmp.eq.s32.totalorder %s26, 0
      %p240 = por %p238, %p239
      %p241 = scmp.ne.s32.totalorder %s233, %s235
      %p242 = scmp.eq.s32.totalorder %s31, 1
      %p243 = por %p241, %p242
      %p244 = scmp.ne.s32.totalorder %s235, %s236
      %p245 = scmp.eq.s32.totalorder %s31, 0
      %p246 = por %p244, %p245
      %p247 = scmp.ne.s32.totalorder %s235, %s236
      %p248 = scmp.eq.s32.totalorder %s32, 1
      %p249 = por %p247, %p248
      %p251 = scmp.ne.s32.totalorder %s236, %s250
      %p252 = scmp.eq.s32.totalorder %s32, 0
      %p253 = por %p251, %p252
      %p254 = scmp.le.s32.totalorder 1, %s26
      %p255 = scmp.lt.s32.totalorder %s26, 3
      %p256 = pnand %p254, %p255
      %p257 = pneg %p256
      // Predicated region
      $region9: #{tpu_custom_call.1} parent=5 // pred_check
        _
      $region10: #{tpu_custom_call.1} parent=5 // pred_check_branch
        %259 = sbr.rel (%p256) target = $region12
      $region11: #{tpu_custom_call.1} parent=5 // pred_region
        %s260 = ssub.s32 %s26, 1
        // Predicated region
        $region13: #{tpu_custom_call.1} parent=11 // pred_check
          %p261 = pneg %p73
        $region14: #{tpu_custom_call.1} parent=11 // pred_check_branch
          %263 = sbr.rel (%p261) target = $region16
        $region15: #{tpu_custom_call.1} parent=11 // pred_region
          %265 = vsyncadd [#allocation6], 0
          %s266 = sshll.u32 %s1, 4
          %s267 = int_to_ptr.hbm [resolvable:$true] %s266
          %s268 = sshll.u32 [#allocation5], 4
          %s269 = int_to_ptr.vmem [resolvable:$true] %s268
          %274 = dma.hbm_to_vmem [thread:$0]  %s267, 64, %s269, [#allocation6], 32, 32, 2
        $region16: #{tpu_custom_call.1} parent=11 // pred_fallthru
          _
        // Predicated region
        $region17: #{tpu_custom_call.1} parent=11 // pred_check
          %p275 = pneg %p94
        $region18: #{tpu_custom_call.1} parent=11 // pred_check_branch
          %277 = sbr.rel (%p275) target = $region20
        $region19: #{tpu_custom_call.1} parent=11 // pred_region
          %279 = vsyncadd [#allocation6], 0
          %s280 = sshll.u32 %s2, 4
          %s281 = int_to_ptr.hbm [resolvable:$true] %s280
          %s282 = sshll.u32 [#allocation7], 4
          %s283 = int_to_ptr.vmem [resolvable:$true] %s282
          %288 = dma.hbm_to_vmem [thread:$0]  %s281, 64, %s283, [#allocation6], 32, 32, 2
        $region20: #{tpu_custom_call.1} parent=11 // pred_fallthru
          _
        // Predicated region
        $region21: #{tpu_custom_call.1} parent=11 // pred_check
          %p289 = pneg %p115
        $region22: #{tpu_custom_call.1} parent=11 // pred_check_branch
          %291 = sbr.rel (%p289) target = $region24
        $region23: #{tpu_custom_call.1} parent=11 // pred_region
          %293 = vsyncadd [#allocation9], 0
          %s294 = sshll.u32 %s3, 4
          %s295 = int_to_ptr.hbm [resolvable:$true] %s294
          %s296 = sshll.u32 [#allocation8], 4
          %s297 = int_to_ptr.vmem [resolvable:$true] %s296
          %302 = dma.hbm_to_vmem [thread:$0]  %s295, 512, %s297, [#allocation9], 128, 128, 8
        $region24: #{tpu_custom_call.1} parent=11 // pred_fallthru
          _
        // Predicated region
        $region25: #{tpu_custom_call.1} parent=11 // pred_check
          %p303 = pneg %p136
        $region26: #{tpu_custom_call.1} parent=11 // pred_check_branch
          %305 = sbr.rel (%p303) target = $region28
        $region27: #{tpu_custom_call.1} parent=11 // pred_region
          %307 = vsyncadd [#allocation9], 0
          %s308 = sshll.u32 %s4, 4
          %s309 = int_to_ptr.hbm [resolvable:$true] %s308
          %s310 = sshll.u32 [#allocation10], 4
          %s311 = int_to_ptr.vmem [resolvable:$true] %s310
          %316 = dma.hbm_to_vmem [thread:$0]  %s309, 512, %s311, [#allocation9], 128, 128, 8
        $region28: #{tpu_custom_call.1} parent=11 // pred_fallthru
          _
        // Predicated region
        $region29: #{tpu_custom_call.1} parent=11 // pred_check
          %p317 = pneg %p157
        $region30: #{tpu_custom_call.1} parent=11 // pred_check_branch
          %319 = sbr.rel (%p317) target = $region32
        $region31: #{tpu_custom_call.1} parent=11 // pred_region
          %321 = vsyncadd [#allocation12], 0
          %s322 = sshll.u32 %s5, 4
          %s323 = int_to_ptr.hbm [resolvable:$true] %s322
          %s324 = sshll.u32 [#allocation11], 4
          %s325 = int_to_ptr.vmem [resolvable:$true] %s324
          %330 = dma.hbm_to_vmem [thread:$0]  %s323, 512, %s325, [#allocation12], 128, 128, 8
        $region32: #{tpu_custom_call.1} parent=11 // pred_fallthru
          _
        // Predicated region
        $region33: #{tpu_custom_call.1} parent=11 // pred_check
          %p331 = pneg %p178
        $region34: #{tpu_custom_call.1} parent=11 // pred_check_branch
          %333 = sbr.rel (%p331) target = $region36
        $region35: #{tpu_custom_call.1} parent=11 // pred_region
          _
        $region36: #{tpu_custom_call.1} parent=11 // pred_fallthru
          _
      $region12: #{tpu_custom_call.1} parent=5 // pred_fallthru
        _
      %p334 = scmp.lt.s32.totalorder %s26, 2
      // Predicated region
      $region37: #{tpu_custom_call.1} parent=5 // pred_check
        %p335 = pneg %p334
      $region38: #{tpu_custom_call.1} parent=5 // pred_check_branch
        %337 = sbr.rel (%p335) target = $region40
      $region39: #{tpu_custom_call.1} parent=5 // pred_region
        // Predicated region
        $region41: #{tpu_custom_call.1} parent=39 // pred_check
          %p338 = pneg %p46
        $region42: #{tpu_custom_call.1} parent=39 // pred_check_branch
          %340 = sbr.rel (%p338) target = $region44
        $region43: #{tpu_custom_call.1} parent=39 // pred_region
          %s341 = sand.u32 %s36, 1
          %s342 = scalar_lea.sflag [#allocation3], %s341
          %s343 = sand.u32 %s36, 1
          %s344 = smul.addr %s343, 32
          %s345 = scalar_lea.vmem [#allocation2], %s344
          %s346 = smul.u32 16, %s26
          %348 = vsyncadd %s342, 0
          %s349 = smul.addr %s346, 2
          %s350 = scalar_lea.hbm %s0, %s349
          %s351 = sshll.u32 %s350, 4
          %s352 = int_to_ptr.hbm [resolvable:$true] %s351
          %s353 = sshll.u32 %s345, 4
          %s354 = int_to_ptr.vmem [resolvable:$true] %s353
          %359 = dma.hbm_to_vmem [thread:$0]  %s352, 512, %s354, %s342, 32, 32, 2
        $region44: #{tpu_custom_call.1} parent=39 // pred_fallthru
          _
      $region40: #{tpu_custom_call.1} parent=5 // pred_fallthru
        _
      %p360 = scmp.le.s32.totalorder 1, %s26
      %p361 = scmp.lt.s32.totalorder %s26, 3
      %p362 = pnand %p360, %p361
      %p363 = pneg %p362
      // Predicated region
      $region45: #{tpu_custom_call.1} parent=5 // pred_check
        _
      $region46: #{tpu_custom_call.1} parent=5 // pred_check_branch
        %365 = sbr.rel (%p362) target = $region48
      $region47: #{tpu_custom_call.1} parent=5 // pred_region
        %s366 = ssub.s32 %s26, 1
        %s367 = sand.u32 %s39, 1
        %s368 = scalar_lea.sflag [#allocation3], %s367
        %s369 = sand.u32 %s39, 1
        %s370 = smul.addr %s369, 32
        %s371 = scalar_lea.vmem [#allocation2], %s370
        // Predicated region
        $region49: #{tpu_custom_call.1} parent=47 // pred_check
          %p372 = pneg %p52
        $region50: #{tpu_custom_call.1} parent=47 // pred_check_branch
          %374 = sbr.rel (%p372) target = $region52
        $region51: #{tpu_custom_call.1} parent=47 // pred_region
          %376 = dma.done %s368, 512
        $region52: #{tpu_custom_call.1} parent=47 // pred_fallthru
          _
        // Predicated region
        $region53: #{tpu_custom_call.1} parent=47 // pred_check
          %p377 = pneg %p73
        $region54: #{tpu_custom_call.1} parent=47 // pred_check_branch
          %379 = sbr.rel (%p377) target = $region56
        $region55: #{tpu_custom_call.1} parent=47 // pred_region
          %381 = dma.done [#allocation6], 64
        $region56: #{tpu_custom_call.1} parent=47 // pred_fallthru
          _
        // Predicated region
        $region57: #{tpu_custom_call.1} parent=47 // pred_check
          %p382 = pneg %p94
        $region58: #{tpu_custom_call.1} parent=47 // pred_check_branch
          %384 = sbr.rel (%p382) target = $region60
        $region59: #{tpu_custom_call.1} parent=47 // pred_region
          %386 = dma.done [#allocation6], 64
        $region60: #{tpu_custom_call.1} parent=47 // pred_fallthru
          _
        // Predicated region
        $region61: #{tpu_custom_call.1} parent=47 // pred_check
          %p387 = pneg %p115
        $region62: #{tpu_custom_call.1} parent=47 // pred_check_branch
          %389 = sbr.rel (%p387) target = $region64
        $region63: #{tpu_custom_call.1} parent=47 // pred_region
          %391 = dma.done [#allocation9], 512
        $region64: #{tpu_custom_call.1} parent=47 // pred_fallthru
          _
        // Predicated region
        $region65: #{tpu_custom_call.1} parent=47 // pred_check
          %p392 = pneg %p136
        $region66: #{tpu_custom_call.1} parent=47 // pred_check_branch
          %394 = sbr.rel (%p392) target = $region68
        $region67: #{tpu_custom_call.1} parent=47 // pred_region
          %396 = dma.done [#allocation9], 512
        $region68: #{tpu_custom_call.1} parent=47 // pred_fallthru
          _
        // Predicated region
        $region69: #{tpu_custom_call.1} parent=47 // pred_check
          %p397 = pneg %p157
        $region70: #{tpu_custom_call.1} parent=47 // pred_check_branch
          %399 = sbr.rel (%p397) target = $region72
        $region71: #{tpu_custom_call.1} parent=47 // pred_region
          %401 = dma.done [#allocation12], 512
        $region72: #{tpu_custom_call.1} parent=47 // pred_fallthru
          _
        %s402 = sand.u32 %s39, 1
        %s403 = scalar_lea.sflag [#allocation3], %s402
        %s404 = sand.u32 %s39, 1
        %s405 = smul.addr %s404, 32
        %s406 = scalar_lea.vmem [#allocation2], %s405
        %p407 = pneg %p52
        %p408 = pneg %p49
        %p409 = pneg %p73
        %p410 = pneg %p70
        %p411 = pneg %p94
        %p412 = pneg %p91
        %p413 = pneg %p115
        %p414 = pneg %p112
        %p415 = pneg %p136
        %p416 = pneg %p133
        %p417 = pneg %p157
        %p418 = pneg %p154
        %p419 = pneg %p178
        %p420 = pneg %p175
        %p421 = pneg %p204
        %p422 = pneg %p201
        %s423 = sand.u32 %s191, 1
        %s424 = scalar_lea.sflag [#allocation4], %s423
        %s425 = sand.u32 %s191, 1
        %s426 = smul.addr %s425, 32
        %s427 = scalar_lea.vmem [#allocation13], %s426
        %p428 = pneg %p225
        %p429 = pneg %p222
        %p430 = pneg %p246
        %p431 = pneg %p243
        %s432 = smul.u32 16, %s31
        %s433 = smul.u32 16, %s31
        %p434 = scmp.eq.s32.totalorder %s31, 0
        // Predicated region
        $region73: #{tpu_custom_call.1} parent=47 // pred_check
          %p435 = pneg %p434
        $region74: #{tpu_custom_call.1} parent=47 // pred_check_branch
          %437 = sbr.rel (%p435) target = $region76
        $region75: #{tpu_custom_call.1} parent=47 // pred_region
          %v438 = vld [vmem:[#allocation5] sm:$0x3]
          %v439 = vld [vmem:[#allocation5 + $0x2] sm:$0x3]
          %vm440 = vcmask 254976
          %441 = vst.msk [vmem:[#allocation14] sm:$0x3] %vm440, %v438
          %442 = vst.msk [vmem:[#allocation14 + $0x2] sm:$0x3] %vm440, %v439
          %v443 = vld [vmem:[#allocation7] sm:$0x3]
          %v444 = vld [vmem:[#allocation7 + $0x2] sm:$0x3]
          %445 = vst.msk [vmem:[#allocation16] sm:$0x3] %vm440, %v443
          %446 = vst.msk [vmem:[#allocation16 + $0x2] sm:$0x3] %vm440, %v444
        $region76: #{tpu_custom_call.1} parent=47 // pred_fallthru
          _
        %v447 = vlaneseq
        %v448 = vand.u32 %v447, 127
        %vm449 = vcmp.ge.s32.totalorder %v448, 64
        %vm450 = vcmp.lt.s32.totalorder %v448, 96
        %vm451 = vmand %vm449, %vm450
        %v452 = vsel %vm451, 2.0, 1.0
        %v453 = vsel %vm451, -1.0, 0.0
        %v454 = vld [vmem:[#allocation14] sm:$0x3]
        %s455 = scalar_lea.vmem [#allocation14], 2
        %v456 = vld [vmem:[%s455] sm:$0x3]
        %v457 = vld [vmem:[#allocation16] sm:$0x3]
        %s458 = scalar_lea.vmem [#allocation16], 2
        %v459 = vld [vmem:[%s458] sm:$0x3]
        %v460 = vld [vmem:[%s371] sm:$0x3]
        %v461 = vld [vmem:[#allocation8] sm:$0xff]
        %v462 = vld [vmem:[#allocation8 + $0x8] sm:$0xff]
        %v463 = vld [vmem:[#allocation8 + $0x10] sm:$0xff]
        %v464 = vld [vmem:[#allocation8 + $0x18] sm:$0xff]
        %vm465 = vcmask 261120
        %v467 = vsel %vm465, %v454, 0
        %469 = vmatpush.msra.mxu0 0.0
        %470 = vmatpush.msra.mxu0 0.0
        %471 = vmatpush.msra.mxu0 0.0
        %472 = vmatpush.msra.mxu0 0.0
        %473 = vmatpush.msra.mxu0 0.0
        %474 = vmatpush.msra.mxu0 0.0
        %475 = vmatpush.msra.mxu0 0.0
        %476 = vmatpush.msra.mxu0 0.0
        %477 = vmatpush.msra.mxu0 0.0
        %478 = vmatpush.msra.mxu0 0.0
        %479 = vmatpush.msra.mxu0 0.0
        %480 = vmatpush.msra.mxu0 0.0
        %481 = vmatpush.msra.mxu0 %v464
        %482 = vmatpush.msra.mxu0 %v463
        %483 = vmatpush.msra.mxu0 %v462
        %484 = vmatpush.msra.mxu0 %v461
        %485 = vmatmul.f32.gmra.mxu0 %v467
        %v486 = vpop.f32.mrf.mxu0
        %v487 = vadd.f32 0.0, %v486
        %488 = vdwg.mxu0
        %v489 = vadd.f32 %v460, %v487
        %v490 = vmul.f32 %v489, %v452
        %v491 = vxor.u32 %v490, 2147483648
        %v492 = vmul.f32 %v491, 1.442695
        %v493 = vpow.pop %v492
        %v494 = vadd.f32 %v493, 1.0
        %v495 = vrcp.pop %v494
        %v496 = vmul.f32 %v494, %v495
        %v497 = vsub.f32 1.0, %v496
        %v498 = vmul.f32 %v495, %v497
        %v499 = vadd.f32 %v495, %v498
        %vm500 = vweird.f32 %v494
        %vm501 = vweird.f32 %v495
        %vm502 = vmor %vm500, %vm501
        %v503 = vsel %vm502, %v495, %v499
        %v504 = vand.u32 2147483647, %v494
        %vm505 = vcmp.eq.f32.partialorder %v504, 8.507059e+37
        %v506 = vand.u32 %v494, 2147483648
        %v507 = vor.u32 1.1754944e-38, %v506
        %v508 = vsel %vm505, %v507, %v503
        %v509 = vmul.f32 1.0, %v508
        %v510 = vmul.f32 %v509, %v452
        %v511 = vadd.f32 %v510, %v453
        %513 = vrot.lane.b32.xlu0 %v457, 32
        %v514 = vpop.permute.xlu0 %513
        %v516 = vmul.f32 %v511, %v514
        %518 = vrot.lane.b32.xlu0 %v511, 64
        %v519 = vpop.permute.xlu0 %518
        %v521 = vmul.f32 %v511, %v519
        %523 = vrot.lane.b32.xlu0 %v521, 32
        %v524 = vpop.permute.xlu0 %523
        %v526 = vadd.f32 %v516, %v524
        %v527 = vtanh.pop %v526
        %529 = vrot.lane.b32.xlu0 %v527, 64
        %v530 = vpop.permute.xlu0 %529
        %v532 = vmul.f32 %v511, %v530
        %v533 = vld [vmem:[#allocation10] sm:$0xff]
        %v534 = vld [vmem:[#allocation10 + $0x8] sm:$0xff]
        %v535 = vld [vmem:[#allocation10 + $0x10] sm:$0xff]
        %v536 = vld [vmem:[#allocation10 + $0x18] sm:$0xff]
        %v537 = vld [vmem:[#allocation11] sm:$0xff]
        %v538 = vld [vmem:[#allocation11 + $0x8] sm:$0xff]
        %v539 = vld [vmem:[#allocation11 + $0x10] sm:$0xff]
        %v540 = vld [vmem:[#allocation11 + $0x18] sm:$0xff]
        %v542 = vsel %vm465, %v456, 0
        %544 = vmatpush.msra.mxu0 0.0
        %545 = vmatpush.msra.mxu0 0.0
        %546 = vmatpush.msra.mxu0 0.0
        %547 = vmatpush.msra.mxu0 0.0
        %548 = vmatpush.msra.mxu0 0.0
        %549 = vmatpush.msra.mxu0 0.0
        %550 = vmatpush.msra.mxu0 0.0
        %551 = vmatpush.msra.mxu0 0.0
        %552 = vmatpush.msra.mxu0 0.0
        %553 = vmatpush.msra.mxu0 0.0
        %554 = vmatpush.msra.mxu0 0.0
        %555 = vmatpush.msra.mxu0 0.0
        %556 = vmatpush.msra.mxu0 %v540
        %557 = vmatpush.msra.mxu0 %v539
        %558 = vmatpush.msra.mxu0 %v538
        %559 = vmatpush.msra.mxu0 %v537
        %560 = vmatmul.f32.gmra.mxu0 %v542
        %v561 = vpop.f32.mrf.mxu0
        %v562 = vadd.f32 0.0, %v561
        %563 = vdwg.mxu0
        %565 = vrot.lane.b32.xlu0 %v532, 32
        %v566 = vpop.permute.xlu0 %565
        %v567 = vsel %vm465, %v566, 0
        %569 = vmatpush.msra.mxu0 0.0
        %570 = vmatpush.msra.mxu0 0.0
        %571 = vmatpush.msra.mxu0 0.0
        %572 = vmatpush.msra.mxu0 0.0
        %573 = vmatpush.msra.mxu0 0.0
        %574 = vmatpush.msra.mxu0 0.0
        %575 = vmatpush.msra.mxu0 0.0
        %576 = vmatpush.msra.mxu0 0.0
        %577 = vmatpush.msra.mxu0 0.0
        %578 = vmatpush.msra.mxu0 0.0
        %579 = vmatpush.msra.mxu0 0.0
        %580 = vmatpush.msra.mxu0 0.0
        %581 = vmatpush.msra.mxu0 %v536
        %582 = vmatpush.msra.mxu0 %v535
        %583 = vmatpush.msra.mxu0 %v534
        %584 = vmatpush.msra.mxu0 %v533
        %585 = vmatmul.f32.gmra.mxu0 %v567
        %v586 = vpop.f32.mrf.mxu0
        %v587 = vadd.f32 %v562, %v586
        %588 = vdwg.mxu0
        %v589 = vld [vmem:[%s6] sm:$0x1]
        %v591 = vperm.slane %v589, 0
        %v593 = vadd.f32 %v587, %v591
        %v594 = vmul.f32 %v593, %v452
        %v595 = vxor.u32 %v594, 2147483648
        %v596 = vmul.f32 %v595, 1.442695
        %v597 = vpow.pop %v596
        %v598 = vadd.f32 %v597, 1.0
        %v599 = vrcp.pop %v598
        %v600 = vmul.f32 %v598, %v599
        %v601 = vsub.f32 1.0, %v600
        %v602 = vmul.f32 %v599, %v601
        %v603 = vadd.f32 %v599, %v602
        %vm604 = vweird.f32 %v598
        %vm605 = vweird.f32 %v599
        %vm606 = vmor %vm604, %vm605
        %v607 = vsel %vm606, %v599, %v603
        %v608 = vand.u32 2147483647, %v598
        %vm609 = vcmp.eq.f32.partialorder %v608, 8.507059e+37
        %v610 = vand.u32 %v598, 2147483648
        %v611 = vor.u32 1.1754944e-38, %v610
        %v612 = vsel %vm609, %v611, %v607
        %v613 = vmul.f32 1.0, %v612
        %v614 = vmul.f32 %v613, %v452
        %v615 = vadd.f32 %v614, %v453
        %617 = vrot.lane.b32.xlu0 %v459, 32
        %v618 = vpop.permute.xlu0 %617
        %v620 = vmul.f32 %v615, %v618
        %622 = vrot.lane.b32.xlu0 %v615, 64
        %v623 = vpop.permute.xlu0 %622
        %v625 = vmul.f32 %v615, %v623
        %627 = vrot.lane.b32.xlu0 %v625, 32
        %v628 = vpop.permute.xlu0 %627
        %v630 = vadd.f32 %v620, %v628
        %v631 = vtanh.pop %v630
        %633 = vrot.lane.b32.xlu0 %v631, 64
        %v634 = vpop.permute.xlu0 %633
        %v636 = vmul.f32 %v615, %v634
        %638 = vrot.lane.b32.xlu0 %v636, 32
        %v639 = vpop.permute.xlu0 %638
        %vm641 = vcmask 254976
        %642 = vst.msk [vmem:[%s427] sm:$0x3] %vm641, %v639
        %s643 = scalar_lea.vmem %s371, 2 [#allocation2]
        %v644 = vld [vmem:[%s643] sm:$0x3]
        %v645 = vld [vmem:[#allocation8] sm:$0xff]
        %v646 = vld [vmem:[#allocation8 + $0x8] sm:$0xff]
        %v647 = vld [vmem:[#allocation8 + $0x10] sm:$0xff]
        %v648 = vld [vmem:[#allocation8 + $0x18] sm:$0xff]
        %649 = vmatpush.msra.mxu0 0.0
        %650 = vmatpush.msra.mxu0 0.0
        %651 = vmatpush.msra.mxu0 0.0
        %652 = vmatpush.msra.mxu0 0.0
        %653 = vmatpush.msra.mxu0 0.0
        %654 = vmatpush.msra.mxu0 0.0
        %655 = vmatpush.msra.mxu0 0.0
        %656 = vmatpush.msra.mxu0 0.0
        %657 = vmatpush.msra.mxu0 0.0
        %658 = vmatpush.msra.mxu0 0.0
        %659 = vmatpush.msra.mxu0 0.0
        %660 = vmatpush.msra.mxu0 0.0
        %661 = vmatpush.msra.mxu0 %v648
        %662 = vmatpush.msra.mxu0 %v647
        %663 = vmatpush.msra.mxu0 %v646
        %664 = vmatpush.msra.mxu0 %v645
        %665 = vmatmul.f32.gmra.mxu0 %v567
        %v666 = vpop.f32.mrf.mxu0
        %v667 = vadd.f32 0.0, %v666
        %668 = vdwg.mxu0
        %v669 = vadd.f32 %v644, %v667
        %v670 = vmul.f32 %v669, %v452
        %v671 = vxor.u32 %v670, 2147483648
        %v672 = vmul.f32 %v671, 1.442695
        %v673 = vpow.pop %v672
        %v674 = vadd.f32 %v673, 1.0
        %v675 = vrcp.pop %v674
        %v676 = vmul.f32 %v674, %v675
        %v677 = vsub.f32 1.0, %v676
        %v678 = vmul.f32 %v675, %v677
        %v679 = vadd.f32 %v675, %v678
        %vm680 = vweird.f32 %v674
        %vm681 = vweird.f32 %v675
        %vm682 = vmor %vm680, %vm681
        %v683 = vsel %vm682, %v675, %v679
        %v684 = vand.u32 2147483647, %v674
        %vm685 = vcmp.eq.f32.partialorder %v684, 8.507059e+37
        %v686 = vand.u32 %v674, 2147483648
        %v687 = vor.u32 1.1754944e-38, %v686
        %v688 = vsel %vm685, %v687, %v683
        %v689 = vmul.f32 1.0, %v688
        %v690 = vmul.f32 %v689, %v452
        %v691 = vadd.f32 %v690, %v453
        %v692 = vmul.f32 %v691, %v526
        %694 = vrot.lane.b32.xlu0 %v691, 64
        %v695 = vpop.permute.xlu0 %694
        %v697 = vmul.f32 %v691, %v695
        %699 = vrot.lane.b32.xlu0 %v697, 32
        %v700 = vpop.permute.xlu0 %699
        %v702 = vadd.f32 %v692, %v700
        %v703 = vtanh.pop %v702
        %705 = vrot.lane.b32.xlu0 %v703, 64
        %v706 = vpop.permute.xlu0 %705
        %v708 = vmul.f32 %v691, %v706
        %v709 = vld [vmem:[#allocation10] sm:$0xff]
        %v710 = vld [vmem:[#allocation10 + $0x8] sm:$0xff]
        %v711 = vld [vmem:[#allocation10 + $0x10] sm:$0xff]
        %v712 = vld [vmem:[#allocation10 + $0x18] sm:$0xff]
        %v713 = vld [vmem:[#allocation11] sm:$0xff]
        %v714 = vld [vmem:[#allocation11 + $0x8] sm:$0xff]
        %v715 = vld [vmem:[#allocation11 + $0x10] sm:$0xff]
        %v716 = vld [vmem:[#allocation11 + $0x18] sm:$0xff]
        %v717 = vsel %vm465, %v639, 0
        %719 = vmatpush.msra.mxu0 0.0
        %720 = vmatpush.msra.mxu0 0.0
        %721 = vmatpush.msra.mxu0 0.0
        %722 = vmatpush.msra.mxu0 0.0
        %723 = vmatpush.msra.mxu0 0.0
        %724 = vmatpush.msra.mxu0 0.0
        %725 = vmatpush.msra.mxu0 0.0
        %726 = vmatpush.msra.mxu0 0.0
        %727 = vmatpush.msra.mxu0 0.0
        %728 = vmatpush.msra.mxu0 0.0
        %729 = vmatpush.msra.mxu0 0.0
        %730 = vmatpush.msra.mxu0 0.0
        %731 = vmatpush.msra.mxu0 %v716
        %732 = vmatpush.msra.mxu0 %v715
        %733 = vmatpush.msra.mxu0 %v714
        %734 = vmatpush.msra.mxu0 %v713
        %735 = vmatmul.f32.gmra.mxu0 %v717
        %v736 = vpop.f32.mrf.mxu0
        %v737 = vadd.f32 0.0, %v736
        %738 = vdwg.mxu0
        %740 = vrot.lane.b32.xlu0 %v708, 32
        %v741 = vpop.permute.xlu0 %740
        %v742 = vsel %vm465, %v741, 0
        %744 = vmatpush.msra.mxu0 0.0
        %745 = vmatpush.msra.mxu0 0.0
        %746 = vmatpush.msra.mxu0 0.0
        %747 = vmatpush.msra.mxu0 0.0
        %748 = vmatpush.msra.mxu0 0.0
        %749 = vmatpush.msra.mxu0 0.0
        %750 = vmatpush.msra.mxu0 0.0
        %751 = vmatpush.msra.mxu0 0.0
        %752 = vmatpush.msra.mxu0 0.0
        %753 = vmatpush.msra.mxu0 0.0
        %754 = vmatpush.msra.mxu0 0.0
        %755 = vmatpush.msra.mxu0 0.0
        %756 = vmatpush.msra.mxu0 %v712
        %757 = vmatpush.msra.mxu0 %v711
        %758 = vmatpush.msra.mxu0 %v710
        %759 = vmatpush.msra.mxu0 %v709
        %760 = vmatmul.f32.gmra.mxu0 %v742
        %v761 = vpop.f32.mrf.mxu0
        %v762 = vadd.f32 %v737, %v761
        %763 = vdwg.mxu0
        %v764 = vld [vmem:[%s6] sm:$0x1]
        %v766 = vperm.slane %v764, 0
        %v768 = vadd.f32 %v762, %v766
        %v769 = vmul.f32 %v768, %v452
        %v770 = vxor.u32 %v769, 2147483648
        %v771 = vmul.f32 %v770, 1.442695
        %v772 = vpow.pop %v771
        %v773 = vadd.f32 %v772, 1.0
        %v774 = vrcp.pop %v773
        %v775 = vmul.f32 %v773, %v774
        %v776 = vsub.f32 1.0, %v775
        %v777 = vmul.f32 %v774, %v776
        %v778 = vadd.f32 %v774, %v777
        %vm779 = vweird.f32 %v773
        %vm780 = vweird.f32 %v774
        %vm781 = vmor %vm779, %vm780
        %v782 = vsel %vm781, %v774, %v778
        %v783 = vand.u32 2147483647, %v773
        %vm784 = vcmp.eq.f32.partialorder %v783, 8.507059e+37
        %v785 = vand.u32 %v773, 2147483648
        %v786 = vor.u32 1.1754944e-38, %v785
        %v787 = vsel %vm784, %v786, %v782
        %v788 = vmul.f32 1.0, %v787
        %v789 = vmul.f32 %v788, %v452
        %v790 = vadd.f32 %v789, %v453
        %v791 = vmul.f32 %v790, %v630
        %793 = vrot.lane.b32.xlu0 %v790, 64
        %v794 = vpop.permute.xlu0 %793
        %v796 = vmul.f32 %v790, %v794
        %798 = vrot.lane.b32.xlu0 %v796, 32
        %v799 = vpop.permute.xlu0 %798
        %v801 = vadd.f32 %v791, %v799
        %v802 = vtanh.pop %v801
        %804 = vrot.lane.b32.xlu0 %v802, 64
        %v805 = vpop.permute.xlu0 %804
        %v807 = vmul.f32 %v790, %v805
        %809 = vrot.lane.b32.xlu0 %v807, 32
        %v810 = vpop.permute.xlu0 %809
        %s812 = scalar_lea.vmem %s427, 2 [#allocation13]
        %813 = vst.msk [vmem:[%s812] sm:$0x3] %vm641, %v810
        %s814 = scalar_lea.vmem %s371, 4 [#allocation2]
        %v815 = vld [vmem:[%s814] sm:$0x3]
        %v816 = vld [vmem:[#allocation8] sm:$0xff]
        %v817 = vld [vmem:[#allocation8 + $0x8] sm:$0xff]
        %v818 = vld [vmem:[#allocation8 + $0x10] sm:$0xff]
        %v819 = vld [vmem:[#allocation8 + $0x18] sm:$0xff]
        %820 = vmatpush.msra.mxu0 0.0
        %821 = vmatpush.msra.mxu0 0.0
        %822 = vmatpush.msra.mxu0 0.0
        %823 = vmatpush.msra.mxu0 0.0
        %824 = vmatpush.msra.mxu0 0.0
        %825 = vmatpush.msra.mxu0 0.0
        %826 = vmatpush.msra.mxu0 0.0
        %827 = vmatpush.msra.mxu0 0.0
        %828 = vmatpush.msra.mxu0 0.0
        %829 = vmatpush.msra.mxu0 0.0
        %830 = vmatpush.msra.mxu0 0.0
        %831 = vmatpush.msra.mxu0 0.0
        %832 = vmatpush.msra.mxu0 %v819
        %833 = vmatpush.msra.mxu0 %v818
        %834 = vmatpush.msra.mxu0 %v817
        %835 = vmatpush.msra.mxu0 %v816
        %836 = vmatmul.f32.gmra.mxu0 %v742
        %v837 = vpop.f32.mrf.mxu0
        %v838 = vadd.f32 0.0, %v837
        %839 = vdwg.mxu0
        %v840 = vadd.f32 %v815, %v838
        %v841 = vmul.f32 %v840, %v452
        %v842 = vxor.u32 %v841, 2147483648
        %v843 = vmul.f32 %v842, 1.442695
        %v844 = vpow.pop %v843
        %v845 = vadd.f32 %v844, 1.0
        %v846 = vrcp.pop %v845
        %v847 = vmul.f32 %v845, %v846
        %v848 = vsub.f32 1.0, %v847
        %v849 = vmul.f32 %v846, %v848
        %v850 = vadd.f32 %v846, %v849
        %vm851 = vweird.f32 %v845
        %vm852 = vweird.f32 %v846
        %vm853 = vmor %vm851, %vm852
        %v854 = vsel %vm853, %v846, %v850
        %v855 = vand.u32 2147483647, %v845
        %vm856 = vcmp.eq.f32.partialorder %v855, 8.507059e+37
        %v857 = vand.u32 %v845, 2147483648
        %v858 = vor.u32 1.1754944e-38, %v857
        %v859 = vsel %vm856, %v858, %v854
        %v860 = vmul.f32 1.0, %v859
        %v861 = vmul.f32 %v860, %v452
        %v862 = vadd.f32 %v861, %v453
        %v863 = vmul.f32 %v862, %v702
        %865 = vrot.lane.b32.xlu0 %v862, 64
        %v866 = vpop.permute.xlu0 %865
        %v868 = vmul.f32 %v862, %v866
        %870 = vrot.lane.b32.xlu0 %v868, 32
        %v871 = vpop.permute.xlu0 %870
        %v873 = vadd.f32 %v863, %v871
        %v874 = vtanh.pop %v873
        %876 = vrot.lane.b32.xlu0 %v874, 64
        %v877 = vpop.permute.xlu0 %876
        %v879 = vmul.f32 %v862, %v877
        %v880 = vld [vmem:[#allocation10] sm:$0xff]
        %v881 = vld [vmem:[#allocation10 + $0x8] sm:$0xff]
        %v882 = vld [vmem:[#allocation10 + $0x10] sm:$0xff]
        %v883 = vld [vmem:[#allocation10 + $0x18] sm:$0xff]
        %v884 = vld [vmem:[#allocation11] sm:$0xff]
        %v885 = vld [vmem:[#allocation11 + $0x8] sm:$0xff]
        %v886 = vld [vmem:[#allocation11 + $0x10] sm:$0xff]
        %v887 = vld [vmem:[#allocation11 + $0x18] sm:$0xff]
        %v888 = vsel %vm465, %v810, 0
        %890 = vmatpush.msra.mxu0 0.0
        %891 = vmatpush.msra.mxu0 0.0
        %892 = vmatpush.msra.mxu0 0.0
        %893 = vmatpush.msra.mxu0 0.0
        %894 = vmatpush.msra.mxu0 0.0
        %895 = vmatpush.msra.mxu0 0.0
        %896 = vmatpush.msra.mxu0 0.0
        %897 = vmatpush.msra.mxu0 0.0
        %898 = vmatpush.msra.mxu0 0.0
        %899 = vmatpush.msra.mxu0 0.0
        %900 = vmatpush.msra.mxu0 0.0
        %901 = vmatpush.msra.mxu0 0.0
        %902 = vmatpush.msra.mxu0 %v887
        %903 = vmatpush.msra.mxu0 %v886
        %904 = vmatpush.msra.mxu0 %v885
        %905 = vmatpush.msra.mxu0 %v884
        %906 = vmatmul.f32.gmra.mxu0 %v888
        %v907 = vpop.f32.mrf.mxu0
        %v908 = vadd.f32 0.0, %v907
        %909 = vdwg.mxu0
        %911 = vrot.lane.b32.xlu0 %v879, 32
        %v912 = vpop.permute.xlu0 %911
        %v913 = vsel %vm465, %v912, 0
        %915 = vmatpush.msra.mxu0 0.0
        %916 = vmatpush.msra.mxu0 0.0
        %917 = vmatpush.msra.mxu0 0.0
        %918 = vmatpush.msra.mxu0 0.0
        %919 = vmatpush.msra.mxu0 0.0
        %920 = vmatpush.msra.mxu0 0.0
        %921 = vmatpush.msra.mxu0 0.0
        %922 = vmatpush.msra.mxu0 0.0
        %923 = vmatpush.msra.mxu0 0.0
        %924 = vmatpush.msra.mxu0 0.0
        %925 = vmatpush.msra.mxu0 0.0
        %926 = vmatpush.msra.mxu0 0.0
        %927 = vmatpush.msra.mxu0 %v883
        %928 = vmatpush.msra.mxu0 %v882
        %929 = vmatpush.msra.mxu0 %v881
        %930 = vmatpush.msra.mxu0 %v880
        %931 = vmatmul.f32.gmra.mxu0 %v913
        %v932 = vpop.f32.mrf.mxu0
        %v933 = vadd.f32 %v908, %v932
        %934 = vdwg.mxu0
        %v935 = vld [vmem:[%s6] sm:$0x1]
        %v937 = vperm.slane %v935, 0
        %v939 = vadd.f32 %v933, %v937
        %v940 = vmul.f32 %v939, %v452
        %v941 = vxor.u32 %v940, 2147483648
        %v942 = vmul.f32 %v941, 1.442695
        %v943 = vpow.pop %v942
        %v944 = vadd.f32 %v943, 1.0
        %v945 = vrcp.pop %v944
        %v946 = vmul.f32 %v944, %v945
        %v947 = vsub.f32 1.0, %v946
        %v948 = vmul.f32 %v945, %v947
        %v949 = vadd.f32 %v945, %v948
        %vm950 = vweird.f32 %v944
        %vm951 = vweird.f32 %v945
        %vm952 = vmor %vm950, %vm951
        %v953 = vsel %vm952, %v945, %v949
        %v954 = vand.u32 2147483647, %v944
        %vm955 = vcmp.eq.f32.partialorder %v954, 8.507059e+37
        %v956 = vand.u32 %v944, 2147483648
        %v957 = vor.u32 1.1754944e-38, %v956
        %v958 = vsel %vm955, %v957, %v953
        %v959 = vmul.f32 1.0, %v958
        %v960 = vmul.f32 %v959, %v452
        %v961 = vadd.f32 %v960, %v453
        %v962 = vmul.f32 %v961, %v801
        %964 = vrot.lane.b32.xlu0 %v961, 64
        %v965 = vpop.permute.xlu0 %964
        %v967 = vmul.f32 %v961, %v965
        %969 = vrot.lane.b32.xlu0 %v967, 32
        %v970 = vpop.permute.xlu0 %969
        %v972 = vadd.f32 %v962, %v970
        %v973 = vtanh.pop %v972
        %975 = vrot.lane.b32.xlu0 %v973, 64
        %v976 = vpop.permute.xlu0 %975
        %v978 = vmul.f32 %v961, %v976
        %980 = vrot.lane.b32.xlu0 %v978, 32
        %v981 = vpop.permute.xlu0 %980
        %s983 = scalar_lea.vmem %s427, 4 [#allocation13]
        %984 = vst.msk [vmem:[%s983] sm:$0x3] %vm641, %v981
        %s985 = scalar_lea.vmem %s371, 6 [#allocation2]
        %v986 = vld [vmem:[%s985] sm:$0x3]
        %v987 = vld [vmem:[#allocation8] sm:$0xff]
        %v988 = vld [vmem:[#allocation8 + $0x8] sm:$0xff]
        %v989 = vld [vmem:[#allocation8 + $0x10] sm:$0xff]
        %v990 = vld [vmem:[#allocation8 + $0x18] sm:$0xff]
        %991 = vmatpush.msra.mxu0 0.0
        %992 = vmatpush.msra.mxu0 0.0
        %993 = vmatpush.msra.mxu0 0.0
        %994 = vmatpush.msra.mxu0 0.0
        %995 = vmatpush.msra.mxu0 0.0
        %996 = vmatpush.msra.mxu0 0.0
        %997 = vmatpush.msra.mxu0 0.0
        %998 = vmatpush.msra.mxu0 0.0
        %999 = vmatpush.msra.mxu0 0.0
        %1000 = vmatpush.msra.mxu0 0.0
        %1001 = vmatpush.msra.mxu0 0.0
        %1002 = vmatpush.msra.mxu0 0.0
        %1003 = vmatpush.msra.mxu0 %v990
        %1004 = vmatpush.msra.mxu0 %v989
        %1005 = vmatpush.msra.mxu0 %v988
        %1006 = vmatpush.msra.mxu0 %v987
        %1007 = vmatmul.f32.gmra.mxu0 %v913
        %v1008 = vpop.f32.mrf.mxu0
        %v1009 = vadd.f32 0.0, %v1008
        %1010 = vdwg.mxu0
        %v1011 = vadd.f32 %v986, %v1009
        %v1012 = vmul.f32 %v1011, %v452
        %v1013 = vxor.u32 %v1012, 2147483648
        %v1014 = vmul.f32 %v1013, 1.442695
        %v1015 = vpow.pop %v1014
        %v1016 = vadd.f32 %v1015, 1.0
        %v1017 = vrcp.pop %v1016
        %v1018 = vmul.f32 %v1016, %v1017
        %v1019 = vsub.f32 1.0, %v1018
        %v1020 = vmul.f32 %v1017, %v1019
        %v1021 = vadd.f32 %v1017, %v1020
        %vm1022 = vweird.f32 %v1016
        %vm1023 = vweird.f32 %v1017
        %vm1024 = vmor %vm1022, %vm1023
        %v1025 = vsel %vm1024, %v1017, %v1021
        %v1026 = vand.u32 2147483647, %v1016
        %vm1027 = vcmp.eq.f32.partialorder %v1026, 8.507059e+37
        %v1028 = vand.u32 %v1016, 2147483648
        %v1029 = vor.u32 1.1754944e-38, %v1028
        %v1030 = vsel %vm1027, %v1029, %v1025
        %v1031 = vmul.f32 1.0, %v1030
        %v1032 = vmul.f32 %v1031, %v452
        %v1033 = vadd.f32 %v1032, %v453
        %v1034 = vmul.f32 %v1033, %v873
        %1036 = vrot.lane.b32.xlu0 %v1033, 64
        %v1037 = vpop.permute.xlu0 %1036
        %v1039 = vmul.f32 %v1033, %v1037
        %1041 = vrot.lane.b32.xlu0 %v1039, 32
        %v1042 = vpop.permute.xlu0 %1041
        %v1044 = vadd.f32 %v1034, %v1042
        %v1045 = vtanh.pop %v1044
        %1047 = vrot.lane.b32.xlu0 %v1045, 64
        %v1048 = vpop.permute.xlu0 %1047
        %v1050 = vmul.f32 %v1033, %v1048
        %v1051 = vld [vmem:[#allocation10] sm:$0xff]
        %v1052 = vld [vmem:[#allocation10 + $0x8] sm:$0xff]
        %v1053 = vld [vmem:[#allocation10 + $0x10] sm:$0xff]
        %v1054 = vld [vmem:[#allocation10 + $0x18] sm:$0xff]
        %v1055 = vld [vmem:[#allocation11] sm:$0xff]
        %v1056 = vld [vmem:[#allocation11 + $0x8] sm:$0xff]
        %v1057 = vld [vmem:[#allocation11 + $0x10] sm:$0xff]
        %v1058 = vld [vmem:[#allocation11 + $0x18] sm:$0xff]
        %v1059 = vsel %vm465, %v981, 0
        %1061 = vmatpush.msra.mxu0 0.0
        %1062 = vmatpush.msra.mxu0 0.0
        %1063 = vmatpush.msra.mxu0 0.0
        %1064 = vmatpush.msra.mxu0 0.0
        %1065 = vmatpush.msra.mxu0 0.0
        %1066 = vmatpush.msra.mxu0 0.0
        %1067 = vmatpush.msra.mxu0 0.0
        %1068 = vmatpush.msra.mxu0 0.0
        %1069 = vmatpush.msra.mxu0 0.0
        %1070 = vmatpush.msra.mxu0 0.0
        %1071 = vmatpush.msra.mxu0 0.0
        %1072 = vmatpush.msra.mxu0 0.0
        %1073 = vmatpush.msra.mxu0 %v1058
        %1074 = vmatpush.msra.mxu0 %v1057
        %1075 = vmatpush.msra.mxu0 %v1056
        %1076 = vmatpush.msra.mxu0 %v1055
        %1077 = vmatmul.f32.gmra.mxu0 %v1059
        %v1078 = vpop.f32.mrf.mxu0
        %v1079 = vadd.f32 0.0, %v1078
        %1080 = vdwg.mxu0
        %1082 = vrot.lane.b32.xlu0 %v1050, 32
        %v1083 = vpop.permute.xlu0 %1082
        %v1084 = vsel %vm465, %v1083, 0
        %1086 = vmatpush.msra.mxu0 0.0
        %1087 = vmatpush.msra.mxu0 0.0
        %1088 = vmatpush.msra.mxu0 0.0
        %1089 = vmatpush.msra.mxu0 0.0
        %1090 = vmatpush.msra.mxu0 0.0
        %1091 = vmatpush.msra.mxu0 0.0
        %1092 = vmatpush.msra.mxu0 0.0
        %1093 = vmatpush.msra.mxu0 0.0
        %1094 = vmatpush.msra.mxu0 0.0
        %1095 = vmatpush.msra.mxu0 0.0
        %1096 = vmatpush.msra.mxu0 0.0
        %1097 = vmatpush.msra.mxu0 0.0
        %1098 = vmatpush.msra.mxu0 %v1054
        %1099 = vmatpush.msra.mxu0 %v1053
        %1100 = vmatpush.msra.mxu0 %v1052
        %1101 = vmatpush.msra.mxu0 %v1051
        %1102 = vmatmul.f32.gmra.mxu0 %v1084
        %v1103 = vpop.f32.mrf.mxu0
        %v1104 = vadd.f32 %v1079, %v1103
        %1105 = vdwg.mxu0
        %v1106 = vld [vmem:[%s6] sm:$0x1]
        %v1108 = vperm.slane %v1106, 0
        %v1110 = vadd.f32 %v1104, %v1108
        %v1111 = vmul.f32 %v1110, %v452
        %v1112 = vxor.u32 %v1111, 2147483648
        %v1113 = vmul.f32 %v1112, 1.442695
        %v1114 = vpow.pop %v1113
        %v1115 = vadd.f32 %v1114, 1.0
        %v1116 = vrcp.pop %v1115
        %v1117 = vmul.f32 %v1115, %v1116
        %v1118 = vsub.f32 1.0, %v1117
        %v1119 = vmul.f32 %v1116, %v1118
        %v1120 = vadd.f32 %v1116, %v1119
        %vm1121 = vweird.f32 %v1115
        %vm1122 = vweird.f32 %v1116
        %vm1123 = vmor %vm1121, %vm1122
        %v1124 = vsel %vm1123, %v1116, %v1120
        %v1125 = vand.u32 2147483647, %v1115
        %vm1126 = vcmp.eq.f32.partialorder %v1125, 8.507059e+37
        %v1127 = vand.u32 %v1115, 2147483648
        %v1128 = vor.u32 1.1754944e-38, %v1127
        %v1129 = vsel %vm1126, %v1128, %v1124
        %v1130 = vmul.f32 1.0, %v1129
        %v1131 = vmul.f32 %v1130, %v452
        %v1132 = vadd.f32 %v1131, %v453
        %v1133 = vmul.f32 %v1132, %v972
        %1135 = vrot.lane.b32.xlu0 %v1132, 64
        %v1136 = vpop.permute.xlu0 %1135
        %v1138 = vmul.f32 %v1132, %v1136
        %1140 = vrot.lane.b32.xlu0 %v1138, 32
        %v1141 = vpop.permute.xlu0 %1140
        %v1143 = vadd.f32 %v1133, %v1141
        %v1144 = vtanh.pop %v1143
        %1146 = vrot.lane.b32.xlu0 %v1144, 64
        %v1147 = vpop.permute.xlu0 %1146
        %v1149 = vmul.f32 %v1132, %v1147
        %1151 = vrot.lane.b32.xlu0 %v1149, 32
        %v1152 = vpop.permute.xlu0 %1151
        %s1154 = scalar_lea.vmem %s427, 6 [#allocation13]
        %1155 = vst.msk [vmem:[%s1154] sm:$0x3] %vm641, %v1152
        %s1156 = scalar_lea.vmem %s371, 8 [#allocation2]
        %v1157 = vld [vmem:[%s1156] sm:$0x3]
        %v1158 = vld [vmem:[#allocation8] sm:$0xff]
        %v1159 = vld [vmem:[#allocation8 + $0x8] sm:$0xff]
        %v1160 = vld [vmem:[#allocation8 + $0x10] sm:$0xff]
        %v1161 = vld [vmem:[#allocation8 + $0x18] sm:$0xff]
        %1162 = vmatpush.msra.mxu0 0.0
        %1163 = vmatpush.msra.mxu0 0.0
        %1164 = vmatpush.msra.mxu0 0.0
        %1165 = vmatpush.msra.mxu0 0.0
        %1166 = vmatpush.msra.mxu0 0.0
        %1167 = vmatpush.msra.mxu0 0.0
        %1168 = vmatpush.msra.mxu0 0.0
        %1169 = vmatpush.msra.mxu0 0.0
        %1170 = vmatpush.msra.mxu0 0.0
        %1171 = vmatpush.msra.mxu0 0.0
        %1172 = vmatpush.msra.mxu0 0.0
        %1173 = vmatpush.msra.mxu0 0.0
        %1174 = vmatpush.msra.mxu0 %v1161
        %1175 = vmatpush.msra.mxu0 %v1160
        %1176 = vmatpush.msra.mxu0 %v1159
        %1177 = vmatpush.msra.mxu0 %v1158
        %1178 = vmatmul.f32.gmra.mxu0 %v1084
        %v1179 = vpop.f32.mrf.mxu0
        %v1180 = vadd.f32 0.0, %v1179
        %1181 = vdwg.mxu0
        %v1182 = vadd.f32 %v1157, %v1180
        %v1183 = vmul.f32 %v1182, %v452
        %v1184 = vxor.u32 %v1183, 2147483648
        %v1185 = vmul.f32 %v1184, 1.442695
        %v1186 = vpow.pop %v1185
        %v1187 = vadd.f32 %v1186, 1.0
        %v1188 = vrcp.pop %v1187
        %v1189 = vmul.f32 %v1187, %v1188
        %v1190 = vsub.f32 1.0, %v1189
        %v1191 = vmul.f32 %v1188, %v1190
        %v1192 = vadd.f32 %v1188, %v1191
        %vm1193 = vweird.f32 %v1187
        %vm1194 = vweird.f32 %v1188
        %vm1195 = vmor %vm1193, %vm1194
        %v1196 = vsel %vm1195, %v1188, %v1192
        %v1197 = vand.u32 2147483647, %v1187
        %vm1198 = vcmp.eq.f32.partialorder %v1197, 8.507059e+37
        %v1199 = vand.u32 %v1187, 2147483648
        %v1200 = vor.u32 1.1754944e-38, %v1199
        %v1201 = vsel %vm1198, %v1200, %v1196
        %v1202 = vmul.f32 1.0, %v1201
        %v1203 = vmul.f32 %v1202, %v452
        %v1204 = vadd.f32 %v1203, %v453
        %v1205 = vmul.f32 %v1204, %v1044
        %1207 = vrot.lane.b32.xlu0 %v1204, 64
        %v1208 = vpop.permute.xlu0 %1207
        %v1210 = vmul.f32 %v1204, %v1208
        %1212 = vrot.lane.b32.xlu0 %v1210, 32
        %v1213 = vpop.permute.xlu0 %1212
        %v1215 = vadd.f32 %v1205, %v1213
        %v1216 = vtanh.pop %v1215
        %1218 = vrot.lane.b32.xlu0 %v1216, 64
        %v1219 = vpop.permute.xlu0 %1218
        %v1221 = vmul.f32 %v1204, %v1219
        %v1222 = vld [vmem:[#allocation10] sm:$0xff]
        %v1223 = vld [vmem:[#allocation10 + $0x8] sm:$0xff]
        %v1224 = vld [vmem:[#allocation10 + $0x10] sm:$0xff]
        %v1225 = vld [vmem:[#allocation10 + $0x18] sm:$0xff]
        %v1226 = vld [vmem:[#allocation11] sm:$0xff]
        %v1227 = vld [vmem:[#allocation11 + $0x8] sm:$0xff]
        %v1228 = vld [vmem:[#allocation11 + $0x10] sm:$0xff]
        %v1229 = vld [vmem:[#allocation11 + $0x18] sm:$0xff]
        %v1230 = vsel %vm465, %v1152, 0
        %1232 = vmatpush.msra.mxu0 0.0
        %1233 = vmatpush.msra.mxu0 0.0
        %1234 = vmatpush.msra.mxu0 0.0
        %1235 = vmatpush.msra.mxu0 0.0
        %1236 = vmatpush.msra.mxu0 0.0
        %1237 = vmatpush.msra.mxu0 0.0
        %1238 = vmatpush.msra.mxu0 0.0
        %1239 = vmatpush.msra.mxu0 0.0
        %1240 = vmatpush.msra.mxu0 0.0
        %1241 = vmatpush.msra.mxu0 0.0
        %1242 = vmatpush.msra.mxu0 0.0
        %1243 = vmatpush.msra.mxu0 0.0
        %1244 = vmatpush.msra.mxu0 %v1229
        %1245 = vmatpush.msra.mxu0 %v1228
        %1246 = vmatpush.msra.mxu0 %v1227
        %1247 = vmatpush.msra.mxu0 %v1226
        %1248 = vmatmul.f32.gmra.mxu0 %v1230
        %v1249 = vpop.f32.mrf.mxu0
        %v1250 = vadd.f32 0.0, %v1249
        %1251 = vdwg.mxu0
        %1253 = vrot.lane.b32.xlu0 %v1221, 32
        %v1254 = vpop.permute.xlu0 %1253
        %v1255 = vsel %vm465, %v1254, 0
        %1257 = vmatpush.msra.mxu0 0.0
        %1258 = vmatpush.msra.mxu0 0.0
        %1259 = vmatpush.msra.mxu0 0.0
        %1260 = vmatpush.msra.mxu0 0.0
        %1261 = vmatpush.msra.mxu0 0.0
        %1262 = vmatpush.msra.mxu0 0.0
        %1263 = vmatpush.msra.mxu0 0.0
        %1264 = vmatpush.msra.mxu0 0.0
        %1265 = vmatpush.msra.mxu0 0.0
        %1266 = vmatpush.msra.mxu0 0.0
        %1267 = vmatpush.msra.mxu0 0.0
        %1268 = vmatpush.msra.mxu0 0.0
        %1269 = vmatpush.msra.mxu0 %v1225
        %1270 = vmatpush.msra.mxu0 %v1224
        %1271 = vmatpush.msra.mxu0 %v1223
        %1272 = vmatpush.msra.mxu0 %v1222
        %1273 = vmatmul.f32.gmra.mxu0 %v1255
        %v1274 = vpop.f32.mrf.mxu0
        %v1275 = vadd.f32 %v1250, %v1274
        %1276 = vdwg.mxu0
        %v1277 = vld [vmem:[%s6] sm:$0x1]
        %v1279 = vperm.slane %v1277, 0
        %v1281 = vadd.f32 %v1275, %v1279
        %v1282 = vmul.f32 %v1281, %v452
        %v1283 = vxor.u32 %v1282, 2147483648
        %v1284 = vmul.f32 %v1283, 1.442695
        %v1285 = vpow.pop %v1284
        %v1286 = vadd.f32 %v1285, 1.0
        %v1287 = vrcp.pop %v1286
        %v1288 = vmul.f32 %v1286, %v1287
        %v1289 = vsub.f32 1.0, %v1288
        %v1290 = vmul.f32 %v1287, %v1289
        %v1291 = vadd.f32 %v1287, %v1290
        %vm1292 = vweird.f32 %v1286
        %vm1293 = vweird.f32 %v1287
        %vm1294 = vmor %vm1292, %vm1293
        %v1295 = vsel %vm1294, %v1287, %v1291
        %v1296 = vand.u32 2147483647, %v1286
        %vm1297 = vcmp.eq.f32.partialorder %v1296, 8.507059e+37
        %v1298 = vand.u32 %v1286, 2147483648
        %v1299 = vor.u32 1.1754944e-38, %v1298
        %v1300 = vsel %vm1297, %v1299, %v1295
        %v1301 = vmul.f32 1.0, %v1300
        %v1302 = vmul.f32 %v1301, %v452
        %v1303 = vadd.f32 %v1302, %v453
        %v1304 = vmul.f32 %v1303, %v1143
        %1306 = vrot.lane.b32.xlu0 %v1303, 64
        %v1307 = vpop.permute.xlu0 %1306
        %v1309 = vmul.f32 %v1303, %v1307
        %1311 = vrot.lane.b32.xlu0 %v1309, 32
        %v1312 = vpop.permute.xlu0 %1311
        %v1314 = vadd.f32 %v1304, %v1312
        %v1315 = vtanh.pop %v1314
        %1317 = vrot.lane.b32.xlu0 %v1315, 64
        %v1318 = vpop.permute.xlu0 %1317
        %v1320 = vmul.f32 %v1303, %v1318
        %1322 = vrot.lane.b32.xlu0 %v1320, 32
        %v1323 = vpop.permute.xlu0 %1322
        %s1325 = scalar_lea.vmem %s427, 8 [#allocation13]
        %1326 = vst.msk [vmem:[%s1325] sm:$0x3] %vm641, %v1323
        %s1327 = scalar_lea.vmem %s371, 10 [#allocation2]
        %v1328 = vld [vmem:[%s1327] sm:$0x3]
        %v1329 = vld [vmem:[#allocation8] sm:$0xff]
        %v1330 = vld [vmem:[#allocation8 + $0x8] sm:$0xff]
        %v1331 = vld [vmem:[#allocation8 + $0x10] sm:$0xff]
        %v1332 = vld [vmem:[#allocation8 + $0x18] sm:$0xff]
        %1333 = vmatpush.msra.mxu0 0.0
        %1334 = vmatpush.msra.mxu0 0.0
        %1335 = vmatpush.msra.mxu0 0.0
        %1336 = vmatpush.msra.mxu0 0.0
        %1337 = vmatpush.msra.mxu0 0.0
        %1338 = vmatpush.msra.mxu0 0.0
        %1339 = vmatpush.msra.mxu0 0.0
        %1340 = vmatpush.msra.mxu0 0.0
        %1341 = vmatpush.msra.mxu0 0.0
        %1342 = vmatpush.msra.mxu0 0.0
        %1343 = vmatpush.msra.mxu0 0.0
        %1344 = vmatpush.msra.mxu0 0.0
        %1345 = vmatpush.msra.mxu0 %v1332
        %1346 = vmatpush.msra.mxu0 %v1331
        %1347 = vmatpush.msra.mxu0 %v1330
        %1348 = vmatpush.msra.mxu0 %v1329
        %1349 = vmatmul.f32.gmra.mxu0 %v1255
        %v1350 = vpop.f32.mrf.mxu0
        %v1351 = vadd.f32 0.0, %v1350
        %1352 = vdwg.mxu0
        %v1353 = vadd.f32 %v1328, %v1351
        %v1354 = vmul.f32 %v1353, %v452
        %v1355 = vxor.u32 %v1354, 2147483648
        %v1356 = vmul.f32 %v1355, 1.442695
        %v1357 = vpow.pop %v1356
        %v1358 = vadd.f32 %v1357, 1.0
        %v1359 = vrcp.pop %v1358
        %v1360 = vmul.f32 %v1358, %v1359
        %v1361 = vsub.f32 1.0, %v1360
        %v1362 = vmul.f32 %v1359, %v1361
        %v1363 = vadd.f32 %v1359, %v1362
        %vm1364 = vweird.f32 %v1358
        %vm1365 = vweird.f32 %v1359
        %vm1366 = vmor %vm1364, %vm1365
        %v1367 = vsel %vm1366, %v1359, %v1363
        %v1368 = vand.u32 2147483647, %v1358
        %vm1369 = vcmp.eq.f32.partialorder %v1368, 8.507059e+37
        %v1370 = vand.u32 %v1358, 2147483648
        %v1371 = vor.u32 1.1754944e-38, %v1370
        %v1372 = vsel %vm1369, %v1371, %v1367
        %v1373 = vmul.f32 1.0, %v1372
        %v1374 = vmul.f32 %v1373, %v452
        %v1375 = vadd.f32 %v1374, %v453
        %v1376 = vmul.f32 %v1375, %v1215
        %1378 = vrot.lane.b32.xlu0 %v1375, 64
        %v1379 = vpop.permute.xlu0 %1378
        %v1381 = vmul.f32 %v1375, %v1379
        %1383 = vrot.lane.b32.xlu0 %v1381, 32
        %v1384 = vpop.permute.xlu0 %1383
        %v1386 = vadd.f32 %v1376, %v1384
        %v1387 = vtanh.pop %v1386
        %1389 = vrot.lane.b32.xlu0 %v1387, 64
        %v1390 = vpop.permute.xlu0 %1389
        %v1392 = vmul.f32 %v1375, %v1390
        %v1393 = vld [vmem:[#allocation10] sm:$0xff]
        %v1394 = vld [vmem:[#allocation10 + $0x8] sm:$0xff]
        %v1395 = vld [vmem:[#allocation10 + $0x10] sm:$0xff]
        %v1396 = vld [vmem:[#allocation10 + $0x18] sm:$0xff]
        %v1397 = vld [vmem:[#allocation11] sm:$0xff]
        %v1398 = vld [vmem:[#allocation11 + $0x8] sm:$0xff]
        %v1399 = vld [vmem:[#allocation11 + $0x10] sm:$0xff]
        %v1400 = vld [vmem:[#allocation11 + $0x18] sm:$0xff]
        %v1401 = vsel %vm465, %v1323, 0
        %1403 = vmatpush.msra.mxu0 0.0
        %1404 = vmatpush.msra.mxu0 0.0
        %1405 = vmatpush.msra.mxu0 0.0
        %1406 = vmatpush.msra.mxu0 0.0
        %1407 = vmatpush.msra.mxu0 0.0
        %1408 = vmatpush.msra.mxu0 0.0
        %1409 = vmatpush.msra.mxu0 0.0
        %1410 = vmatpush.msra.mxu0 0.0
        %1411 = vmatpush.msra.mxu0 0.0
        %1412 = vmatpush.msra.mxu0 0.0
        %1413 = vmatpush.msra.mxu0 0.0
        %1414 = vmatpush.msra.mxu0 0.0
        %1415 = vmatpush.msra.mxu0 %v1400
        %1416 = vmatpush.msra.mxu0 %v1399
        %1417 = vmatpush.msra.mxu0 %v1398
        %1418 = vmatpush.msra.mxu0 %v1397
        %1419 = vmatmul.f32.gmra.mxu0 %v1401
        %v1420 = vpop.f32.mrf.mxu0
        %v1421 = vadd.f32 0.0, %v1420
        %1422 = vdwg.mxu0
        %1424 = vrot.lane.b32.xlu0 %v1392, 32
        %v1425 = vpop.permute.xlu0 %1424
        %v1426 = vsel %vm465, %v1425, 0
        %1428 = vmatpush.msra.mxu0 0.0
        %1429 = vmatpush.msra.mxu0 0.0
        %1430 = vmatpush.msra.mxu0 0.0
        %1431 = vmatpush.msra.mxu0 0.0
        %1432 = vmatpush.msra.mxu0 0.0
        %1433 = vmatpush.msra.mxu0 0.0
        %1434 = vmatpush.msra.mxu0 0.0
        %1435 = vmatpush.msra.mxu0 0.0
        %1436 = vmatpush.msra.mxu0 0.0
        %1437 = vmatpush.msra.mxu0 0.0
        %1438 = vmatpush.msra.mxu0 0.0
        %1439 = vmatpush.msra.mxu0 0.0
        %1440 = vmatpush.msra.mxu0 %v1396
        %1441 = vmatpush.msra.mxu0 %v1395
        %1442 = vmatpush.msra.mxu0 %v1394
        %1443 = vmatpush.msra.mxu0 %v1393
        %1444 = vmatmul.f32.gmra.mxu0 %v1426
        %v1445 = vpop.f32.mrf.mxu0
        %v1446 = vadd.f32 %v1421, %v1445
        %1447 = vdwg.mxu0
        %v1448 = vld [vmem:[%s6] sm:$0x1]
        %v1450 = vperm.slane %v1448, 0
        %v1452 = vadd.f32 %v1446, %v1450
        %v1453 = vmul.f32 %v1452, %v452
        %v1454 = vxor.u32 %v1453, 2147483648
        %v1455 = vmul.f32 %v1454, 1.442695
        %v1456 = vpow.pop %v1455
        %v1457 = vadd.f32 %v1456, 1.0
        %v1458 = vrcp.pop %v1457
        %v1459 = vmul.f32 %v1457, %v1458
        %v1460 = vsub.f32 1.0, %v1459
        %v1461 = vmul.f32 %v1458, %v1460
        %v1462 = vadd.f32 %v1458, %v1461
        %vm1463 = vweird.f32 %v1457
        %vm1464 = vweird.f32 %v1458
        %vm1465 = vmor %vm1463, %vm1464
        %v1466 = vsel %vm1465, %v1458, %v1462
        %v1467 = vand.u32 2147483647, %v1457
        %vm1468 = vcmp.eq.f32.partialorder %v1467, 8.507059e+37
        %v1469 = vand.u32 %v1457, 2147483648
        %v1470 = vor.u32 1.1754944e-38, %v1469
        %v1471 = vsel %vm1468, %v1470, %v1466
        %v1472 = vmul.f32 1.0, %v1471
        %v1473 = vmul.f32 %v1472, %v452
        %v1474 = vadd.f32 %v1473, %v453
        %v1475 = vmul.f32 %v1474, %v1314
        %1477 = vrot.lane.b32.xlu0 %v1474, 64
        %v1478 = vpop.permute.xlu0 %1477
        %v1480 = vmul.f32 %v1474, %v1478
        %1482 = vrot.lane.b32.xlu0 %v1480, 32
        %v1483 = vpop.permute.xlu0 %1482
        %v1485 = vadd.f32 %v1475, %v1483
        %v1486 = vtanh.pop %v1485
        %1488 = vrot.lane.b32.xlu0 %v1486, 64
        %v1489 = vpop.permute.xlu0 %1488
        %v1491 = vmul.f32 %v1474, %v1489
        %1493 = vrot.lane.b32.xlu0 %v1491, 32
        %v1494 = vpop.permute.xlu0 %1493
        %s1496 = scalar_lea.vmem %s427, 10 [#allocation13]
        %1497 = vst.msk [vmem:[%s1496] sm:$0x3] %vm641, %v1494
        %s1498 = scalar_lea.vmem %s371, 12 [#allocation2]
        %v1499 = vld [vmem:[%s1498] sm:$0x3]
        %v1500 = vld [vmem:[#allocation8] sm:$0xff]
        %v1501 = vld [vmem:[#allocation8 + $0x8] sm:$0xff]
        %v1502 = vld [vmem:[#allocation8 + $0x10] sm:$0xff]
        %v1503 = vld [vmem:[#allocation8 + $0x18] sm:$0xff]
        %1504 = vmatpush.msra.mxu0 0.0
        %1505 = vmatpush.msra.mxu0 0.0
        %1506 = vmatpush.msra.mxu0 0.0
        %1507 = vmatpush.msra.mxu0 0.0
        %1508 = vmatpush.msra.mxu0 0.0
        %1509 = vmatpush.msra.mxu0 0.0
        %1510 = vmatpush.msra.mxu0 0.0
        %1511 = vmatpush.msra.mxu0 0.0
        %1512 = vmatpush.msra.mxu0 0.0
        %1513 = vmatpush.msra.mxu0 0.0
        %1514 = vmatpush.msra.mxu0 0.0
        %1515 = vmatpush.msra.mxu0 0.0
        %1516 = vmatpush.msra.mxu0 %v1503
        %1517 = vmatpush.msra.mxu0 %v1502
        %1518 = vmatpush.msra.mxu0 %v1501
        %1519 = vmatpush.msra.mxu0 %v1500
        %1520 = vmatmul.f32.gmra.mxu0 %v1426
        %v1521 = vpop.f32.mrf.mxu0
        %v1522 = vadd.f32 0.0, %v1521
        %1523 = vdwg.mxu0
        %v1524 = vadd.f32 %v1499, %v1522
        %v1525 = vmul.f32 %v1524, %v452
        %v1526 = vxor.u32 %v1525, 2147483648
        %v1527 = vmul.f32 %v1526, 1.442695
        %v1528 = vpow.pop %v1527
        %v1529 = vadd.f32 %v1528, 1.0
        %v1530 = vrcp.pop %v1529
        %v1531 = vmul.f32 %v1529, %v1530
        %v1532 = vsub.f32 1.0, %v1531
        %v1533 = vmul.f32 %v1530, %v1532
        %v1534 = vadd.f32 %v1530, %v1533
        %vm1535 = vweird.f32 %v1529
        %vm1536 = vweird.f32 %v1530
        %vm1537 = vmor %vm1535, %vm1536
        %v1538 = vsel %vm1537, %v1530, %v1534
        %v1539 = vand.u32 2147483647, %v1529
        %vm1540 = vcmp.eq.f32.partialorder %v1539, 8.507059e+37
        %v1541 = vand.u32 %v1529, 2147483648
        %v1542 = vor.u32 1.1754944e-38, %v1541
        %v1543 = vsel %vm1540, %v1542, %v1538
        %v1544 = vmul.f32 1.0, %v1543
        %v1545 = vmul.f32 %v1544, %v452
        %v1546 = vadd.f32 %v1545, %v453
        %v1547 = vmul.f32 %v1546, %v1386
        %1549 = vrot.lane.b32.xlu0 %v1546, 64
        %v1550 = vpop.permute.xlu0 %1549
        %v1552 = vmul.f32 %v1546, %v1550
        %1554 = vrot.lane.b32.xlu0 %v1552, 32
        %v1555 = vpop.permute.xlu0 %1554
        %v1557 = vadd.f32 %v1547, %v1555
        %v1558 = vtanh.pop %v1557
        %1560 = vrot.lane.b32.xlu0 %v1558, 64
        %v1561 = vpop.permute.xlu0 %1560
        %v1563 = vmul.f32 %v1546, %v1561
        %v1564 = vld [vmem:[#allocation10] sm:$0xff]
        %v1565 = vld [vmem:[#allocation10 + $0x8] sm:$0xff]
        %v1566 = vld [vmem:[#allocation10 + $0x10] sm:$0xff]
        %v1567 = vld [vmem:[#allocation10 + $0x18] sm:$0xff]
        %v1568 = vld [vmem:[#allocation11] sm:$0xff]
        %v1569 = vld [vmem:[#allocation11 + $0x8] sm:$0xff]
        %v1570 = vld [vmem:[#allocation11 + $0x10] sm:$0xff]
        %v1571 = vld [vmem:[#allocation11 + $0x18] sm:$0xff]
        %v1572 = vsel %vm465, %v1494, 0
        %1574 = vmatpush.msra.mxu0 0.0
        %1575 = vmatpush.msra.mxu0 0.0
        %1576 = vmatpush.msra.mxu0 0.0
        %1577 = vmatpush.msra.mxu0 0.0
        %1578 = vmatpush.msra.mxu0 0.0
        %1579 = vmatpush.msra.mxu0 0.0
        %1580 = vmatpush.msra.mxu0 0.0
        %1581 = vmatpush.msra.mxu0 0.0
        %1582 = vmatpush.msra.mxu0 0.0
        %1583 = vmatpush.msra.mxu0 0.0
        %1584 = vmatpush.msra.mxu0 0.0
        %1585 = vmatpush.msra.mxu0 0.0
        %1586 = vmatpush.msra.mxu0 %v1571
        %1587 = vmatpush.msra.mxu0 %v1570
        %1588 = vmatpush.msra.mxu0 %v1569
        %1589 = vmatpush.msra.mxu0 %v1568
        %1590 = vmatmul.f32.gmra.mxu0 %v1572
        %v1591 = vpop.f32.mrf.mxu0
        %v1592 = vadd.f32 0.0, %v1591
        %1593 = vdwg.mxu0
        %1595 = vrot.lane.b32.xlu0 %v1563, 32
        %v1596 = vpop.permute.xlu0 %1595
        %v1597 = vsel %vm465, %v1596, 0
        %1599 = vmatpush.msra.mxu0 0.0
        %1600 = vmatpush.msra.mxu0 0.0
        %1601 = vmatpush.msra.mxu0 0.0
        %1602 = vmatpush.msra.mxu0 0.0
        %1603 = vmatpush.msra.mxu0 0.0
        %1604 = vmatpush.msra.mxu0 0.0
        %1605 = vmatpush.msra.mxu0 0.0
        %1606 = vmatpush.msra.mxu0 0.0
        %1607 = vmatpush.msra.mxu0 0.0
        %1608 = vmatpush.msra.mxu0 0.0
        %1609 = vmatpush.msra.mxu0 0.0
        %1610 = vmatpush.msra.mxu0 0.0
        %1611 = vmatpush.msra.mxu0 %v1567
        %1612 = vmatpush.msra.mxu0 %v1566
        %1613 = vmatpush.msra.mxu0 %v1565
        %1614 = vmatpush.msra.mxu0 %v1564
        %1615 = vmatmul.f32.gmra.mxu0 %v1597
        %v1616 = vpop.f32.mrf.mxu0
        %v1617 = vadd.f32 %v1592, %v1616
        %1618 = vdwg.mxu0
        %v1619 = vld [vmem:[%s6] sm:$0x1]
        %v1621 = vperm.slane %v1619, 0
        %v1623 = vadd.f32 %v1617, %v1621
        %v1624 = vmul.f32 %v1623, %v452
        %v1625 = vxor.u32 %v1624, 2147483648
        %v1626 = vmul.f32 %v1625, 1.442695
        %v1627 = vpow.pop %v1626
        %v1628 = vadd.f32 %v1627, 1.0
        %v1629 = vrcp.pop %v1628
        %v1630 = vmul.f32 %v1628, %v1629
        %v1631 = vsub.f32 1.0, %v1630
        %v1632 = vmul.f32 %v1629, %v1631
        %v1633 = vadd.f32 %v1629, %v1632
        %vm1634 = vweird.f32 %v1628
        %vm1635 = vweird.f32 %v1629
        %vm1636 = vmor %vm1634, %vm1635
        %v1637 = vsel %vm1636, %v1629, %v1633
        %v1638 = vand.u32 2147483647, %v1628
        %vm1639 = vcmp.eq.f32.partialorder %v1638, 8.507059e+37
        %v1640 = vand.u32 %v1628, 2147483648
        %v1641 = vor.u32 1.1754944e-38, %v1640
        %v1642 = vsel %vm1639, %v1641, %v1637
        %v1643 = vmul.f32 1.0, %v1642
        %v1644 = vmul.f32 %v1643, %v452
        %v1645 = vadd.f32 %v1644, %v453
        %v1646 = vmul.f32 %v1645, %v1485
        %1648 = vrot.lane.b32.xlu0 %v1645, 64
        %v1649 = vpop.permute.xlu0 %1648
        %v1651 = vmul.f32 %v1645, %v1649
        %1653 = vrot.lane.b32.xlu0 %v1651, 32
        %v1654 = vpop.permute.xlu0 %1653
        %v1656 = vadd.f32 %v1646, %v1654
        %v1657 = vtanh.pop %v1656
        %1659 = vrot.lane.b32.xlu0 %v1657, 64
        %v1660 = vpop.permute.xlu0 %1659
        %v1662 = vmul.f32 %v1645, %v1660
        %1664 = vrot.lane.b32.xlu0 %v1662, 32
        %v1665 = vpop.permute.xlu0 %1664
        %s1667 = scalar_lea.vmem %s427, 12 [#allocation13]
        %1668 = vst.msk [vmem:[%s1667] sm:$0x3] %vm641, %v1665
        %s1669 = scalar_lea.vmem %s371, 14 [#allocation2]
        %v1670 = vld [vmem:[%s1669] sm:$0x3]
        %v1671 = vld [vmem:[#allocation8] sm:$0xff]
        %v1672 = vld [vmem:[#allocation8 + $0x8] sm:$0xff]
        %v1673 = vld [vmem:[#allocation8 + $0x10] sm:$0xff]
        %v1674 = vld [vmem:[#allocation8 + $0x18] sm:$0xff]
        %1675 = vmatpush.msra.mxu0 0.0
        %1676 = vmatpush.msra.mxu0 0.0
        %1677 = vmatpush.msra.mxu0 0.0
        %1678 = vmatpush.msra.mxu0 0.0
        %1679 = vmatpush.msra.mxu0 0.0
        %1680 = vmatpush.msra.mxu0 0.0
        %1681 = vmatpush.msra.mxu0 0.0
        %1682 = vmatpush.msra.mxu0 0.0
        %1683 = vmatpush.msra.mxu0 0.0
        %1684 = vmatpush.msra.mxu0 0.0
        %1685 = vmatpush.msra.mxu0 0.0
        %1686 = vmatpush.msra.mxu0 0.0
        %1687 = vmatpush.msra.mxu0 %v1674
        %1688 = vmatpush.msra.mxu0 %v1673
        %1689 = vmatpush.msra.mxu0 %v1672
        %1690 = vmatpush.msra.mxu0 %v1671
        %1691 = vmatmul.f32.gmra.mxu0 %v1597
        %v1692 = vpop.f32.mrf.mxu0
        %v1693 = vadd.f32 0.0, %v1692
        %1694 = vdwg.mxu0
        %v1695 = vadd.f32 %v1670, %v1693
        %v1696 = vmul.f32 %v1695, %v452
        %v1697 = vxor.u32 %v1696, 2147483648
        %v1698 = vmul.f32 %v1697, 1.442695
        %v1699 = vpow.pop %v1698
        %v1700 = vadd.f32 %v1699, 1.0
        %v1701 = vrcp.pop %v1700
        %v1702 = vmul.f32 %v1700, %v1701
        %v1703 = vsub.f32 1.0, %v1702
        %v1704 = vmul.f32 %v1701, %v1703
        %v1705 = vadd.f32 %v1701, %v1704
        %vm1706 = vweird.f32 %v1700
        %vm1707 = vweird.f32 %v1701
        %vm1708 = vmor %vm1706, %vm1707
        %v1709 = vsel %vm1708, %v1701, %v1705
        %v1710 = vand.u32 2147483647, %v1700
        %vm1711 = vcmp.eq.f32.partialorder %v1710, 8.507059e+37
        %v1712 = vand.u32 %v1700, 2147483648
        %v1713 = vor.u32 1.1754944e-38, %v1712
        %v1714 = vsel %vm1711, %v1713, %v1709
        %v1715 = vmul.f32 1.0, %v1714
        %v1716 = vmul.f32 %v1715, %v452
        %v1717 = vadd.f32 %v1716, %v453
        %v1718 = vmul.f32 %v1717, %v1557
        %1720 = vrot.lane.b32.xlu0 %v1717, 64
        %v1721 = vpop.permute.xlu0 %1720
        %v1723 = vmul.f32 %v1717, %v1721
        %1725 = vrot.lane.b32.xlu0 %v1723, 32
        %v1726 = vpop.permute.xlu0 %1725
        %v1728 = vadd.f32 %v1718, %v1726
        %v1729 = vtanh.pop %v1728
        %1731 = vrot.lane.b32.xlu0 %v1729, 64
        %v1732 = vpop.permute.xlu0 %1731
        %v1734 = vmul.f32 %v1717, %v1732
        %v1735 = vld [vmem:[#allocation10] sm:$0xff]
        %v1736 = vld [vmem:[#allocation10 + $0x8] sm:$0xff]
        %v1737 = vld [vmem:[#allocation10 + $0x10] sm:$0xff]
        %v1738 = vld [vmem:[#allocation10 + $0x18] sm:$0xff]
        %v1739 = vld [vmem:[#allocation11] sm:$0xff]
        %v1740 = vld [vmem:[#allocation11 + $0x8] sm:$0xff]
        %v1741 = vld [vmem:[#allocation11 + $0x10] sm:$0xff]
        %v1742 = vld [vmem:[#allocation11 + $0x18] sm:$0xff]
        %v1743 = vsel %vm465, %v1665, 0
        %1745 = vmatpush.msra.mxu0 0.0
        %1746 = vmatpush.msra.mxu0 0.0
        %1747 = vmatpush.msra.mxu0 0.0
        %1748 = vmatpush.msra.mxu0 0.0
        %1749 = vmatpush.msra.mxu0 0.0
        %1750 = vmatpush.msra.mxu0 0.0
        %1751 = vmatpush.msra.mxu0 0.0
        %1752 = vmatpush.msra.mxu0 0.0
        %1753 = vmatpush.msra.mxu0 0.0
        %1754 = vmatpush.msra.mxu0 0.0
        %1755 = vmatpush.msra.mxu0 0.0
        %1756 = vmatpush.msra.mxu0 0.0
        %1757 = vmatpush.msra.mxu0 %v1742
        %1758 = vmatpush.msra.mxu0 %v1741
        %1759 = vmatpush.msra.mxu0 %v1740
        %1760 = vmatpush.msra.mxu0 %v1739
        %1761 = vmatmul.f32.gmra.mxu0 %v1743
        %v1762 = vpop.f32.mrf.mxu0
        %v1763 = vadd.f32 0.0, %v1762
        %1764 = vdwg.mxu0
        %1766 = vrot.lane.b32.xlu0 %v1734, 32
        %v1767 = vpop.permute.xlu0 %1766
        %v1768 = vsel %vm465, %v1767, 0
        %1770 = vmatpush.msra.mxu0 0.0
        %1771 = vmatpush.msra.mxu0 0.0
        %1772 = vmatpush.msra.mxu0 0.0
        %1773 = vmatpush.msra.mxu0 0.0
        %1774 = vmatpush.msra.mxu0 0.0
        %1775 = vmatpush.msra.mxu0 0.0
        %1776 = vmatpush.msra.mxu0 0.0
        %1777 = vmatpush.msra.mxu0 0.0
        %1778 = vmatpush.msra.mxu0 0.0
        %1779 = vmatpush.msra.mxu0 0.0
        %1780 = vmatpush.msra.mxu0 0.0
        %1781 = vmatpush.msra.mxu0 0.0
        %1782 = vmatpush.msra.mxu0 %v1738
        %1783 = vmatpush.msra.mxu0 %v1737
        %1784 = vmatpush.msra.mxu0 %v1736
        %1785 = vmatpush.msra.mxu0 %v1735
        %1786 = vmatmul.f32.gmra.mxu0 %v1768
        %v1787 = vpop.f32.mrf.mxu0
        %v1788 = vadd.f32 %v1763, %v1787
        %1789 = vdwg.mxu0
        %v1790 = vld [vmem:[%s6] sm:$0x1]
        %v1792 = vperm.slane %v1790, 0
        %v1794 = vadd.f32 %v1788, %v1792
        %v1795 = vmul.f32 %v1794, %v452
        %v1796 = vxor.u32 %v1795, 2147483648
        %v1797 = vmul.f32 %v1796, 1.442695
        %v1798 = vpow.pop %v1797
        %v1799 = vadd.f32 %v1798, 1.0
        %v1800 = vrcp.pop %v1799
        %v1801 = vmul.f32 %v1799, %v1800
        %v1802 = vsub.f32 1.0, %v1801
        %v1803 = vmul.f32 %v1800, %v1802
        %v1804 = vadd.f32 %v1800, %v1803
        %vm1805 = vweird.f32 %v1799
        %vm1806 = vweird.f32 %v1800
        %vm1807 = vmor %vm1805, %vm1806
        %v1808 = vsel %vm1807, %v1800, %v1804
        %v1809 = vand.u32 2147483647, %v1799
        %vm1810 = vcmp.eq.f32.partialorder %v1809, 8.507059e+37
        %v1811 = vand.u32 %v1799, 2147483648
        %v1812 = vor.u32 1.1754944e-38, %v1811
        %v1813 = vsel %vm1810, %v1812, %v1808
        %v1814 = vmul.f32 1.0, %v1813
        %v1815 = vmul.f32 %v1814, %v452
        %v1816 = vadd.f32 %v1815, %v453
        %v1817 = vmul.f32 %v1816, %v1656
        %1819 = vrot.lane.b32.xlu0 %v1816, 64
        %v1820 = vpop.permute.xlu0 %1819
        %v1822 = vmul.f32 %v1816, %v1820
        %1824 = vrot.lane.b32.xlu0 %v1822, 32
        %v1825 = vpop.permute.xlu0 %1824
        %v1827 = vadd.f32 %v1817, %v1825
        %v1828 = vtanh.pop %v1827
        %1830 = vrot.lane.b32.xlu0 %v1828, 64
        %v1831 = vpop.permute.xlu0 %1830
        %v1833 = vmul.f32 %v1816, %v1831
        %1835 = vrot.lane.b32.xlu0 %v1833, 32
        %v1836 = vpop.permute.xlu0 %1835
        %s1838 = scalar_lea.vmem %s427, 14 [#allocation13]
        %1839 = vst.msk [vmem:[%s1838] sm:$0x3] %vm641, %v1836
        %s1840 = scalar_lea.vmem %s371, 16 [#allocation2]
        %v1841 = vld [vmem:[%s1840] sm:$0x3]
        %v1842 = vld [vmem:[#allocation8] sm:$0xff]
        %v1843 = vld [vmem:[#allocation8 + $0x8] sm:$0xff]
        %v1844 = vld [vmem:[#allocation8 + $0x10] sm:$0xff]
        %v1845 = vld [vmem:[#allocation8 + $0x18] sm:$0xff]
        %1846 = vmatpush.msra.mxu0 0.0
        %1847 = vmatpush.msra.mxu0 0.0
        %1848 = vmatpush.msra.mxu0 0.0
        %1849 = vmatpush.msra.mxu0 0.0
        %1850 = vmatpush.msra.mxu0 0.0
        %1851 = vmatpush.msra.mxu0 0.0
        %1852 = vmatpush.msra.mxu0 0.0
        %1853 = vmatpush.msra.mxu0 0.0
        %1854 = vmatpush.msra.mxu0 0.0
        %1855 = vmatpush.msra.mxu0 0.0
        %1856 = vmatpush.msra.mxu0 0.0
        %1857 = vmatpush.msra.mxu0 0.0
        %1858 = vmatpush.msra.mxu0 %v1845
        %1859 = vmatpush.msra.mxu0 %v1844
        %1860 = vmatpush.msra.mxu0 %v1843
        %1861 = vmatpush.msra.mxu0 %v1842
        %1862 = vmatmul.f32.gmra.mxu0 %v1768
        %v1863 = vpop.f32.mrf.mxu0
        %v1864 = vadd.f32 0.0, %v1863
        %1865 = vdwg.mxu0
        %v1866 = vadd.f32 %v1841, %v1864
        %v1867 = vmul.f32 %v1866, %v452
        %v1868 = vxor.u32 %v1867, 2147483648
        %v1869 = vmul.f32 %v1868, 1.442695
        %v1870 = vpow.pop %v1869
        %v1871 = vadd.f32 %v1870, 1.0
        %v1872 = vrcp.pop %v1871
        %v1873 = vmul.f32 %v1871, %v1872
        %v1874 = vsub.f32 1.0, %v1873
        %v1875 = vmul.f32 %v1872, %v1874
        %v1876 = vadd.f32 %v1872, %v1875
        %vm1877 = vweird.f32 %v1871
        %vm1878 = vweird.f32 %v1872
        %vm1879 = vmor %vm1877, %vm1878
        %v1880 = vsel %vm1879, %v1872, %v1876
        %v1881 = vand.u32 2147483647, %v1871
        %vm1882 = vcmp.eq.f32.partialorder %v1881, 8.507059e+37
        %v1883 = vand.u32 %v1871, 2147483648
        %v1884 = vor.u32 1.1754944e-38, %v1883
        %v1885 = vsel %vm1882, %v1884, %v1880
        %v1886 = vmul.f32 1.0, %v1885
        %v1887 = vmul.f32 %v1886, %v452
        %v1888 = vadd.f32 %v1887, %v453
        %v1889 = vmul.f32 %v1888, %v1728
        %1891 = vrot.lane.b32.xlu0 %v1888, 64
        %v1892 = vpop.permute.xlu0 %1891
        %v1894 = vmul.f32 %v1888, %v1892
        %1896 = vrot.lane.b32.xlu0 %v1894, 32
        %v1897 = vpop.permute.xlu0 %1896
        %v1899 = vadd.f32 %v1889, %v1897
        %v1900 = vtanh.pop %v1899
        %1902 = vrot.lane.b32.xlu0 %v1900, 64
        %v1903 = vpop.permute.xlu0 %1902
        %v1905 = vmul.f32 %v1888, %v1903
        %v1906 = vld [vmem:[#allocation10] sm:$0xff]
        %v1907 = vld [vmem:[#allocation10 + $0x8] sm:$0xff]
        %v1908 = vld [vmem:[#allocation10 + $0x10] sm:$0xff]
        %v1909 = vld [vmem:[#allocation10 + $0x18] sm:$0xff]
        %v1910 = vld [vmem:[#allocation11] sm:$0xff]
        %v1911 = vld [vmem:[#allocation11 + $0x8] sm:$0xff]
        %v1912 = vld [vmem:[#allocation11 + $0x10] sm:$0xff]
        %v1913 = vld [vmem:[#allocation11 + $0x18] sm:$0xff]
        %v1914 = vsel %vm465, %v1836, 0
        %1916 = vmatpush.msra.mxu0 0.0
        %1917 = vmatpush.msra.mxu0 0.0
        %1918 = vmatpush.msra.mxu0 0.0
        %1919 = vmatpush.msra.mxu0 0.0
        %1920 = vmatpush.msra.mxu0 0.0
        %1921 = vmatpush.msra.mxu0 0.0
        %1922 = vmatpush.msra.mxu0 0.0
        %1923 = vmatpush.msra.mxu0 0.0
        %1924 = vmatpush.msra.mxu0 0.0
        %1925 = vmatpush.msra.mxu0 0.0
        %1926 = vmatpush.msra.mxu0 0.0
        %1927 = vmatpush.msra.mxu0 0.0
        %1928 = vmatpush.msra.mxu0 %v1913
        %1929 = vmatpush.msra.mxu0 %v1912
        %1930 = vmatpush.msra.mxu0 %v1911
        %1931 = vmatpush.msra.mxu0 %v1910
        %1932 = vmatmul.f32.gmra.mxu0 %v1914
        %v1933 = vpop.f32.mrf.mxu0
        %v1934 = vadd.f32 0.0, %v1933
        %1935 = vdwg.mxu0
        %1937 = vrot.lane.b32.xlu0 %v1905, 32
        %v1938 = vpop.permute.xlu0 %1937
        %v1939 = vsel %vm465, %v1938, 0
        %1941 = vmatpush.msra.mxu0 0.0
        %1942 = vmatpush.msra.mxu0 0.0
        %1943 = vmatpush.msra.mxu0 0.0
        %1944 = vmatpush.msra.mxu0 0.0
        %1945 = vmatpush.msra.mxu0 0.0
        %1946 = vmatpush.msra.mxu0 0.0
        %1947 = vmatpush.msra.mxu0 0.0
        %1948 = vmatpush.msra.mxu0 0.0
        %1949 = vmatpush.msra.mxu0 0.0
        %1950 = vmatpush.msra.mxu0 0.0
        %1951 = vmatpush.msra.mxu0 0.0
        %1952 = vmatpush.msra.mxu0 0.0
        %1953 = vmatpush.msra.mxu0 %v1909
        %1954 = vmatpush.msra.mxu0 %v1908
        %1955 = vmatpush.msra.mxu0 %v1907
        %1956 = vmatpush.msra.mxu0 %v1906
        %1957 = vmatmul.f32.gmra.mxu0 %v1939
        %v1958 = vpop.f32.mrf.mxu0
        %v1959 = vadd.f32 %v1934, %v1958
        %1960 = vdwg.mxu0
        %v1961 = vld [vmem:[%s6] sm:$0x1]
        %v1963 = vperm.slane %v1961, 0
        %v1965 = vadd.f32 %v1959, %v1963
        %v1966 = vmul.f32 %v1965, %v452
        %v1967 = vxor.u32 %v1966, 2147483648
        %v1968 = vmul.f32 %v1967, 1.442695
        %v1969 = vpow.pop %v1968
        %v1970 = vadd.f32 %v1969, 1.0
        %v1971 = vrcp.pop %v1970
        %v1972 = vmul.f32 %v1970, %v1971
        %v1973 = vsub.f32 1.0, %v1972
        %v1974 = vmul.f32 %v1971, %v1973
        %v1975 = vadd.f32 %v1971, %v1974
        %vm1976 = vweird.f32 %v1970
        %vm1977 = vweird.f32 %v1971
        %vm1978 = vmor %vm1976, %vm1977
        %v1979 = vsel %vm1978, %v1971, %v1975
        %v1980 = vand.u32 2147483647, %v1970
        %vm1981 = vcmp.eq.f32.partialorder %v1980, 8.507059e+37
        %v1982 = vand.u32 %v1970, 2147483648
        %v1983 = vor.u32 1.1754944e-38, %v1982
        %v1984 = vsel %vm1981, %v1983, %v1979
        %v1985 = vmul.f32 1.0, %v1984
        %v1986 = vmul.f32 %v1985, %v452
        %v1987 = vadd.f32 %v1986, %v453
        %v1988 = vmul.f32 %v1987, %v1827
        %1990 = vrot.lane.b32.xlu0 %v1987, 64
        %v1991 = vpop.permute.xlu0 %1990
        %v1993 = vmul.f32 %v1987, %v1991
        %1995 = vrot.lane.b32.xlu0 %v1993, 32
        %v1996 = vpop.permute.xlu0 %1995
        %v1998 = vadd.f32 %v1988, %v1996
        %v1999 = vtanh.pop %v1998
        %2001 = vrot.lane.b32.xlu0 %v1999, 64
        %v2002 = vpop.permute.xlu0 %2001
        %v2004 = vmul.f32 %v1987, %v2002
        %2006 = vrot.lane.b32.xlu0 %v2004, 32
        %v2007 = vpop.permute.xlu0 %2006
        %s2009 = scalar_lea.vmem %s427, 16 [#allocation13]
        %2010 = vst.msk [vmem:[%s2009] sm:$0x3] %vm641, %v2007
        %s2011 = scalar_lea.vmem %s371, 18 [#allocation2]
        %v2012 = vld [vmem:[%s2011] sm:$0x3]
        %v2013 = vld [vmem:[#allocation8] sm:$0xff]
        %v2014 = vld [vmem:[#allocation8 + $0x8] sm:$0xff]
        %v2015 = vld [vmem:[#allocation8 + $0x10] sm:$0xff]
        %v2016 = vld [vmem:[#allocation8 + $0x18] sm:$0xff]
        %2017 = vmatpush.msra.mxu0 0.0
        %2018 = vmatpush.msra.mxu0 0.0
        %2019 = vmatpush.msra.mxu0 0.0
        %2020 = vmatpush.msra.mxu0 0.0
        %2021 = vmatpush.msra.mxu0 0.0
        %2022 = vmatpush.msra.mxu0 0.0
        %2023 = vmatpush.msra.mxu0 0.0
        %2024 = vmatpush.msra.mxu0 0.0
        %2025 = vmatpush.msra.mxu0 0.0
        %2026 = vmatpush.msra.mxu0 0.0
        %2027 = vmatpush.msra.mxu0 0.0
        %2028 = vmatpush.msra.mxu0 0.0
        %2029 = vmatpush.msra.mxu0 %v2016
        %2030 = vmatpush.msra.mxu0 %v2015
        %2031 = vmatpush.msra.mxu0 %v2014
        %2032 = vmatpush.msra.mxu0 %v2013
        %2033 = vmatmul.f32.gmra.mxu0 %v1939
        %v2034 = vpop.f32.mrf.mxu0
        %v2035 = vadd.f32 0.0, %v2034
        %2036 = vdwg.mxu0
        %v2037 = vadd.f32 %v2012, %v2035
        %v2038 = vmul.f32 %v2037, %v452
        %v2039 = vxor.u32 %v2038, 2147483648
        %v2040 = vmul.f32 %v2039, 1.442695
        %v2041 = vpow.pop %v2040
        %v2042 = vadd.f32 %v2041, 1.0
        %v2043 = vrcp.pop %v2042
        %v2044 = vmul.f32 %v2042, %v2043
        %v2045 = vsub.f32 1.0, %v2044
        %v2046 = vmul.f32 %v2043, %v2045
        %v2047 = vadd.f32 %v2043, %v2046
        %vm2048 = vweird.f32 %v2042
        %vm2049 = vweird.f32 %v2043
        %vm2050 = vmor %vm2048, %vm2049
        %v2051 = vsel %vm2050, %v2043, %v2047
        %v2052 = vand.u32 2147483647, %v2042
        %vm2053 = vcmp.eq.f32.partialorder %v2052, 8.507059e+37
        %v2054 = vand.u32 %v2042, 2147483648
        %v2055 = vor.u32 1.1754944e-38, %v2054
        %v2056 = vsel %vm2053, %v2055, %v2051
        %v2057 = vmul.f32 1.0, %v2056
        %v2058 = vmul.f32 %v2057, %v452
        %v2059 = vadd.f32 %v2058, %v453
        %v2060 = vmul.f32 %v2059, %v1899
        %2062 = vrot.lane.b32.xlu0 %v2059, 64
        %v2063 = vpop.permute.xlu0 %2062
        %v2065 = vmul.f32 %v2059, %v2063
        %2067 = vrot.lane.b32.xlu0 %v2065, 32
        %v2068 = vpop.permute.xlu0 %2067
        %v2070 = vadd.f32 %v2060, %v2068
        %v2071 = vtanh.pop %v2070
        %2073 = vrot.lane.b32.xlu0 %v2071, 64
        %v2074 = vpop.permute.xlu0 %2073
        %v2076 = vmul.f32 %v2059, %v2074
        %v2077 = vld [vmem:[#allocation10] sm:$0xff]
        %v2078 = vld [vmem:[#allocation10 + $0x8] sm:$0xff]
        %v2079 = vld [vmem:[#allocation10 + $0x10] sm:$0xff]
        %v2080 = vld [vmem:[#allocation10 + $0x18] sm:$0xff]
        %v2081 = vld [vmem:[#allocation11] sm:$0xff]
        %v2082 = vld [vmem:[#allocation11 + $0x8] sm:$0xff]
        %v2083 = vld [vmem:[#allocation11 + $0x10] sm:$0xff]
        %v2084 = vld [vmem:[#allocation11 + $0x18] sm:$0xff]
        %v2085 = vsel %vm465, %v2007, 0
        %2087 = vmatpush.msra.mxu0 0.0
        %2088 = vmatpush.msra.mxu0 0.0
        %2089 = vmatpush.msra.mxu0 0.0
        %2090 = vmatpush.msra.mxu0 0.0
        %2091 = vmatpush.msra.mxu0 0.0
        %2092 = vmatpush.msra.mxu0 0.0
        %2093 = vmatpush.msra.mxu0 0.0
        %2094 = vmatpush.msra.mxu0 0.0
        %2095 = vmatpush.msra.mxu0 0.0
        %2096 = vmatpush.msra.mxu0 0.0
        %2097 = vmatpush.msra.mxu0 0.0
        %2098 = vmatpush.msra.mxu0 0.0
        %2099 = vmatpush.msra.mxu0 %v2084
        %2100 = vmatpush.msra.mxu0 %v2083
        %2101 = vmatpush.msra.mxu0 %v2082
        %2102 = vmatpush.msra.mxu0 %v2081
        %2103 = vmatmul.f32.gmra.mxu0 %v2085
        %v2104 = vpop.f32.mrf.mxu0
        %v2105 = vadd.f32 0.0, %v2104
        %2106 = vdwg.mxu0
        %2108 = vrot.lane.b32.xlu0 %v2076, 32
        %v2109 = vpop.permute.xlu0 %2108
        %v2110 = vsel %vm465, %v2109, 0
        %2112 = vmatpush.msra.mxu0 0.0
        %2113 = vmatpush.msra.mxu0 0.0
        %2114 = vmatpush.msra.mxu0 0.0
        %2115 = vmatpush.msra.mxu0 0.0
        %2116 = vmatpush.msra.mxu0 0.0
        %2117 = vmatpush.msra.mxu0 0.0
        %2118 = vmatpush.msra.mxu0 0.0
        %2119 = vmatpush.msra.mxu0 0.0
        %2120 = vmatpush.msra.mxu0 0.0
        %2121 = vmatpush.msra.mxu0 0.0
        %2122 = vmatpush.msra.mxu0 0.0
        %2123 = vmatpush.msra.mxu0 0.0
        %2124 = vmatpush.msra.mxu0 %v2080
        %2125 = vmatpush.msra.mxu0 %v2079
        %2126 = vmatpush.msra.mxu0 %v2078
        %2127 = vmatpush.msra.mxu0 %v2077
        %2128 = vmatmul.f32.gmra.mxu0 %v2110
        %v2129 = vpop.f32.mrf.mxu0
        %v2130 = vadd.f32 %v2105, %v2129
        %2131 = vdwg.mxu0
        %v2132 = vld [vmem:[%s6] sm:$0x1]
        %v2134 = vperm.slane %v2132, 0
        %v2136 = vadd.f32 %v2130, %v2134
        %v2137 = vmul.f32 %v2136, %v452
        %v2138 = vxor.u32 %v2137, 2147483648
        %v2139 = vmul.f32 %v2138, 1.442695
        %v2140 = vpow.pop %v2139
        %v2141 = vadd.f32 %v2140, 1.0
        %v2142 = vrcp.pop %v2141
        %v2143 = vmul.f32 %v2141, %v2142
        %v2144 = vsub.f32 1.0, %v2143
        %v2145 = vmul.f32 %v2142, %v2144
        %v2146 = vadd.f32 %v2142, %v2145
        %vm2147 = vweird.f32 %v2141
        %vm2148 = vweird.f32 %v2142
        %vm2149 = vmor %vm2147, %vm2148
        %v2150 = vsel %vm2149, %v2142, %v2146
        %v2151 = vand.u32 2147483647, %v2141
        %vm2152 = vcmp.eq.f32.partialorder %v2151, 8.507059e+37
        %v2153 = vand.u32 %v2141, 2147483648
        %v2154 = vor.u32 1.1754944e-38, %v2153
        %v2155 = vsel %vm2152, %v2154, %v2150
        %v2156 = vmul.f32 1.0, %v2155
        %v2157 = vmul.f32 %v2156, %v452
        %v2158 = vadd.f32 %v2157, %v453
        %v2159 = vmul.f32 %v2158, %v1998
        %2161 = vrot.lane.b32.xlu0 %v2158, 64
        %v2162 = vpop.permute.xlu0 %2161
        %v2164 = vmul.f32 %v2158, %v2162
        %2166 = vrot.lane.b32.xlu0 %v2164, 32
        %v2167 = vpop.permute.xlu0 %2166
        %v2169 = vadd.f32 %v2159, %v2167
        %v2170 = vtanh.pop %v2169
        %2172 = vrot.lane.b32.xlu0 %v2170, 64
        %v2173 = vpop.permute.xlu0 %2172
        %v2175 = vmul.f32 %v2158, %v2173
        %2177 = vrot.lane.b32.xlu0 %v2175, 32
        %v2178 = vpop.permute.xlu0 %2177
        %s2180 = scalar_lea.vmem %s427, 18 [#allocation13]
        %2181 = vst.msk [vmem:[%s2180] sm:$0x3] %vm641, %v2178
        %s2182 = scalar_lea.vmem %s371, 20 [#allocation2]
        %v2183 = vld [vmem:[%s2182] sm:$0x3]
        %v2184 = vld [vmem:[#allocation8] sm:$0xff]
        %v2185 = vld [vmem:[#allocation8 + $0x8] sm:$0xff]
        %v2186 = vld [vmem:[#allocation8 + $0x10] sm:$0xff]
        %v2187 = vld [vmem:[#allocation8 + $0x18] sm:$0xff]
        %2188 = vmatpush.msra.mxu0 0.0
        %2189 = vmatpush.msra.mxu0 0.0
        %2190 = vmatpush.msra.mxu0 0.0
        %2191 = vmatpush.msra.mxu0 0.0
        %2192 = vmatpush.msra.mxu0 0.0
        %2193 = vmatpush.msra.mxu0 0.0
        %2194 = vmatpush.msra.mxu0 0.0
        %2195 = vmatpush.msra.mxu0 0.0
        %2196 = vmatpush.msra.mxu0 0.0
        %2197 = vmatpush.msra.mxu0 0.0
        %2198 = vmatpush.msra.mxu0 0.0
        %2199 = vmatpush.msra.mxu0 0.0
        %2200 = vmatpush.msra.mxu0 %v2187
        %2201 = vmatpush.msra.mxu0 %v2186
        %2202 = vmatpush.msra.mxu0 %v2185
        %2203 = vmatpush.msra.mxu0 %v2184
        %2204 = vmatmul.f32.gmra.mxu0 %v2110
        %v2205 = vpop.f32.mrf.mxu0
        %v2206 = vadd.f32 0.0, %v2205
        %2207 = vdwg.mxu0
        %v2208 = vadd.f32 %v2183, %v2206
        %v2209 = vmul.f32 %v2208, %v452
        %v2210 = vxor.u32 %v2209, 2147483648
        %v2211 = vmul.f32 %v2210, 1.442695
        %v2212 = vpow.pop %v2211
        %v2213 = vadd.f32 %v2212, 1.0
        %v2214 = vrcp.pop %v2213
        %v2215 = vmul.f32 %v2213, %v2214
        %v2216 = vsub.f32 1.0, %v2215
        %v2217 = vmul.f32 %v2214, %v2216
        %v2218 = vadd.f32 %v2214, %v2217
        %vm2219 = vweird.f32 %v2213
        %vm2220 = vweird.f32 %v2214
        %vm2221 = vmor %vm2219, %vm2220
        %v2222 = vsel %vm2221, %v2214, %v2218
        %v2223 = vand.u32 2147483647, %v2213
        %vm2224 = vcmp.eq.f32.partialorder %v2223, 8.507059e+37
        %v2225 = vand.u32 %v2213, 2147483648
        %v2226 = vor.u32 1.1754944e-38, %v2225
        %v2227 = vsel %vm2224, %v2226, %v2222
        %v2228 = vmul.f32 1.0, %v2227
        %v2229 = vmul.f32 %v2228, %v452
        %v2230 = vadd.f32 %v2229, %v453
        %v2231 = vmul.f32 %v2230, %v2070
        %2233 = vrot.lane.b32.xlu0 %v2230, 64
        %v2234 = vpop.permute.xlu0 %2233
        %v2236 = vmul.f32 %v2230, %v2234
        %2238 = vrot.lane.b32.xlu0 %v2236, 32
        %v2239 = vpop.permute.xlu0 %2238
        %v2241 = vadd.f32 %v2231, %v2239
        %v2242 = vtanh.pop %v2241
        %2244 = vrot.lane.b32.xlu0 %v2242, 64
        %v2245 = vpop.permute.xlu0 %2244
        %v2247 = vmul.f32 %v2230, %v2245
        %v2248 = vld [vmem:[#allocation10] sm:$0xff]
        %v2249 = vld [vmem:[#allocation10 + $0x8] sm:$0xff]
        %v2250 = vld [vmem:[#allocation10 + $0x10] sm:$0xff]
        %v2251 = vld [vmem:[#allocation10 + $0x18] sm:$0xff]
        %v2252 = vld [vmem:[#allocation11] sm:$0xff]
        %v2253 = vld [vmem:[#allocation11 + $0x8] sm:$0xff]
        %v2254 = vld [vmem:[#allocation11 + $0x10] sm:$0xff]
        %v2255 = vld [vmem:[#allocation11 + $0x18] sm:$0xff]
        %v2256 = vsel %vm465, %v2178, 0
        %2258 = vmatpush.msra.mxu0 0.0
        %2259 = vmatpush.msra.mxu0 0.0
        %2260 = vmatpush.msra.mxu0 0.0
        %2261 = vmatpush.msra.mxu0 0.0
        %2262 = vmatpush.msra.mxu0 0.0
        %2263 = vmatpush.msra.mxu0 0.0
        %2264 = vmatpush.msra.mxu0 0.0
        %2265 = vmatpush.msra.mxu0 0.0
        %2266 = vmatpush.msra.mxu0 0.0
        %2267 = vmatpush.msra.mxu0 0.0
        %2268 = vmatpush.msra.mxu0 0.0
        %2269 = vmatpush.msra.mxu0 0.0
        %2270 = vmatpush.msra.mxu0 %v2255
        %2271 = vmatpush.msra.mxu0 %v2254
        %2272 = vmatpush.msra.mxu0 %v2253
        %2273 = vmatpush.msra.mxu0 %v2252
        %2274 = vmatmul.f32.gmra.mxu0 %v2256
        %v2275 = vpop.f32.mrf.mxu0
        %v2276 = vadd.f32 0.0, %v2275
        %2277 = vdwg.mxu0
        %2279 = vrot.lane.b32.xlu0 %v2247, 32
        %v2280 = vpop.permute.xlu0 %2279
        %v2281 = vsel %vm465, %v2280, 0
        %2283 = vmatpush.msra.mxu0 0.0
        %2284 = vmatpush.msra.mxu0 0.0
        %2285 = vmatpush.msra.mxu0 0.0
        %2286 = vmatpush.msra.mxu0 0.0
        %2287 = vmatpush.msra.mxu0 0.0
        %2288 = vmatpush.msra.mxu0 0.0
        %2289 = vmatpush.msra.mxu0 0.0
        %2290 = vmatpush.msra.mxu0 0.0
        %2291 = vmatpush.msra.mxu0 0.0
        %2292 = vmatpush.msra.mxu0 0.0
        %2293 = vmatpush.msra.mxu0 0.0
        %2294 = vmatpush.msra.mxu0 0.0
        %2295 = vmatpush.msra.mxu0 %v2251
        %2296 = vmatpush.msra.mxu0 %v2250
        %2297 = vmatpush.msra.mxu0 %v2249
        %2298 = vmatpush.msra.mxu0 %v2248
        %2299 = vmatmul.f32.gmra.mxu0 %v2281
        %v2300 = vpop.f32.mrf.mxu0
        %v2301 = vadd.f32 %v2276, %v2300
        %2302 = vdwg.mxu0
        %v2303 = vld [vmem:[%s6] sm:$0x1]
        %v2305 = vperm.slane %v2303, 0
        %v2307 = vadd.f32 %v2301, %v2305
        %v2308 = vmul.f32 %v2307, %v452
        %v2309 = vxor.u32 %v2308, 2147483648
        %v2310 = vmul.f32 %v2309, 1.442695
        %v2311 = vpow.pop %v2310
        %v2312 = vadd.f32 %v2311, 1.0
        %v2313 = vrcp.pop %v2312
        %v2314 = vmul.f32 %v2312, %v2313
        %v2315 = vsub.f32 1.0, %v2314
        %v2316 = vmul.f32 %v2313, %v2315
        %v2317 = vadd.f32 %v2313, %v2316
        %vm2318 = vweird.f32 %v2312
        %vm2319 = vweird.f32 %v2313
        %vm2320 = vmor %vm2318, %vm2319
        %v2321 = vsel %vm2320, %v2313, %v2317
        %v2322 = vand.u32 2147483647, %v2312
        %vm2323 = vcmp.eq.f32.partialorder %v2322, 8.507059e+37
        %v2324 = vand.u32 %v2312, 2147483648
        %v2325 = vor.u32 1.1754944e-38, %v2324
        %v2326 = vsel %vm2323, %v2325, %v2321
        %v2327 = vmul.f32 1.0, %v2326
        %v2328 = vmul.f32 %v2327, %v452
        %v2329 = vadd.f32 %v2328, %v453
        %v2330 = vmul.f32 %v2329, %v2169
        %2332 = vrot.lane.b32.xlu0 %v2329, 64
        %v2333 = vpop.permute.xlu0 %2332
        %v2335 = vmul.f32 %v2329, %v2333
        %2337 = vrot.lane.b32.xlu0 %v2335, 32
        %v2338 = vpop.permute.xlu0 %2337
        %v2340 = vadd.f32 %v2330, %v2338
        %v2341 = vtanh.pop %v2340
        %2343 = vrot.lane.b32.xlu0 %v2341, 64
        %v2344 = vpop.permute.xlu0 %2343
        %v2346 = vmul.f32 %v2329, %v2344
        %2348 = vrot.lane.b32.xlu0 %v2346, 32
        %v2349 = vpop.permute.xlu0 %2348
        %s2351 = scalar_lea.vmem %s427, 20 [#allocation13]
        %2352 = vst.msk [vmem:[%s2351] sm:$0x3] %vm641, %v2349
        %s2353 = scalar_lea.vmem %s371, 22 [#allocation2]
        %v2354 = vld [vmem:[%s2353] sm:$0x3]
        %v2355 = vld [vmem:[#allocation8] sm:$0xff]
        %v2356 = vld [vmem:[#allocation8 + $0x8] sm:$0xff]
        %v2357 = vld [vmem:[#allocation8 + $0x10] sm:$0xff]
        %v2358 = vld [vmem:[#allocation8 + $0x18] sm:$0xff]
        %2359 = vmatpush.msra.mxu0 0.0
        %2360 = vmatpush.msra.mxu0 0.0
        %2361 = vmatpush.msra.mxu0 0.0
        %2362 = vmatpush.msra.mxu0 0.0
        %2363 = vmatpush.msra.mxu0 0.0
        %2364 = vmatpush.msra.mxu0 0.0
        %2365 = vmatpush.msra.mxu0 0.0
        %2366 = vmatpush.msra.mxu0 0.0
        %2367 = vmatpush.msra.mxu0 0.0
        %2368 = vmatpush.msra.mxu0 0.0
        %2369 = vmatpush.msra.mxu0 0.0
        %2370 = vmatpush.msra.mxu0 0.0
        %2371 = vmatpush.msra.mxu0 %v2358
        %2372 = vmatpush.msra.mxu0 %v2357
        %2373 = vmatpush.msra.mxu0 %v2356
        %2374 = vmatpush.msra.mxu0 %v2355
        %2375 = vmatmul.f32.gmra.mxu0 %v2281
        %v2376 = vpop.f32.mrf.mxu0
        %v2377 = vadd.f32 0.0, %v2376
        %2378 = vdwg.mxu0
        %v2379 = vadd.f32 %v2354, %v2377
        %v2380 = vmul.f32 %v2379, %v452
        %v2381 = vxor.u32 %v2380, 2147483648
        %v2382 = vmul.f32 %v2381, 1.442695
        %v2383 = vpow.pop %v2382
        %v2384 = vadd.f32 %v2383, 1.0
        %v2385 = vrcp.pop %v2384
        %v2386 = vmul.f32 %v2384, %v2385
        %v2387 = vsub.f32 1.0, %v2386
        %v2388 = vmul.f32 %v2385, %v2387
        %v2389 = vadd.f32 %v2385, %v2388
        %vm2390 = vweird.f32 %v2384
        %vm2391 = vweird.f32 %v2385
        %vm2392 = vmor %vm2390, %vm2391
        %v2393 = vsel %vm2392, %v2385, %v2389
        %v2394 = vand.u32 2147483647, %v2384
        %vm2395 = vcmp.eq.f32.partialorder %v2394, 8.507059e+37
        %v2396 = vand.u32 %v2384, 2147483648
        %v2397 = vor.u32 1.1754944e-38, %v2396
        %v2398 = vsel %vm2395, %v2397, %v2393
        %v2399 = vmul.f32 1.0, %v2398
        %v2400 = vmul.f32 %v2399, %v452
        %v2401 = vadd.f32 %v2400, %v453
        %v2402 = vmul.f32 %v2401, %v2241
        %2404 = vrot.lane.b32.xlu0 %v2401, 64
        %v2405 = vpop.permute.xlu0 %2404
        %v2407 = vmul.f32 %v2401, %v2405
        %2409 = vrot.lane.b32.xlu0 %v2407, 32
        %v2410 = vpop.permute.xlu0 %2409
        %v2412 = vadd.f32 %v2402, %v2410
        %v2413 = vtanh.pop %v2412
        %2415 = vrot.lane.b32.xlu0 %v2413, 64
        %v2416 = vpop.permute.xlu0 %2415
        %v2418 = vmul.f32 %v2401, %v2416
        %v2419 = vld [vmem:[#allocation10] sm:$0xff]
        %v2420 = vld [vmem:[#allocation10 + $0x8] sm:$0xff]
        %v2421 = vld [vmem:[#allocation10 + $0x10] sm:$0xff]
        %v2422 = vld [vmem:[#allocation10 + $0x18] sm:$0xff]
        %v2423 = vld [vmem:[#allocation11] sm:$0xff]
        %v2424 = vld [vmem:[#allocation11 + $0x8] sm:$0xff]
        %v2425 = vld [vmem:[#allocation11 + $0x10] sm:$0xff]
        %v2426 = vld [vmem:[#allocation11 + $0x18] sm:$0xff]
        %v2427 = vsel %vm465, %v2349, 0
        %2429 = vmatpush.msra.mxu0 0.0
        %2430 = vmatpush.msra.mxu0 0.0
        %2431 = vmatpush.msra.mxu0 0.0
        %2432 = vmatpush.msra.mxu0 0.0
        %2433 = vmatpush.msra.mxu0 0.0
        %2434 = vmatpush.msra.mxu0 0.0
        %2435 = vmatpush.msra.mxu0 0.0
        %2436 = vmatpush.msra.mxu0 0.0
        %2437 = vmatpush.msra.mxu0 0.0
        %2438 = vmatpush.msra.mxu0 0.0
        %2439 = vmatpush.msra.mxu0 0.0
        %2440 = vmatpush.msra.mxu0 0.0
        %2441 = vmatpush.msra.mxu0 %v2426
        %2442 = vmatpush.msra.mxu0 %v2425
        %2443 = vmatpush.msra.mxu0 %v2424
        %2444 = vmatpush.msra.mxu0 %v2423
        %2445 = vmatmul.f32.gmra.mxu0 %v2427
        %v2446 = vpop.f32.mrf.mxu0
        %v2447 = vadd.f32 0.0, %v2446
        %2448 = vdwg.mxu0
        %2450 = vrot.lane.b32.xlu0 %v2418, 32
        %v2451 = vpop.permute.xlu0 %2450
        %v2452 = vsel %vm465, %v2451, 0
        %2454 = vmatpush.msra.mxu0 0.0
        %2455 = vmatpush.msra.mxu0 0.0
        %2456 = vmatpush.msra.mxu0 0.0
        %2457 = vmatpush.msra.mxu0 0.0
        %2458 = vmatpush.msra.mxu0 0.0
        %2459 = vmatpush.msra.mxu0 0.0
        %2460 = vmatpush.msra.mxu0 0.0
        %2461 = vmatpush.msra.mxu0 0.0
        %2462 = vmatpush.msra.mxu0 0.0
        %2463 = vmatpush.msra.mxu0 0.0
        %2464 = vmatpush.msra.mxu0 0.0
        %2465 = vmatpush.msra.mxu0 0.0
        %2466 = vmatpush.msra.mxu0 %v2422
        %2467 = vmatpush.msra.mxu0 %v2421
        %2468 = vmatpush.msra.mxu0 %v2420
        %2469 = vmatpush.msra.mxu0 %v2419
        %2470 = vmatmul.f32.gmra.mxu0 %v2452
        %v2471 = vpop.f32.mrf.mxu0
        %v2472 = vadd.f32 %v2447, %v2471
        %2473 = vdwg.mxu0
        %v2474 = vld [vmem:[%s6] sm:$0x1]
        %v2476 = vperm.slane %v2474, 0
        %v2478 = vadd.f32 %v2472, %v2476
        %v2479 = vmul.f32 %v2478, %v452
        %v2480 = vxor.u32 %v2479, 2147483648
        %v2481 = vmul.f32 %v2480, 1.442695
        %v2482 = vpow.pop %v2481
        %v2483 = vadd.f32 %v2482, 1.0
        %v2484 = vrcp.pop %v2483
        %v2485 = vmul.f32 %v2483, %v2484
        %v2486 = vsub.f32 1.0, %v2485
        %v2487 = vmul.f32 %v2484, %v2486
        %v2488 = vadd.f32 %v2484, %v2487
        %vm2489 = vweird.f32 %v2483
        %vm2490 = vweird.f32 %v2484
        %vm2491 = vmor %vm2489, %vm2490
        %v2492 = vsel %vm2491, %v2484, %v2488
        %v2493 = vand.u32 2147483647, %v2483
        %vm2494 = vcmp.eq.f32.partialorder %v2493, 8.507059e+37
        %v2495 = vand.u32 %v2483, 2147483648
        %v2496 = vor.u32 1.1754944e-38, %v2495
        %v2497 = vsel %vm2494, %v2496, %v2492
        %v2498 = vmul.f32 1.0, %v2497
        %v2499 = vmul.f32 %v2498, %v452
        %v2500 = vadd.f32 %v2499, %v453
        %v2501 = vmul.f32 %v2500, %v2340
        %2503 = vrot.lane.b32.xlu0 %v2500, 64
        %v2504 = vpop.permute.xlu0 %2503
        %v2506 = vmul.f32 %v2500, %v2504
        %2508 = vrot.lane.b32.xlu0 %v2506, 32
        %v2509 = vpop.permute.xlu0 %2508
        %v2511 = vadd.f32 %v2501, %v2509
        %v2512 = vtanh.pop %v2511
        %2514 = vrot.lane.b32.xlu0 %v2512, 64
        %v2515 = vpop.permute.xlu0 %2514
        %v2517 = vmul.f32 %v2500, %v2515
        %2519 = vrot.lane.b32.xlu0 %v2517, 32
        %v2520 = vpop.permute.xlu0 %2519
        %s2522 = scalar_lea.vmem %s427, 22 [#allocation13]
        %2523 = vst.msk [vmem:[%s2522] sm:$0x3] %vm641, %v2520
        %s2524 = scalar_lea.vmem %s371, 24 [#allocation2]
        %v2525 = vld [vmem:[%s2524] sm:$0x3]
        %v2526 = vld [vmem:[#allocation8] sm:$0xff]
        %v2527 = vld [vmem:[#allocation8 + $0x8] sm:$0xff]
        %v2528 = vld [vmem:[#allocation8 + $0x10] sm:$0xff]
        %v2529 = vld [vmem:[#allocation8 + $0x18] sm:$0xff]
        %2530 = vmatpush.msra.mxu0 0.0
        %2531 = vmatpush.msra.mxu0 0.0
        %2532 = vmatpush.msra.mxu0 0.0
        %2533 = vmatpush.msra.mxu0 0.0
        %2534 = vmatpush.msra.mxu0 0.0
        %2535 = vmatpush.msra.mxu0 0.0
        %2536 = vmatpush.msra.mxu0 0.0
        %2537 = vmatpush.msra.mxu0 0.0
        %2538 = vmatpush.msra.mxu0 0.0
        %2539 = vmatpush.msra.mxu0 0.0
        %2540 = vmatpush.msra.mxu0 0.0
        %2541 = vmatpush.msra.mxu0 0.0
        %2542 = vmatpush.msra.mxu0 %v2529
        %2543 = vmatpush.msra.mxu0 %v2528
        %2544 = vmatpush.msra.mxu0 %v2527
        %2545 = vmatpush.msra.mxu0 %v2526
        %2546 = vmatmul.f32.gmra.mxu0 %v2452
        %v2547 = vpop.f32.mrf.mxu0
        %v2548 = vadd.f32 0.0, %v2547
        %2549 = vdwg.mxu0
        %v2550 = vadd.f32 %v2525, %v2548
        %v2551 = vmul.f32 %v2550, %v452
        %v2552 = vxor.u32 %v2551, 2147483648
        %v2553 = vmul.f32 %v2552, 1.442695
        %v2554 = vpow.pop %v2553
        %v2555 = vadd.f32 %v2554, 1.0
        %v2556 = vrcp.pop %v2555
        %v2557 = vmul.f32 %v2555, %v2556
        %v2558 = vsub.f32 1.0, %v2557
        %v2559 = vmul.f32 %v2556, %v2558
        %v2560 = vadd.f32 %v2556, %v2559
        %vm2561 = vweird.f32 %v2555
        %vm2562 = vweird.f32 %v2556
        %vm2563 = vmor %vm2561, %vm2562
        %v2564 = vsel %vm2563, %v2556, %v2560
        %v2565 = vand.u32 2147483647, %v2555
        %vm2566 = vcmp.eq.f32.partialorder %v2565, 8.507059e+37
        %v2567 = vand.u32 %v2555, 2147483648
        %v2568 = vor.u32 1.1754944e-38, %v2567
        %v2569 = vsel %vm2566, %v2568, %v2564
        %v2570 = vmul.f32 1.0, %v2569
        %v2571 = vmul.f32 %v2570, %v452
        %v2572 = vadd.f32 %v2571, %v453
        %v2573 = vmul.f32 %v2572, %v2412
        %2575 = vrot.lane.b32.xlu0 %v2572, 64
        %v2576 = vpop.permute.xlu0 %2575
        %v2578 = vmul.f32 %v2572, %v2576
        %2580 = vrot.lane.b32.xlu0 %v2578, 32
        %v2581 = vpop.permute.xlu0 %2580
        %v2583 = vadd.f32 %v2573, %v2581
        %v2584 = vtanh.pop %v2583
        %2586 = vrot.lane.b32.xlu0 %v2584, 64
        %v2587 = vpop.permute.xlu0 %2586
        %v2589 = vmul.f32 %v2572, %v2587
        %v2590 = vld [vmem:[#allocation10] sm:$0xff]
        %v2591 = vld [vmem:[#allocation10 + $0x8] sm:$0xff]
        %v2592 = vld [vmem:[#allocation10 + $0x10] sm:$0xff]
        %v2593 = vld [vmem:[#allocation10 + $0x18] sm:$0xff]
        %v2594 = vld [vmem:[#allocation11] sm:$0xff]
        %v2595 = vld [vmem:[#allocation11 + $0x8] sm:$0xff]
        %v2596 = vld [vmem:[#allocation11 + $0x10] sm:$0xff]
        %v2597 = vld [vmem:[#allocation11 + $0x18] sm:$0xff]
        %v2598 = vsel %vm465, %v2520, 0
        %2600 = vmatpush.msra.mxu0 0.0
        %2601 = vmatpush.msra.mxu0 0.0
        %2602 = vmatpush.msra.mxu0 0.0
        %2603 = vmatpush.msra.mxu0 0.0
        %2604 = vmatpush.msra.mxu0 0.0
        %2605 = vmatpush.msra.mxu0 0.0
        %2606 = vmatpush.msra.mxu0 0.0
        %2607 = vmatpush.msra.mxu0 0.0
        %2608 = vmatpush.msra.mxu0 0.0
        %2609 = vmatpush.msra.mxu0 0.0
        %2610 = vmatpush.msra.mxu0 0.0
        %2611 = vmatpush.msra.mxu0 0.0
        %2612 = vmatpush.msra.mxu0 %v2597
        %2613 = vmatpush.msra.mxu0 %v2596
        %2614 = vmatpush.msra.mxu0 %v2595
        %2615 = vmatpush.msra.mxu0 %v2594
        %2616 = vmatmul.f32.gmra.mxu0 %v2598
        %v2617 = vpop.f32.mrf.mxu0
        %v2618 = vadd.f32 0.0, %v2617
        %2619 = vdwg.mxu0
        %2621 = vrot.lane.b32.xlu0 %v2589, 32
        %v2622 = vpop.permute.xlu0 %2621
        %v2623 = vsel %vm465, %v2622, 0
        %2625 = vmatpush.msra.mxu0 0.0
        %2626 = vmatpush.msra.mxu0 0.0
        %2627 = vmatpush.msra.mxu0 0.0
        %2628 = vmatpush.msra.mxu0 0.0
        %2629 = vmatpush.msra.mxu0 0.0
        %2630 = vmatpush.msra.mxu0 0.0
        %2631 = vmatpush.msra.mxu0 0.0
        %2632 = vmatpush.msra.mxu0 0.0
        %2633 = vmatpush.msra.mxu0 0.0
        %2634 = vmatpush.msra.mxu0 0.0
        %2635 = vmatpush.msra.mxu0 0.0
        %2636 = vmatpush.msra.mxu0 0.0
        %2637 = vmatpush.msra.mxu0 %v2593
        %2638 = vmatpush.msra.mxu0 %v2592
        %2639 = vmatpush.msra.mxu0 %v2591
        %2640 = vmatpush.msra.mxu0 %v2590
        %2641 = vmatmul.f32.gmra.mxu0 %v2623
        %v2642 = vpop.f32.mrf.mxu0
        %v2643 = vadd.f32 %v2618, %v2642
        %2644 = vdwg.mxu0
        %v2645 = vld [vmem:[%s6] sm:$0x1]
        %v2647 = vperm.slane %v2645, 0
        %v2649 = vadd.f32 %v2643, %v2647
        %v2650 = vmul.f32 %v2649, %v452
        %v2651 = vxor.u32 %v2650, 2147483648
        %v2652 = vmul.f32 %v2651, 1.442695
        %v2653 = vpow.pop %v2652
        %v2654 = vadd.f32 %v2653, 1.0
        %v2655 = vrcp.pop %v2654
        %v2656 = vmul.f32 %v2654, %v2655
        %v2657 = vsub.f32 1.0, %v2656
        %v2658 = vmul.f32 %v2655, %v2657
        %v2659 = vadd.f32 %v2655, %v2658
        %vm2660 = vweird.f32 %v2654
        %vm2661 = vweird.f32 %v2655
        %vm2662 = vmor %vm2660, %vm2661
        %v2663 = vsel %vm2662, %v2655, %v2659
        %v2664 = vand.u32 2147483647, %v2654
        %vm2665 = vcmp.eq.f32.partialorder %v2664, 8.507059e+37
        %v2666 = vand.u32 %v2654, 2147483648
        %v2667 = vor.u32 1.1754944e-38, %v2666
        %v2668 = vsel %vm2665, %v2667, %v2663
        %v2669 = vmul.f32 1.0, %v2668
        %v2670 = vmul.f32 %v2669, %v452
        %v2671 = vadd.f32 %v2670, %v453
        %v2672 = vmul.f32 %v2671, %v2511
        %2674 = vrot.lane.b32.xlu0 %v2671, 64
        %v2675 = vpop.permute.xlu0 %2674
        %v2677 = vmul.f32 %v2671, %v2675
        %2679 = vrot.lane.b32.xlu0 %v2677, 32
        %v2680 = vpop.permute.xlu0 %2679
        %v2682 = vadd.f32 %v2672, %v2680
        %v2683 = vtanh.pop %v2682
        %2685 = vrot.lane.b32.xlu0 %v2683, 64
        %v2686 = vpop.permute.xlu0 %2685
        %v2688 = vmul.f32 %v2671, %v2686
        %2690 = vrot.lane.b32.xlu0 %v2688, 32
        %v2691 = vpop.permute.xlu0 %2690
        %s2693 = scalar_lea.vmem %s427, 24 [#allocation13]
        %2694 = vst.msk [vmem:[%s2693] sm:$0x3] %vm641, %v2691
        %s2695 = scalar_lea.vmem %s371, 26 [#allocation2]
        %v2696 = vld [vmem:[%s2695] sm:$0x3]
        %v2697 = vld [vmem:[#allocation8] sm:$0xff]
        %v2698 = vld [vmem:[#allocation8 + $0x8] sm:$0xff]
        %v2699 = vld [vmem:[#allocation8 + $0x10] sm:$0xff]
        %v2700 = vld [vmem:[#allocation8 + $0x18] sm:$0xff]
        %2701 = vmatpush.msra.mxu0 0.0
        %2702 = vmatpush.msra.mxu0 0.0
        %2703 = vmatpush.msra.mxu0 0.0
        %2704 = vmatpush.msra.mxu0 0.0
        %2705 = vmatpush.msra.mxu0 0.0
        %2706 = vmatpush.msra.mxu0 0.0
        %2707 = vmatpush.msra.mxu0 0.0
        %2708 = vmatpush.msra.mxu0 0.0
        %2709 = vmatpush.msra.mxu0 0.0
        %2710 = vmatpush.msra.mxu0 0.0
        %2711 = vmatpush.msra.mxu0 0.0
        %2712 = vmatpush.msra.mxu0 0.0
        %2713 = vmatpush.msra.mxu0 %v2700
        %2714 = vmatpush.msra.mxu0 %v2699
        %2715 = vmatpush.msra.mxu0 %v2698
        %2716 = vmatpush.msra.mxu0 %v2697
        %2717 = vmatmul.f32.gmra.mxu0 %v2623
        %v2718 = vpop.f32.mrf.mxu0
        %v2719 = vadd.f32 0.0, %v2718
        %2720 = vdwg.mxu0
        %v2721 = vadd.f32 %v2696, %v2719
        %v2722 = vmul.f32 %v2721, %v452
        %v2723 = vxor.u32 %v2722, 2147483648
        %v2724 = vmul.f32 %v2723, 1.442695
        %v2725 = vpow.pop %v2724
        %v2726 = vadd.f32 %v2725, 1.0
        %v2727 = vrcp.pop %v2726
        %v2728 = vmul.f32 %v2726, %v2727
        %v2729 = vsub.f32 1.0, %v2728
        %v2730 = vmul.f32 %v2727, %v2729
        %v2731 = vadd.f32 %v2727, %v2730
        %vm2732 = vweird.f32 %v2726
        %vm2733 = vweird.f32 %v2727
        %vm2734 = vmor %vm2732, %vm2733
        %v2735 = vsel %vm2734, %v2727, %v2731
        %v2736 = vand.u32 2147483647, %v2726
        %vm2737 = vcmp.eq.f32.partialorder %v2736, 8.507059e+37
        %v2738 = vand.u32 %v2726, 2147483648
        %v2739 = vor.u32 1.1754944e-38, %v2738
        %v2740 = vsel %vm2737, %v2739, %v2735
        %v2741 = vmul.f32 1.0, %v2740
        %v2742 = vmul.f32 %v2741, %v452
        %v2743 = vadd.f32 %v2742, %v453
        %v2744 = vmul.f32 %v2743, %v2583
        %2746 = vrot.lane.b32.xlu0 %v2743, 64
        %v2747 = vpop.permute.xlu0 %2746
        %v2749 = vmul.f32 %v2743, %v2747
        %2751 = vrot.lane.b32.xlu0 %v2749, 32
        %v2752 = vpop.permute.xlu0 %2751
        %v2754 = vadd.f32 %v2744, %v2752
        %v2755 = vtanh.pop %v2754
        %2757 = vrot.lane.b32.xlu0 %v2755, 64
        %v2758 = vpop.permute.xlu0 %2757
        %v2760 = vmul.f32 %v2743, %v2758
        %v2761 = vld [vmem:[#allocation10] sm:$0xff]
        %v2762 = vld [vmem:[#allocation10 + $0x8] sm:$0xff]
        %v2763 = vld [vmem:[#allocation10 + $0x10] sm:$0xff]
        %v2764 = vld [vmem:[#allocation10 + $0x18] sm:$0xff]
        %v2765 = vld [vmem:[#allocation11] sm:$0xff]
        %v2766 = vld [vmem:[#allocation11 + $0x8] sm:$0xff]
        %v2767 = vld [vmem:[#allocation11 + $0x10] sm:$0xff]
        %v2768 = vld [vmem:[#allocation11 + $0x18] sm:$0xff]
        %v2769 = vsel %vm465, %v2691, 0
        %2771 = vmatpush.msra.mxu0 0.0
        %2772 = vmatpush.msra.mxu0 0.0
        %2773 = vmatpush.msra.mxu0 0.0
        %2774 = vmatpush.msra.mxu0 0.0
        %2775 = vmatpush.msra.mxu0 0.0
        %2776 = vmatpush.msra.mxu0 0.0
        %2777 = vmatpush.msra.mxu0 0.0
        %2778 = vmatpush.msra.mxu0 0.0
        %2779 = vmatpush.msra.mxu0 0.0
        %2780 = vmatpush.msra.mxu0 0.0
        %2781 = vmatpush.msra.mxu0 0.0
        %2782 = vmatpush.msra.mxu0 0.0
        %2783 = vmatpush.msra.mxu0 %v2768
        %2784 = vmatpush.msra.mxu0 %v2767
        %2785 = vmatpush.msra.mxu0 %v2766
        %2786 = vmatpush.msra.mxu0 %v2765
        %2787 = vmatmul.f32.gmra.mxu0 %v2769
        %v2788 = vpop.f32.mrf.mxu0
        %v2789 = vadd.f32 0.0, %v2788
        %2790 = vdwg.mxu0
        %2792 = vrot.lane.b32.xlu0 %v2760, 32
        %v2793 = vpop.permute.xlu0 %2792
        %v2794 = vsel %vm465, %v2793, 0
        %2796 = vmatpush.msra.mxu0 0.0
        %2797 = vmatpush.msra.mxu0 0.0
        %2798 = vmatpush.msra.mxu0 0.0
        %2799 = vmatpush.msra.mxu0 0.0
        %2800 = vmatpush.msra.mxu0 0.0
        %2801 = vmatpush.msra.mxu0 0.0
        %2802 = vmatpush.msra.mxu0 0.0
        %2803 = vmatpush.msra.mxu0 0.0
        %2804 = vmatpush.msra.mxu0 0.0
        %2805 = vmatpush.msra.mxu0 0.0
        %2806 = vmatpush.msra.mxu0 0.0
        %2807 = vmatpush.msra.mxu0 0.0
        %2808 = vmatpush.msra.mxu0 %v2764
        %2809 = vmatpush.msra.mxu0 %v2763
        %2810 = vmatpush.msra.mxu0 %v2762
        %2811 = vmatpush.msra.mxu0 %v2761
        %2812 = vmatmul.f32.gmra.mxu0 %v2794
        %v2813 = vpop.f32.mrf.mxu0
        %v2814 = vadd.f32 %v2789, %v2813
        %2815 = vdwg.mxu0
        %v2816 = vld [vmem:[%s6] sm:$0x1]
        %v2818 = vperm.slane %v2816, 0
        %v2820 = vadd.f32 %v2814, %v2818
        %v2821 = vmul.f32 %v2820, %v452
        %v2822 = vxor.u32 %v2821, 2147483648
        %v2823 = vmul.f32 %v2822, 1.442695
        %v2824 = vpow.pop %v2823
        %v2825 = vadd.f32 %v2824, 1.0
        %v2826 = vrcp.pop %v2825
        %v2827 = vmul.f32 %v2825, %v2826
        %v2828 = vsub.f32 1.0, %v2827
        %v2829 = vmul.f32 %v2826, %v2828
        %v2830 = vadd.f32 %v2826, %v2829
        %vm2831 = vweird.f32 %v2825
        %vm2832 = vweird.f32 %v2826
        %vm2833 = vmor %vm2831, %vm2832
        %v2834 = vsel %vm2833, %v2826, %v2830
        %v2835 = vand.u32 2147483647, %v2825
        %vm2836 = vcmp.eq.f32.partialorder %v2835, 8.507059e+37
        %v2837 = vand.u32 %v2825, 2147483648
        %v2838 = vor.u32 1.1754944e-38, %v2837
        %v2839 = vsel %vm2836, %v2838, %v2834
        %v2840 = vmul.f32 1.0, %v2839
        %v2841 = vmul.f32 %v2840, %v452
        %v2842 = vadd.f32 %v2841, %v453
        %v2843 = vmul.f32 %v2842, %v2682
        %2845 = vrot.lane.b32.xlu0 %v2842, 64
        %v2846 = vpop.permute.xlu0 %2845
        %v2848 = vmul.f32 %v2842, %v2846
        %2850 = vrot.lane.b32.xlu0 %v2848, 32
        %v2851 = vpop.permute.xlu0 %2850
        %v2853 = vadd.f32 %v2843, %v2851
        %v2854 = vtanh.pop %v2853
        %2856 = vrot.lane.b32.xlu0 %v2854, 64
        %v2857 = vpop.permute.xlu0 %2856
        %v2859 = vmul.f32 %v2842, %v2857
        %2861 = vrot.lane.b32.xlu0 %v2859, 32
        %v2862 = vpop.permute.xlu0 %2861
        %s2864 = scalar_lea.vmem %s427, 26 [#allocation13]
        %2865 = vst.msk [vmem:[%s2864] sm:$0x3] %vm641, %v2862
        %s2866 = scalar_lea.vmem %s371, 28 [#allocation2]
        %v2867 = vld [vmem:[%s2866] sm:$0x3]
        %v2868 = vld [vmem:[#allocation8] sm:$0xff]
        %v2869 = vld [vmem:[#allocation8 + $0x8] sm:$0xff]
        %v2870 = vld [vmem:[#allocation8 + $0x10] sm:$0xff]
        %v2871 = vld [vmem:[#allocation8 + $0x18] sm:$0xff]
        %2872 = vmatpush.msra.mxu0 0.0
        %2873 = vmatpush.msra.mxu0 0.0
        %2874 = vmatpush.msra.mxu0 0.0
        %2875 = vmatpush.msra.mxu0 0.0
        %2876 = vmatpush.msra.mxu0 0.0
        %2877 = vmatpush.msra.mxu0 0.0
        %2878 = vmatpush.msra.mxu0 0.0
        %2879 = vmatpush.msra.mxu0 0.0
        %2880 = vmatpush.msra.mxu0 0.0
        %2881 = vmatpush.msra.mxu0 0.0
        %2882 = vmatpush.msra.mxu0 0.0
        %2883 = vmatpush.msra.mxu0 0.0
        %2884 = vmatpush.msra.mxu0 %v2871
        %2885 = vmatpush.msra.mxu0 %v2870
        %2886 = vmatpush.msra.mxu0 %v2869
        %2887 = vmatpush.msra.mxu0 %v2868
        %2888 = vmatmul.f32.gmra.mxu0 %v2794
        %v2889 = vpop.f32.mrf.mxu0
        %v2890 = vadd.f32 0.0, %v2889
        %2891 = vdwg.mxu0
        %v2892 = vadd.f32 %v2867, %v2890
        %v2893 = vmul.f32 %v2892, %v452
        %v2894 = vxor.u32 %v2893, 2147483648
        %v2895 = vmul.f32 %v2894, 1.442695
        %v2896 = vpow.pop %v2895
        %v2897 = vadd.f32 %v2896, 1.0
        %v2898 = vrcp.pop %v2897
        %v2899 = vmul.f32 %v2897, %v2898
        %v2900 = vsub.f32 1.0, %v2899
        %v2901 = vmul.f32 %v2898, %v2900
        %v2902 = vadd.f32 %v2898, %v2901
        %vm2903 = vweird.f32 %v2897
        %vm2904 = vweird.f32 %v2898
        %vm2905 = vmor %vm2903, %vm2904
        %v2906 = vsel %vm2905, %v2898, %v2902
        %v2907 = vand.u32 2147483647, %v2897
        %vm2908 = vcmp.eq.f32.partialorder %v2907, 8.507059e+37
        %v2909 = vand.u32 %v2897, 2147483648
        %v2910 = vor.u32 1.1754944e-38, %v2909
        %v2911 = vsel %vm2908, %v2910, %v2906
        %v2912 = vmul.f32 1.0, %v2911
        %v2913 = vmul.f32 %v2912, %v452
        %v2914 = vadd.f32 %v2913, %v453
        %v2915 = vmul.f32 %v2914, %v2754
        %2917 = vrot.lane.b32.xlu0 %v2914, 64
        %v2918 = vpop.permute.xlu0 %2917
        %v2920 = vmul.f32 %v2914, %v2918
        %2922 = vrot.lane.b32.xlu0 %v2920, 32
        %v2923 = vpop.permute.xlu0 %2922
        %v2925 = vadd.f32 %v2915, %v2923
        %v2926 = vtanh.pop %v2925
        %2928 = vrot.lane.b32.xlu0 %v2926, 64
        %v2929 = vpop.permute.xlu0 %2928
        %v2931 = vmul.f32 %v2914, %v2929
        %v2932 = vld [vmem:[#allocation10] sm:$0xff]
        %v2933 = vld [vmem:[#allocation10 + $0x8] sm:$0xff]
        %v2934 = vld [vmem:[#allocation10 + $0x10] sm:$0xff]
        %v2935 = vld [vmem:[#allocation10 + $0x18] sm:$0xff]
        %v2936 = vld [vmem:[#allocation11] sm:$0xff]
        %v2937 = vld [vmem:[#allocation11 + $0x8] sm:$0xff]
        %v2938 = vld [vmem:[#allocation11 + $0x10] sm:$0xff]
        %v2939 = vld [vmem:[#allocation11 + $0x18] sm:$0xff]
        %v2940 = vsel %vm465, %v2862, 0
        %2942 = vmatpush.msra.mxu0 0.0
        %2943 = vmatpush.msra.mxu0 0.0
        %2944 = vmatpush.msra.mxu0 0.0
        %2945 = vmatpush.msra.mxu0 0.0
        %2946 = vmatpush.msra.mxu0 0.0
        %2947 = vmatpush.msra.mxu0 0.0
        %2948 = vmatpush.msra.mxu0 0.0
        %2949 = vmatpush.msra.mxu0 0.0
        %2950 = vmatpush.msra.mxu0 0.0
        %2951 = vmatpush.msra.mxu0 0.0
        %2952 = vmatpush.msra.mxu0 0.0
        %2953 = vmatpush.msra.mxu0 0.0
        %2954 = vmatpush.msra.mxu0 %v2939
        %2955 = vmatpush.msra.mxu0 %v2938
        %2956 = vmatpush.msra.mxu0 %v2937
        %2957 = vmatpush.msra.mxu0 %v2936
        %2958 = vmatmul.f32.gmra.mxu0 %v2940
        %v2959 = vpop.f32.mrf.mxu0
        %v2960 = vadd.f32 0.0, %v2959
        %2961 = vdwg.mxu0
        %2963 = vrot.lane.b32.xlu0 %v2931, 32
        %v2964 = vpop.permute.xlu0 %2963
        %v2965 = vsel %vm465, %v2964, 0
        %2967 = vmatpush.msra.mxu0 0.0
        %2968 = vmatpush.msra.mxu0 0.0
        %2969 = vmatpush.msra.mxu0 0.0
        %2970 = vmatpush.msra.mxu0 0.0
        %2971 = vmatpush.msra.mxu0 0.0
        %2972 = vmatpush.msra.mxu0 0.0
        %2973 = vmatpush.msra.mxu0 0.0
        %2974 = vmatpush.msra.mxu0 0.0
        %2975 = vmatpush.msra.mxu0 0.0
        %2976 = vmatpush.msra.mxu0 0.0
        %2977 = vmatpush.msra.mxu0 0.0
        %2978 = vmatpush.msra.mxu0 0.0
        %2979 = vmatpush.msra.mxu0 %v2935
        %2980 = vmatpush.msra.mxu0 %v2934
        %2981 = vmatpush.msra.mxu0 %v2933
        %2982 = vmatpush.msra.mxu0 %v2932
        %2983 = vmatmul.f32.gmra.mxu0 %v2965
        %v2984 = vpop.f32.mrf.mxu0
        %v2985 = vadd.f32 %v2960, %v2984
        %2986 = vdwg.mxu0
        %v2987 = vld [vmem:[%s6] sm:$0x1]
        %v2989 = vperm.slane %v2987, 0
        %v2991 = vadd.f32 %v2985, %v2989
        %v2992 = vmul.f32 %v2991, %v452
        %v2993 = vxor.u32 %v2992, 2147483648
        %v2994 = vmul.f32 %v2993, 1.442695
        %v2995 = vpow.pop %v2994
        %v2996 = vadd.f32 %v2995, 1.0
        %v2997 = vrcp.pop %v2996
        %v2998 = vmul.f32 %v2996, %v2997
        %v2999 = vsub.f32 1.0, %v2998
        %v3000 = vmul.f32 %v2997, %v2999
        %v3001 = vadd.f32 %v2997, %v3000
        %vm3002 = vweird.f32 %v2996
        %vm3003 = vweird.f32 %v2997
        %vm3004 = vmor %vm3002, %vm3003
        %v3005 = vsel %vm3004, %v2997, %v3001
        %v3006 = vand.u32 2147483647, %v2996
        %vm3007 = vcmp.eq.f32.partialorder %v3006, 8.507059e+37
        %v3008 = vand.u32 %v2996, 2147483648
        %v3009 = vor.u32 1.1754944e-38, %v3008
        %v3010 = vsel %vm3007, %v3009, %v3005
        %v3011 = vmul.f32 1.0, %v3010
        %v3012 = vmul.f32 %v3011, %v452
        %v3013 = vadd.f32 %v3012, %v453
        %v3014 = vmul.f32 %v3013, %v2853
        %3016 = vrot.lane.b32.xlu0 %v3013, 64
        %v3017 = vpop.permute.xlu0 %3016
        %v3019 = vmul.f32 %v3013, %v3017
        %3021 = vrot.lane.b32.xlu0 %v3019, 32
        %v3022 = vpop.permute.xlu0 %3021
        %v3024 = vadd.f32 %v3014, %v3022
        %v3025 = vtanh.pop %v3024
        %3027 = vrot.lane.b32.xlu0 %v3025, 64
        %v3028 = vpop.permute.xlu0 %3027
        %v3030 = vmul.f32 %v3013, %v3028
        %3032 = vrot.lane.b32.xlu0 %v3030, 32
        %v3033 = vpop.permute.xlu0 %3032
        %s3035 = scalar_lea.vmem %s427, 28 [#allocation13]
        %3036 = vst.msk [vmem:[%s3035] sm:$0x3] %vm641, %v3033
        %s3037 = scalar_lea.vmem %s371, 30 [#allocation2]
        %v3038 = vld [vmem:[%s3037] sm:$0x3]
        %v3039 = vld [vmem:[#allocation8] sm:$0xff]
        %v3040 = vld [vmem:[#allocation8 + $0x8] sm:$0xff]
        %v3041 = vld [vmem:[#allocation8 + $0x10] sm:$0xff]
        %v3042 = vld [vmem:[#allocation8 + $0x18] sm:$0xff]
        %3043 = vmatpush.msra.mxu0 0.0
        %3044 = vmatpush.msra.mxu0 0.0
        %3045 = vmatpush.msra.mxu0 0.0
        %3046 = vmatpush.msra.mxu0 0.0
        %3047 = vmatpush.msra.mxu0 0.0
        %3048 = vmatpush.msra.mxu0 0.0
        %3049 = vmatpush.msra.mxu0 0.0
        %3050 = vmatpush.msra.mxu0 0.0
        %3051 = vmatpush.msra.mxu0 0.0
        %3052 = vmatpush.msra.mxu0 0.0
        %3053 = vmatpush.msra.mxu0 0.0
        %3054 = vmatpush.msra.mxu0 0.0
        %3055 = vmatpush.msra.mxu0 %v3042
        %3056 = vmatpush.msra.mxu0 %v3041
        %3057 = vmatpush.msra.mxu0 %v3040
        %3058 = vmatpush.msra.mxu0 %v3039
        %3059 = vmatmul.f32.gmra.mxu0 %v2965
        %v3060 = vpop.f32.mrf.mxu0
        %v3061 = vadd.f32 0.0, %v3060
        %3062 = vdwg.mxu0
        %v3063 = vadd.f32 %v3038, %v3061
        %v3064 = vmul.f32 %v3063, %v452
        %v3065 = vxor.u32 %v3064, 2147483648
        %v3066 = vmul.f32 %v3065, 1.442695
        %v3067 = vpow.pop %v3066
        %v3068 = vadd.f32 %v3067, 1.0
        %v3069 = vrcp.pop %v3068
        %v3070 = vmul.f32 %v3068, %v3069
        %v3071 = vsub.f32 1.0, %v3070
        %v3072 = vmul.f32 %v3069, %v3071
        %v3073 = vadd.f32 %v3069, %v3072
        %vm3074 = vweird.f32 %v3068
        %vm3075 = vweird.f32 %v3069
        %vm3076 = vmor %vm3074, %vm3075
        %v3077 = vsel %vm3076, %v3069, %v3073
        %v3078 = vand.u32 2147483647, %v3068
        %vm3079 = vcmp.eq.f32.partialorder %v3078, 8.507059e+37
        %v3080 = vand.u32 %v3068, 2147483648
        %v3081 = vor.u32 1.1754944e-38, %v3080
        %v3082 = vsel %vm3079, %v3081, %v3077
        %v3083 = vmul.f32 1.0, %v3082
        %v3084 = vmul.f32 %v3083, %v452
        %v3085 = vadd.f32 %v3084, %v453
        %v3086 = vmul.f32 %v3085, %v2925
        %3088 = vrot.lane.b32.xlu0 %v3085, 64
        %v3089 = vpop.permute.xlu0 %3088
        %v3091 = vmul.f32 %v3085, %v3089
        %3093 = vrot.lane.b32.xlu0 %v3091, 32
        %v3094 = vpop.permute.xlu0 %3093
        %v3096 = vadd.f32 %v3086, %v3094
        %v3097 = vtanh.pop %v3096
        %3099 = vrot.lane.b32.xlu0 %v3097, 64
        %v3100 = vpop.permute.xlu0 %3099
        %v3102 = vmul.f32 %v3085, %v3100
        %v3103 = vld [vmem:[#allocation10] sm:$0xff]
        %v3104 = vld [vmem:[#allocation10 + $0x8] sm:$0xff]
        %v3105 = vld [vmem:[#allocation10 + $0x10] sm:$0xff]
        %v3106 = vld [vmem:[#allocation10 + $0x18] sm:$0xff]
        %v3107 = vld [vmem:[#allocation11] sm:$0xff]
        %v3108 = vld [vmem:[#allocation11 + $0x8] sm:$0xff]
        %v3109 = vld [vmem:[#allocation11 + $0x10] sm:$0xff]
        %v3110 = vld [vmem:[#allocation11 + $0x18] sm:$0xff]
        %v3111 = vsel %vm465, %v3033, 0
        %3113 = vmatpush.msra.mxu0 0.0
        %3114 = vmatpush.msra.mxu0 0.0
        %3115 = vmatpush.msra.mxu0 0.0
        %3116 = vmatpush.msra.mxu0 0.0
        %3117 = vmatpush.msra.mxu0 0.0
        %3118 = vmatpush.msra.mxu0 0.0
        %3119 = vmatpush.msra.mxu0 0.0
        %3120 = vmatpush.msra.mxu0 0.0
        %3121 = vmatpush.msra.mxu0 0.0
        %3122 = vmatpush.msra.mxu0 0.0
        %3123 = vmatpush.msra.mxu0 0.0
        %3124 = vmatpush.msra.mxu0 0.0
        %3125 = vmatpush.msra.mxu0 %v3110
        %3126 = vmatpush.msra.mxu0 %v3109
        %3127 = vmatpush.msra.mxu0 %v3108
        %3128 = vmatpush.msra.mxu0 %v3107
        %3129 = vmatmul.f32.gmra.mxu0 %v3111
        %v3130 = vpop.f32.mrf.mxu0
        %v3131 = vadd.f32 0.0, %v3130
        %3132 = vdwg.mxu0
        %3134 = vrot.lane.b32.xlu0 %v3102, 32
        %v3135 = vpop.permute.xlu0 %3134
        %v3136 = vsel %vm465, %v3135, 0
        %3138 = vmatpush.msra.mxu0 0.0
        %3139 = vmatpush.msra.mxu0 0.0
        %3140 = vmatpush.msra.mxu0 0.0
        %3141 = vmatpush.msra.mxu0 0.0
        %3142 = vmatpush.msra.mxu0 0.0
        %3143 = vmatpush.msra.mxu0 0.0
        %3144 = vmatpush.msra.mxu0 0.0
        %3145 = vmatpush.msra.mxu0 0.0
        %3146 = vmatpush.msra.mxu0 0.0
        %3147 = vmatpush.msra.mxu0 0.0
        %3148 = vmatpush.msra.mxu0 0.0
        %3149 = vmatpush.msra.mxu0 0.0
        %3150 = vmatpush.msra.mxu0 %v3106
        %3151 = vmatpush.msra.mxu0 %v3105
        %3152 = vmatpush.msra.mxu0 %v3104
        %3153 = vmatpush.msra.mxu0 %v3103
        %3154 = vmatmul.f32.gmra.mxu0 %v3136
        %v3155 = vpop.f32.mrf.mxu0
        %v3156 = vadd.f32 %v3131, %v3155
        %3157 = vdwg.mxu0
        %v3158 = vld [vmem:[%s6] sm:$0x1]
        %v3160 = vperm.slane %v3158, 0
        %v3162 = vadd.f32 %v3156, %v3160
        %v3163 = vmul.f32 %v3162, %v452
        %v3164 = vxor.u32 %v3163, 2147483648
        %v3165 = vmul.f32 %v3164, 1.442695
        %v3166 = vpow.pop %v3165
        %v3167 = vadd.f32 %v3166, 1.0
        %v3168 = vrcp.pop %v3167
        %v3169 = vmul.f32 %v3167, %v3168
        %v3170 = vsub.f32 1.0, %v3169
        %v3171 = vmul.f32 %v3168, %v3170
        %v3172 = vadd.f32 %v3168, %v3171
        %vm3173 = vweird.f32 %v3167
        %vm3174 = vweird.f32 %v3168
        %vm3175 = vmor %vm3173, %vm3174
        %v3176 = vsel %vm3175, %v3168, %v3172
        %v3177 = vand.u32 2147483647, %v3167
        %vm3178 = vcmp.eq.f32.partialorder %v3177, 8.507059e+37
        %v3179 = vand.u32 %v3167, 2147483648
        %v3180 = vor.u32 1.1754944e-38, %v3179
        %v3181 = vsel %vm3178, %v3180, %v3176
        %v3182 = vmul.f32 1.0, %v3181
        %v3183 = vmul.f32 %v3182, %v452
        %v3184 = vadd.f32 %v3183, %v453
        %v3185 = vmul.f32 %v3184, %v3024
        %3187 = vrot.lane.b32.xlu0 %v3184, 64
        %v3188 = vpop.permute.xlu0 %3187
        %v3190 = vmul.f32 %v3184, %v3188
        %3192 = vrot.lane.b32.xlu0 %v3190, 32
        %v3193 = vpop.permute.xlu0 %3192
        %v3195 = vadd.f32 %v3185, %v3193
        %v3196 = vtanh.pop %v3195
        %3198 = vrot.lane.b32.xlu0 %v3196, 64
        %v3199 = vpop.permute.xlu0 %3198
        %v3201 = vmul.f32 %v3184, %v3199
        %3203 = vrot.lane.b32.xlu0 %v3201, 32
        %v3204 = vpop.permute.xlu0 %3203
        %s3206 = scalar_lea.vmem %s427, 30 [#allocation13]
        %3207 = vst.msk [vmem:[%s3206] sm:$0x3] %vm641, %v3204
        %3209 = vst.msk [vmem:[#allocation14] sm:$0x3] %vm641, %v3135
        %3211 = vrot.lane.b32.xlu0 %v3096, 96
        %v3212 = vpop.permute.xlu0 %3211
        %3214 = vst.msk [vmem:[#allocation16] sm:$0x3] %vm641, %v3212
        %3215 = vst.msk [vmem:[%s455] sm:$0x3] %vm641, %v3204
        %3217 = vrot.lane.b32.xlu0 %v3195, 96
        %v3218 = vpop.permute.xlu0 %3217
        %3220 = vst.msk [vmem:[%s458] sm:$0x3] %vm641, %v3218
        %s3221 = sand.u32 %s191, 1
        %s3222 = scalar_lea.sflag [#allocation4], %s3221
        %s3223 = sand.u32 %s191, 1
        %s3224 = smul.addr %s3223, 32
        %s3225 = scalar_lea.vmem [#allocation13], %s3224
        // Predicated region
        $region77: #{tpu_custom_call.1} parent=47 // pred_check
          %p3226 = pneg %p201
        $region78: #{tpu_custom_call.1} parent=47 // pred_check_branch
          %3228 = sbr.rel (%p3226) target = $region80
        $region79: #{tpu_custom_call.1} parent=47 // pred_region
          %s3229 = smul.u32 16, %s31
          %3231 = vsyncadd %s3222, 0
          %s3232 = smul.addr %s3229, 2
          %s3233 = scalar_lea.hbm %s7, %s3232
          %s3234 = sshll.u32 %s3225, 4
          %s3235 = int_to_ptr.vmem [resolvable:$true] %s3234
          %s3236 = sshll.u32 %s3233, 4
          %s3237 = int_to_ptr.hbm [resolvable:$true] %s3236
          %3242 = dma.vmem_to_hbm [thread:$0]  %s3235, 512, %s3237, %s3222, 32, 32, 2
        $region80: #{tpu_custom_call.1} parent=47 // pred_fallthru
          _
        // Predicated region
        $region81: #{tpu_custom_call.1} parent=47 // pred_check
          %p3243 = pneg %p222
        $region82: #{tpu_custom_call.1} parent=47 // pred_check_branch
          %3245 = sbr.rel (%p3243) target = $region84
        $region83: #{tpu_custom_call.1} parent=47 // pred_region
          %3247 = vsyncadd [#allocation15], 0
          %s3248 = sshll.u32 [#allocation14], 4
          %s3249 = int_to_ptr.vmem [resolvable:$true] %s3248
          %s3250 = sshll.u32 %s8, 4
          %s3251 = int_to_ptr.hbm [resolvable:$true] %s3250
          %3256 = dma.vmem_to_hbm [thread:$0]  %s3249, 64, %s3251, [#allocation15], 32, 32, 2
        $region84: #{tpu_custom_call.1} parent=47 // pred_fallthru
          _
        // Predicated region
        $region85: #{tpu_custom_call.1} parent=47 // pred_check
          %p3257 = pneg %p243
        $region86: #{tpu_custom_call.1} parent=47 // pred_check_branch
          %3259 = sbr.rel (%p3257) target = $region88
        $region87: #{tpu_custom_call.1} parent=47 // pred_region
          %3261 = vsyncadd [#allocation15], 0
          %s3262 = sshll.u32 [#allocation16], 4
          %s3263 = int_to_ptr.vmem [resolvable:$true] %s3262
          %s3264 = sshll.u32 %s9, 4
          %s3265 = int_to_ptr.hbm [resolvable:$true] %s3264
          %3270 = dma.vmem_to_hbm [thread:$0]  %s3263, 64, %s3265, [#allocation15], 32, 32, 2
        $region88: #{tpu_custom_call.1} parent=47 // pred_fallthru
          _
        // Predicated region
        $region89: #{tpu_custom_call.1} parent=47 // pred_check
          %p3271 = pneg %p222
        $region90: #{tpu_custom_call.1} parent=47 // pred_check_branch
          %3273 = sbr.rel (%p3271) target = $region92
        $region91: #{tpu_custom_call.1} parent=47 // pred_region
          %3275 = dma.done [#allocation15], 64
        $region92: #{tpu_custom_call.1} parent=47 // pred_fallthru
          _
        // Predicated region
        $region93: #{tpu_custom_call.1} parent=47 // pred_check
          %p3276 = pneg %p243
        $region94: #{tpu_custom_call.1} parent=47 // pred_check_branch
          %3278 = sbr.rel (%p3276) target = $region96
        $region95: #{tpu_custom_call.1} parent=47 // pred_region
          %3280 = dma.done [#allocation15], 64
        $region96: #{tpu_custom_call.1} parent=47 // pred_fallthru
          _
      $region48: #{tpu_custom_call.1} parent=5 // pred_fallthru
        _
      %p3281 = scmp.le.s32.totalorder 2, %s26
      // Predicated region
      $region97: #{tpu_custom_call.1} parent=5 // pred_check
        %p3282 = pneg %p3281
      $region98: #{tpu_custom_call.1} parent=5 // pred_check_branch
        %3284 = sbr.rel (%p3282) target = $region100
      $region99: #{tpu_custom_call.1} parent=5 // pred_region
        %s3285 = ssub.s32 %s26, 2
        // Predicated region
        $region101: #{tpu_custom_call.1} parent=99 // pred_check
          %p3286 = pneg %p207
        $region102: #{tpu_custom_call.1} parent=99 // pred_check_branch
          %3288 = sbr.rel (%p3286) target = $region104
        $region103: #{tpu_custom_call.1} parent=99 // pred_region
          %s3289 = sand.u32 %s192, 1
          %s3290 = scalar_lea.sflag [#allocation4], %s3289
          %s3291 = sand.u32 %s192, 1
          %s3292 = smul.addr %s3291, 32
          %s3293 = scalar_lea.vmem [#allocation13], %s3292
          %3295 = dma.done %s3290, 512
        $region104: #{tpu_custom_call.1} parent=99 // pred_fallthru
          _
      $region100: #{tpu_custom_call.1} parent=5 // pred_fallthru
        _
    $region6: #{tpu_custom_call.1} parent=1 // loop_footer
      %s30 = sadd.s32 1, %s26
    $region7: #{tpu_custom_call.1} parent=1 // loop_footer_branch
      %25 = sbr.rel target = $region3
    $region8: #{tpu_custom_call.1} parent=1 // loop_exit
      _
    %3296 = vsyncpa [#allocation3], 1
    %s3297 = scalar_lea.sflag [#allocation3], 1
    %3298 = vsyncpa %s3297, 1
    %3299 = vsyncpa [#allocation6], 1
    %3300 = vsyncpa [#allocation9], 1
    %3301 = vsyncpa [#allocation12], 1
    %3302 = vsyncpa [#allocation4], 1
    %s3303 = scalar_lea.sflag [#allocation4], 1
    %3304 = vsyncpa %s3303, 1
    %3305 = vsyncpa [#allocation15], 1

</llo_original>
